<compile_context>
chip_gen: v5e
topology: v5e:2x2
jax: 0.10.0
libtpu: 0.0.40
codegen_flags: <defaults>
</compile_context>

<pallas_src>
import functools

import jax
import jax.numpy as jnp
from jax.experimental import pallas as pl
from jax.experimental.pallas import tpu as pltpu

LN_EPS = 1e-5  # torch.nn.LayerNorm default


def _layernorm(x, g, b):
    mu = jnp.mean(x, axis=-1, keepdims=True)
    var = jnp.mean(jnp.square(x - mu), axis=-1, keepdims=True)
    return (x - mu) * jax.lax.rsqrt(var + LN_EPS) * g + b


def fused_transformer_kernel(x0_ref, wq_ref, wk_ref, wv_ref, wo_ref,
                             w1_ref, w2_ref, vecs_ref, wf_ref, bf_ref,
                             out_ref, *, S, B, D, heads, depth):
    """All encoder layers + mean-pool + classifier head in one invocation.

    x0_ref  : (S*B, D) f32   embedded tokens, rows ordered (s, b)
    w*_ref  : (depth, D, D) bf16   stacked per-layer matmul weights
    vecs_ref: (depth, 10, D) f32   [b_q,b_k,b_v,b_o,ln1_g,ln1_b,b1,b2,ln2_g,ln2_b]
    wf_ref  : (D, C) f32,  bf_ref: (1, C) f32
    out_ref : (B, C) f32
    """
    dh = D // heads
    scale = dh ** -0.5

    def layer(l, x):
        vecs = vecs_ref[l]                                    # (10, D) f32
        b_q, b_k, b_v, b_o = vecs[0:1], vecs[1:2], vecs[2:3], vecs[3:4]
        ln1_g, ln1_b = vecs[4:5], vecs[5:6]
        b_1, b_2 = vecs[6:7], vecs[7:8]
        ln2_g, ln2_b = vecs[8:9], vecs[9:10]

        # ---- multi-head self-attention (mixes over the B rows of each s) ----
        xb = x.astype(jnp.bfloat16)
        q = jnp.dot(xb, wq_ref[l], preferred_element_type=jnp.float32) + b_q
        k = jnp.dot(xb, wk_ref[l], preferred_element_type=jnp.float32) + b_k
        v = jnp.dot(xb, wv_ref[l], preferred_element_type=jnp.float32) + b_v
        wo = wo_ref[l]                                        # (D, D) bf16

        attn = jnp.zeros((S * B, D), jnp.float32)
        for h in range(heads):                                # static unroll
            sl = slice(h * dh, (h + 1) * dh)
            q_h = (q[:, sl] * scale).reshape(S, B, dh).astype(jnp.bfloat16)
            k_h = k[:, sl].reshape(S, B, dh).astype(jnp.bfloat16)
            v_h = v[:, sl].reshape(S, B, dh).astype(jnp.bfloat16)
            # scores[s, i, j] = q[i, s, h, :] . k[j, s, h, :]  (MXU, batch = s)
            s_h = jnp.einsum('sid,sjd->sij', q_h, k_h,
                             preferred_element_type=jnp.float32)
            s_h = s_h - jnp.max(s_h, axis=-1, keepdims=True)
            e = jnp.exp(s_h)
            p = e * pl.reciprocal(jnp.sum(e, axis=-1, keepdims=True), approx=True)
            ctx = jnp.einsum('sij,sjd->sid', p.astype(jnp.bfloat16), v_h,
                             preferred_element_type=jnp.float32)  # (S, B, dh)
            # out-projection accumulated per head: ctx_h @ Wo[h*dh:(h+1)*dh, :]
            attn = attn + jnp.dot(ctx.reshape(S * B, dh).astype(jnp.bfloat16),
                                  wo[sl, :], preferred_element_type=jnp.float32)
        attn = attn + b_o

        # post-norm residual (dropout = identity in eval mode)
        x = _layernorm(x + attn, ln1_g, ln1_b)

        # ---- feed-forward: Linear(D, D) -> ReLU -> Linear(D, D) ----
        xb = x.astype(jnp.bfloat16)
        hmid = jnp.dot(xb, w1_ref[l], preferred_element_type=jnp.float32) + b_1
        hmid = jnp.maximum(hmid, 0.0)
        ff = jnp.dot(hmid.astype(jnp.bfloat16), w2_ref[l],
                     preferred_element_type=jnp.float32) + b_2
        return _layernorm(x + ff, ln2_g, ln2_b)

    x = jax.lax.fori_loop(0, depth, layer, x0_ref[...], unroll=True)

    # torch.mean(x, 1): mean over the original S axis == leading axis here.
    pooled = jnp.mean(x.reshape(S, B, D), axis=0)             # (B, D)
    out_ref[...] = (jnp.dot(pooled, wf_ref[...],
                            preferred_element_type=jnp.float32) + bf_ref[...])


def transformer_model_forward(x_ids, params, *, heads):
    """Embedding gather + layout prep (JAX glue), then ONE fused Pallas call."""
    B, S = x_ids.shape
    emb = params['embedding']
    D = emb.shape[-1]
    depth = params['w_q'].shape[0]
    n_class = params['final_w'].shape[-1]

    # nn.Embedding(padding_idx=0): row 0 of the table is zero.
    h0 = jnp.take(emb, x_ids, axis=0)                         # (B, S, D) f32
    # batch_first=False: attention mixes across B per (s, head).  Present the
    # kernel with (S, B, D) flattened to (S*B, D) so its attention batch axis is
    # leading and the kernel needs no in-kernel transposes.
    x0 = jnp.transpose(h0, (1, 0, 2)).reshape(S * B, D)

    bf16 = lambda a: a.astype(jnp.bfloat16)
    wq, wk, wv = bf16(params['w_q']), bf16(params['w_k']), bf16(params['w_v'])
    wo, w1, w2 = bf16(params['w_o']), bf16(params['w1']), bf16(params['w2'])

    # Pack the 10 small per-layer (D,) vectors into one (depth, 10, D) slab.
    vecs = jnp.stack([params[k] for k in
                      ('b_q', 'b_k', 'b_v', 'b_o', 'ln1_g', 'ln1_b',
                       'b1', 'b2', 'ln2_g', 'ln2_b')], axis=1)

    inputs = (x0, wq, wk, wv, wo, w1, w2, vecs,
              params['final_w'], params['final_b'])

    # Explicit VMEM budget: resident inputs + activation headroom.  Toy sizes fit
    # trivially; for real shapes re-derive against v7x's 64 MiB physical cap.
    in_bytes = sum(a.size * a.dtype.itemsize for a in inputs)
    vmem_limit = int(min(96 * 1024 * 1024,
                         max(32 * 1024 * 1024, 4 * in_bytes + (1 << 24))))

    kernel = functools.partial(fused_transformer_kernel, S=S, B=B, D=D,
                               heads=heads, depth=depth)

    return pl.pallas_call(
        kernel,
        out_shape=jax.ShapeDtypeStruct((B, n_class), jnp.float32),
        in_specs=[pl.BlockSpec(memory_space=pltpu.MemorySpace.VMEM)] * len(inputs),
        out_specs=pl.BlockSpec(memory_space=pltpu.MemorySpace.VMEM),
        compiler_params=pltpu.CompilerParams(vmem_limit_bytes=vmem_limit),
    )(*inputs)


def init_params(key, *, vocab_size, dim, depth, n_class):
    s = 0.02
    keys = iter(jax.random.split(key, 16))

    def rnd(shape):
        return jax.random.normal(next(keys), shape, jnp.float32) * s

    emb = rnd((vocab_size, dim)).at[0].set(0.0)               # padding_idx=0

    return dict(
        embedding=emb,
        # per-layer weights stacked on a leading depth axis, stored
        # (in_features, out_features) so the kernel computes x @ W + b.
        w_q=rnd((depth, dim, dim)), b_q=rnd((depth, dim)),
        w_k=rnd((depth, dim, dim)), b_k=rnd((depth, dim)),
        w_v=rnd((depth, dim, dim)), b_v=rnd((depth, dim)),
        w_o=rnd((depth, dim, dim)), b_o=rnd((depth, dim)),
        ln1_g=jnp.ones((depth, dim), jnp.float32),
        ln1_b=jnp.zeros((depth, dim), jnp.float32),
        w1=rnd((depth, dim, dim)), b1=rnd((depth, dim)),      # dim_feedforward == dim
        w2=rnd((depth, dim, dim)), b2=rnd((depth, dim)),
        ln2_g=jnp.ones((depth, dim), jnp.float32),
        ln2_b=jnp.zeros((depth, dim), jnp.float32),
        final_w=rnd((dim, n_class)),
        final_b=rnd((1, n_class)),
    )


if __name__ == "__main__":
    vocab_size, dim, heads, depth = 16, 32, 4, 2
    n_class = 4
    B, S = 2, 8   # n_vec only parameterizes the unused posenc / 'flatten' path

    key = jax.random.PRNGKey(0)
    pkey, xkey = jax.random.split(key)
    params = init_params(pkey, vocab_size=vocab_size, dim=dim, depth=depth,
                         n_class=n_class)
    x = jax.random.randint(xkey, (B, S), 1, vocab_size, dtype=jnp.int32)

    out = transformer_model_forward(x, params, heads=heads)
    out = jax.block_until_ready(out)
    assert out.shape == (B, n_class) and out.dtype == jnp.float32
    assert bool(jnp.all(jnp.isfinite(out)))
    print("KERNEL_OK")
</pallas_src>

<mosaic_0001>
module attributes {stable_mosaic.version = 11 : i64} {
  func.func @fused_transformer_kernel(%arg0: memref<16x32xf32, #tpu.memory_space<vmem>>, %arg1: memref<2x32x32xbf16, #tpu.memory_space<vmem>>, %arg2: memref<2x32x32xbf16, #tpu.memory_space<vmem>>, %arg3: memref<2x32x32xbf16, #tpu.memory_space<vmem>>, %arg4: memref<2x32x32xbf16, #tpu.memory_space<vmem>>, %arg5: memref<2x32x32xbf16, #tpu.memory_space<vmem>>, %arg6: memref<2x32x32xbf16, #tpu.memory_space<vmem>>, %arg7: memref<2x10x32xf32, #tpu.memory_space<vmem>>, %arg8: memref<32x4xf32, #tpu.memory_space<vmem>>, %arg9: memref<1x4xf32, #tpu.memory_space<vmem>>, %arg10: memref<2x4xf32, #tpu.memory_space<vmem>>) attributes {dimension_semantics = [], scalar_prefetch = 0 : i64, scratch_operands = 0 : i64, tpu.core_type = #tpu.core_type<tc>} {
    %c0 = arith.constant 0 : index
    %c0_0 = arith.constant 0 : index
    %0 = vector.load %arg0[%c0, %c0_0] : memref<16x32xf32, #tpu.memory_space<vmem>>, vector<16x32xf32>
    %c0_i32 = arith.constant 0 : i32
    %1 = arith.index_cast %c0_i32 : i32 to index
    %c0_1 = arith.constant 0 : index
    %c0_2 = arith.constant 0 : index
    %2 = vector.load %arg7[%1, %c0_1, %c0_2] : memref<2x10x32xf32, #tpu.memory_space<vmem>>, vector<1x10x32xf32>
    %3 = vector.shape_cast %2 : vector<1x10x32xf32> to vector<10x32xf32>
    %4 = vector.extract_strided_slice %3 {offsets = [0, 0], sizes = [1, 32], strides = [1, 1]} : vector<10x32xf32> to vector<1x32xf32>
    %5 = vector.extract_strided_slice %3 {offsets = [1, 0], sizes = [1, 32], strides = [1, 1]} : vector<10x32xf32> to vector<1x32xf32>
    %6 = vector.extract_strided_slice %3 {offsets = [2, 0], sizes = [1, 32], strides = [1, 1]} : vector<10x32xf32> to vector<1x32xf32>
    %7 = vector.extract_strided_slice %3 {offsets = [3, 0], sizes = [1, 32], strides = [1, 1]} : vector<10x32xf32> to vector<1x32xf32>
    %8 = vector.extract_strided_slice %3 {offsets = [4, 0], sizes = [1, 32], strides = [1, 1]} : vector<10x32xf32> to vector<1x32xf32>
    %9 = vector.extract_strided_slice %3 {offsets = [5, 0], sizes = [1, 32], strides = [1, 1]} : vector<10x32xf32> to vector<1x32xf32>
    %10 = vector.extract_strided_slice %3 {offsets = [6, 0], sizes = [1, 32], strides = [1, 1]} : vector<10x32xf32> to vector<1x32xf32>
    %11 = vector.extract_strided_slice %3 {offsets = [7, 0], sizes = [1, 32], strides = [1, 1]} : vector<10x32xf32> to vector<1x32xf32>
    %12 = vector.extract_strided_slice %3 {offsets = [8, 0], sizes = [1, 32], strides = [1, 1]} : vector<10x32xf32> to vector<1x32xf32>
    %13 = vector.extract_strided_slice %3 {offsets = [9, 0], sizes = [1, 32], strides = [1, 1]} : vector<10x32xf32> to vector<1x32xf32>
    %14 = arith.truncf %0 : vector<16x32xf32> to vector<16x32xbf16>
    %15 = arith.index_cast %c0_i32 : i32 to index
    %c0_3 = arith.constant 0 : index
    %c0_4 = arith.constant 0 : index
    %16 = vector.load %arg1[%15, %c0_3, %c0_4] : memref<2x32x32xbf16, #tpu.memory_space<vmem>>, vector<1x32x32xbf16>
    %17 = vector.shape_cast %16 : vector<1x32x32xbf16> to vector<32x32xbf16>
    %cst = arith.constant dense<0.000000e+00> : vector<16x32xf32>
    %18 = tpu.matmul %14, %17, %cst {dimension_numbers = #tpu.dot_dimension_numbers<[1], [0], [0], [1], [0, 0, 1, 1], [], []>} : vector<16x32xbf16>, vector<32x32xbf16>, vector<16x32xf32> -> vector<16x32xf32>
    %19 = vector.broadcast %4 : vector<1x32xf32> to vector<16x32xf32>
    %20 = arith.addf %18, %19 : vector<16x32xf32>
    %21 = arith.index_cast %c0_i32 : i32 to index
    %c0_5 = arith.constant 0 : index
    %c0_6 = arith.constant 0 : index
    %22 = vector.load %arg2[%21, %c0_5, %c0_6] : memref<2x32x32xbf16, #tpu.memory_space<vmem>>, vector<1x32x32xbf16>
    %23 = vector.shape_cast %22 : vector<1x32x32xbf16> to vector<32x32xbf16>
    %cst_7 = arith.constant dense<0.000000e+00> : vector<16x32xf32>
    %24 = tpu.matmul %14, %23, %cst_7 {dimension_numbers = #tpu.dot_dimension_numbers<[1], [0], [0], [1], [0, 0, 1, 1], [], []>} : vector<16x32xbf16>, vector<32x32xbf16>, vector<16x32xf32> -> vector<16x32xf32>
    %25 = vector.broadcast %5 : vector<1x32xf32> to vector<16x32xf32>
    %26 = arith.addf %24, %25 : vector<16x32xf32>
    %27 = arith.index_cast %c0_i32 : i32 to index
    %c0_8 = arith.constant 0 : index
    %c0_9 = arith.constant 0 : index
    %28 = vector.load %arg3[%27, %c0_8, %c0_9] : memref<2x32x32xbf16, #tpu.memory_space<vmem>>, vector<1x32x32xbf16>
    %29 = vector.shape_cast %28 : vector<1x32x32xbf16> to vector<32x32xbf16>
    %cst_10 = arith.constant dense<0.000000e+00> : vector<16x32xf32>
    %30 = tpu.matmul %14, %29, %cst_10 {dimension_numbers = #tpu.dot_dimension_numbers<[1], [0], [0], [1], [0, 0, 1, 1], [], []>} : vector<16x32xbf16>, vector<32x32xbf16>, vector<16x32xf32> -> vector<16x32xf32>
    %31 = vector.broadcast %6 : vector<1x32xf32> to vector<16x32xf32>
    %32 = arith.addf %30, %31 : vector<16x32xf32>
    %33 = arith.index_cast %c0_i32 : i32 to index
    %c0_11 = arith.constant 0 : index
    %c0_12 = arith.constant 0 : index
    %34 = vector.load %arg4[%33, %c0_11, %c0_12] : memref<2x32x32xbf16, #tpu.memory_space<vmem>>, vector<1x32x32xbf16>
    %35 = vector.shape_cast %34 : vector<1x32x32xbf16> to vector<32x32xbf16>
    %cst_13 = arith.constant 0.000000e+00 : f32
    %36 = vector.broadcast %cst_13 : f32 to vector<16x32xf32>
    %37 = vector.extract_strided_slice %20 {offsets = [0, 0], sizes = [16, 8], strides = [1, 1]} : vector<16x32xf32> to vector<16x8xf32>
    %cst_14 = arith.constant 0.353553385 : f32
    %38 = vector.broadcast %cst_14 : f32 to vector<16x8xf32>
    %39 = arith.mulf %37, %38 : vector<16x8xf32>
    %40 = vector.shape_cast %39 : vector<16x8xf32> to vector<8x2x8xf32>
    %41 = arith.truncf %40 : vector<8x2x8xf32> to vector<8x2x8xbf16>
    %42 = vector.extract_strided_slice %26 {offsets = [0, 0], sizes = [16, 8], strides = [1, 1]} : vector<16x32xf32> to vector<16x8xf32>
    %43 = vector.shape_cast %42 : vector<16x8xf32> to vector<8x2x8xf32>
    %44 = arith.truncf %43 : vector<8x2x8xf32> to vector<8x2x8xbf16>
    %45 = vector.extract_strided_slice %32 {offsets = [0, 0], sizes = [16, 8], strides = [1, 1]} : vector<16x32xf32> to vector<16x8xf32>
    %46 = vector.shape_cast %45 : vector<16x8xf32> to vector<8x2x8xf32>
    %47 = arith.truncf %46 : vector<8x2x8xf32> to vector<8x2x8xbf16>
    "tpu.trace_start"() <{level = 10 : i32, message = "sid,sjd->sij"}> : () -> ()
    %cst_15 = arith.constant dense<0.000000e+00> : vector<8x2x2xf32>
    %48 = tpu.matmul %41, %44, %cst_15 {dimension_numbers = #tpu.dot_dimension_numbers<[2], [2], [1], [1], [0, 0, 0, 1, 1, 1], [0], [0]>} : vector<8x2x8xbf16>, vector<8x2x8xbf16>, vector<8x2x2xf32> -> vector<8x2x2xf32>
    "tpu.trace_stop"() : () -> ()
    %cst_16 = arith.constant dense<0xFF800000> : vector<8x2xf32>
    %49 = vector.multi_reduction <maximumf>, %48, %cst_16 [2] : vector<8x2x2xf32> to vector<8x2xf32>
    %50 = vector.shape_cast %49 : vector<8x2xf32> to vector<8x2x1xf32>
    %51 = vector.broadcast %50 : vector<8x2x1xf32> to vector<8x2x2xf32>
    %52 = arith.subf %48, %51 : vector<8x2x2xf32>
    %53 = math.exp %52 : vector<8x2x2xf32>
    %cst_17 = arith.constant dense<0.000000e+00> : vector<8x2xf32>
    %54 = vector.multi_reduction <add>, %53, %cst_17 [2] : vector<8x2x2xf32> to vector<8x2xf32>
    %55 = vector.shape_cast %54 : vector<8x2xf32> to vector<8x2x1xf32>
    %56 = tpu.reciprocal %55 {approx = true} : vector<8x2x1xf32> -> vector<8x2x1xf32>
    %57 = vector.broadcast %56 : vector<8x2x1xf32> to vector<8x2x2xf32>
    %58 = arith.mulf %53, %57 : vector<8x2x2xf32>
    %59 = arith.truncf %58 : vector<8x2x2xf32> to vector<8x2x2xbf16>
    "tpu.trace_start"() <{level = 10 : i32, message = "sij,sjd->sid"}> : () -> ()
    %cst_18 = arith.constant dense<0.000000e+00> : vector<8x2x8xf32>
    %60 = tpu.matmul %59, %47, %cst_18 {dimension_numbers = #tpu.dot_dimension_numbers<[2], [1], [1], [2], [0, 0, 0, 1, 1, 2], [0], [0]>} : vector<8x2x2xbf16>, vector<8x2x8xbf16>, vector<8x2x8xf32> -> vector<8x2x8xf32>
    "tpu.trace_stop"() : () -> ()
    %61 = vector.shape_cast %60 : vector<8x2x8xf32> to vector<16x8xf32>
    %62 = arith.truncf %61 : vector<16x8xf32> to vector<16x8xbf16>
    %63 = vector.extract_strided_slice %35 {offsets = [0, 0], sizes = [8, 32], strides = [1, 1]} : vector<32x32xbf16> to vector<8x32xbf16>
    %cst_19 = arith.constant dense<0.000000e+00> : vector<16x32xf32>
    %64 = tpu.matmul %62, %63, %cst_19 {dimension_numbers = #tpu.dot_dimension_numbers<[1], [0], [0], [1], [0, 0, 1, 1], [], []>} : vector<16x8xbf16>, vector<8x32xbf16>, vector<16x32xf32> -> vector<16x32xf32>
    %65 = arith.addf %36, %64 : vector<16x32xf32>
    %66 = vector.extract_strided_slice %20 {offsets = [0, 8], sizes = [16, 8], strides = [1, 1]} : vector<16x32xf32> to vector<16x8xf32>
    %cst_20 = arith.constant 0.353553385 : f32
    %67 = vector.broadcast %cst_20 : f32 to vector<16x8xf32>
    %68 = arith.mulf %66, %67 : vector<16x8xf32>
    %69 = vector.shape_cast %68 : vector<16x8xf32> to vector<8x2x8xf32>
    %70 = arith.truncf %69 : vector<8x2x8xf32> to vector<8x2x8xbf16>
    %71 = vector.extract_strided_slice %26 {offsets = [0, 8], sizes = [16, 8], strides = [1, 1]} : vector<16x32xf32> to vector<16x8xf32>
    %72 = vector.shape_cast %71 : vector<16x8xf32> to vector<8x2x8xf32>
    %73 = arith.truncf %72 : vector<8x2x8xf32> to vector<8x2x8xbf16>
    %74 = vector.extract_strided_slice %32 {offsets = [0, 8], sizes = [16, 8], strides = [1, 1]} : vector<16x32xf32> to vector<16x8xf32>
    %75 = vector.shape_cast %74 : vector<16x8xf32> to vector<8x2x8xf32>
    %76 = arith.truncf %75 : vector<8x2x8xf32> to vector<8x2x8xbf16>
    "tpu.trace_start"() <{level = 10 : i32, message = "sid,sjd->sij"}> : () -> ()
    %cst_21 = arith.constant dense<0.000000e+00> : vector<8x2x2xf32>
    %77 = tpu.matmul %70, %73, %cst_21 {dimension_numbers = #tpu.dot_dimension_numbers<[2], [2], [1], [1], [0, 0, 0, 1, 1, 1], [0], [0]>} : vector<8x2x8xbf16>, vector<8x2x8xbf16>, vector<8x2x2xf32> -> vector<8x2x2xf32>
    "tpu.trace_stop"() : () -> ()
    %cst_22 = arith.constant dense<0xFF800000> : vector<8x2xf32>
    %78 = vector.multi_reduction <maximumf>, %77, %cst_22 [2] : vector<8x2x2xf32> to vector<8x2xf32>
    %79 = vector.shape_cast %78 : vector<8x2xf32> to vector<8x2x1xf32>
    %80 = vector.broadcast %79 : vector<8x2x1xf32> to vector<8x2x2xf32>
    %81 = arith.subf %77, %80 : vector<8x2x2xf32>
    %82 = math.exp %81 : vector<8x2x2xf32>
    %cst_23 = arith.constant dense<0.000000e+00> : vector<8x2xf32>
    %83 = vector.multi_reduction <add>, %82, %cst_23 [2] : vector<8x2x2xf32> to vector<8x2xf32>
    %84 = vector.shape_cast %83 : vector<8x2xf32> to vector<8x2x1xf32>
    %85 = tpu.reciprocal %84 {approx = true} : vector<8x2x1xf32> -> vector<8x2x1xf32>
    %86 = vector.broadcast %85 : vector<8x2x1xf32> to vector<8x2x2xf32>
    %87 = arith.mulf %82, %86 : vector<8x2x2xf32>
    %88 = arith.truncf %87 : vector<8x2x2xf32> to vector<8x2x2xbf16>
    "tpu.trace_start"() <{level = 10 : i32, message = "sij,sjd->sid"}> : () -> ()
    %cst_24 = arith.constant dense<0.000000e+00> : vector<8x2x8xf32>
    %89 = tpu.matmul %88, %76, %cst_24 {dimension_numbers = #tpu.dot_dimension_numbers<[2], [1], [1], [2], [0, 0, 0, 1, 1, 2], [0], [0]>} : vector<8x2x2xbf16>, vector<8x2x8xbf16>, vector<8x2x8xf32> -> vector<8x2x8xf32>
    "tpu.trace_stop"() : () -> ()
    %90 = vector.shape_cast %89 : vector<8x2x8xf32> to vector<16x8xf32>
    %91 = arith.truncf %90 : vector<16x8xf32> to vector<16x8xbf16>
    %92 = vector.extract_strided_slice %35 {offsets = [8, 0], sizes = [8, 32], strides = [1, 1]} : vector<32x32xbf16> to vector<8x32xbf16>
    %cst_25 = arith.constant dense<0.000000e+00> : vector<16x32xf32>
    %93 = tpu.matmul %91, %92, %cst_25 {dimension_numbers = #tpu.dot_dimension_numbers<[1], [0], [0], [1], [0, 0, 1, 1], [], []>} : vector<16x8xbf16>, vector<8x32xbf16>, vector<16x32xf32> -> vector<16x32xf32>
    %94 = arith.addf %65, %93 : vector<16x32xf32>
    %95 = vector.extract_strided_slice %20 {offsets = [0, 16], sizes = [16, 8], strides = [1, 1]} : vector<16x32xf32> to vector<16x8xf32>
    %cst_26 = arith.constant 0.353553385 : f32
    %96 = vector.broadcast %cst_26 : f32 to vector<16x8xf32>
    %97 = arith.mulf %95, %96 : vector<16x8xf32>
    %98 = vector.shape_cast %97 : vector<16x8xf32> to vector<8x2x8xf32>
    %99 = arith.truncf %98 : vector<8x2x8xf32> to vector<8x2x8xbf16>
    %100 = vector.extract_strided_slice %26 {offsets = [0, 16], sizes = [16, 8], strides = [1, 1]} : vector<16x32xf32> to vector<16x8xf32>
    %101 = vector.shape_cast %100 : vector<16x8xf32> to vector<8x2x8xf32>
    %102 = arith.truncf %101 : vector<8x2x8xf32> to vector<8x2x8xbf16>
    %103 = vector.extract_strided_slice %32 {offsets = [0, 16], sizes = [16, 8], strides = [1, 1]} : vector<16x32xf32> to vector<16x8xf32>
    %104 = vector.shape_cast %103 : vector<16x8xf32> to vector<8x2x8xf32>
    %105 = arith.truncf %104 : vector<8x2x8xf32> to vector<8x2x8xbf16>
    "tpu.trace_start"() <{level = 10 : i32, message = "sid,sjd->sij"}> : () -> ()
    %cst_27 = arith.constant dense<0.000000e+00> : vector<8x2x2xf32>
    %106 = tpu.matmul %99, %102, %cst_27 {dimension_numbers = #tpu.dot_dimension_numbers<[2], [2], [1], [1], [0, 0, 0, 1, 1, 1], [0], [0]>} : vector<8x2x8xbf16>, vector<8x2x8xbf16>, vector<8x2x2xf32> -> vector<8x2x2xf32>
    "tpu.trace_stop"() : () -> ()
    %cst_28 = arith.constant dense<0xFF800000> : vector<8x2xf32>
    %107 = vector.multi_reduction <maximumf>, %106, %cst_28 [2] : vector<8x2x2xf32> to vector<8x2xf32>
    %108 = vector.shape_cast %107 : vector<8x2xf32> to vector<8x2x1xf32>
    %109 = vector.broadcast %108 : vector<8x2x1xf32> to vector<8x2x2xf32>
    %110 = arith.subf %106, %109 : vector<8x2x2xf32>
    %111 = math.exp %110 : vector<8x2x2xf32>
    %cst_29 = arith.constant dense<0.000000e+00> : vector<8x2xf32>
    %112 = vector.multi_reduction <add>, %111, %cst_29 [2] : vector<8x2x2xf32> to vector<8x2xf32>
    %113 = vector.shape_cast %112 : vector<8x2xf32> to vector<8x2x1xf32>
    %114 = tpu.reciprocal %113 {approx = true} : vector<8x2x1xf32> -> vector<8x2x1xf32>
    %115 = vector.broadcast %114 : vector<8x2x1xf32> to vector<8x2x2xf32>
    %116 = arith.mulf %111, %115 : vector<8x2x2xf32>
    %117 = arith.truncf %116 : vector<8x2x2xf32> to vector<8x2x2xbf16>
    "tpu.trace_start"() <{level = 10 : i32, message = "sij,sjd->sid"}> : () -> ()
    %cst_30 = arith.constant dense<0.000000e+00> : vector<8x2x8xf32>
    %118 = tpu.matmul %117, %105, %cst_30 {dimension_numbers = #tpu.dot_dimension_numbers<[2], [1], [1], [2], [0, 0, 0, 1, 1, 2], [0], [0]>} : vector<8x2x2xbf16>, vector<8x2x8xbf16>, vector<8x2x8xf32> -> vector<8x2x8xf32>
    "tpu.trace_stop"() : () -> ()
    %119 = vector.shape_cast %118 : vector<8x2x8xf32> to vector<16x8xf32>
    %120 = arith.truncf %119 : vector<16x8xf32> to vector<16x8xbf16>
    %121 = vector.extract_strided_slice %35 {offsets = [16, 0], sizes = [8, 32], strides = [1, 1]} : vector<32x32xbf16> to vector<8x32xbf16>
    %cst_31 = arith.constant dense<0.000000e+00> : vector<16x32xf32>
    %122 = tpu.matmul %120, %121, %cst_31 {dimension_numbers = #tpu.dot_dimension_numbers<[1], [0], [0], [1], [0, 0, 1, 1], [], []>} : vector<16x8xbf16>, vector<8x32xbf16>, vector<16x32xf32> -> vector<16x32xf32>
    %123 = arith.addf %94, %122 : vector<16x32xf32>
    %124 = vector.extract_strided_slice %20 {offsets = [0, 24], sizes = [16, 8], strides = [1, 1]} : vector<16x32xf32> to vector<16x8xf32>
    %cst_32 = arith.constant 0.353553385 : f32
    %125 = vector.broadcast %cst_32 : f32 to vector<16x8xf32>
    %126 = arith.mulf %124, %125 : vector<16x8xf32>
    %127 = vector.shape_cast %126 : vector<16x8xf32> to vector<8x2x8xf32>
    %128 = arith.truncf %127 : vector<8x2x8xf32> to vector<8x2x8xbf16>
    %129 = vector.extract_strided_slice %26 {offsets = [0, 24], sizes = [16, 8], strides = [1, 1]} : vector<16x32xf32> to vector<16x8xf32>
    %130 = vector.shape_cast %129 : vector<16x8xf32> to vector<8x2x8xf32>
    %131 = arith.truncf %130 : vector<8x2x8xf32> to vector<8x2x8xbf16>
    %132 = vector.extract_strided_slice %32 {offsets = [0, 24], sizes = [16, 8], strides = [1, 1]} : vector<16x32xf32> to vector<16x8xf32>
    %133 = vector.shape_cast %132 : vector<16x8xf32> to vector<8x2x8xf32>
    %134 = arith.truncf %133 : vector<8x2x8xf32> to vector<8x2x8xbf16>
    "tpu.trace_start"() <{level = 10 : i32, message = "sid,sjd->sij"}> : () -> ()
    %cst_33 = arith.constant dense<0.000000e+00> : vector<8x2x2xf32>
    %135 = tpu.matmul %128, %131, %cst_33 {dimension_numbers = #tpu.dot_dimension_numbers<[2], [2], [1], [1], [0, 0, 0, 1, 1, 1], [0], [0]>} : vector<8x2x8xbf16>, vector<8x2x8xbf16>, vector<8x2x2xf32> -> vector<8x2x2xf32>
    "tpu.trace_stop"() : () -> ()
    %cst_34 = arith.constant dense<0xFF800000> : vector<8x2xf32>
    %136 = vector.multi_reduction <maximumf>, %135, %cst_34 [2] : vector<8x2x2xf32> to vector<8x2xf32>
    %137 = vector.shape_cast %136 : vector<8x2xf32> to vector<8x2x1xf32>
    %138 = vector.broadcast %137 : vector<8x2x1xf32> to vector<8x2x2xf32>
    %139 = arith.subf %135, %138 : vector<8x2x2xf32>
    %140 = math.exp %139 : vector<8x2x2xf32>
    %cst_35 = arith.constant dense<0.000000e+00> : vector<8x2xf32>
    %141 = vector.multi_reduction <add>, %140, %cst_35 [2] : vector<8x2x2xf32> to vector<8x2xf32>
    %142 = vector.shape_cast %141 : vector<8x2xf32> to vector<8x2x1xf32>
    %143 = tpu.reciprocal %142 {approx = true} : vector<8x2x1xf32> -> vector<8x2x1xf32>
    %144 = vector.broadcast %143 : vector<8x2x1xf32> to vector<8x2x2xf32>
    %145 = arith.mulf %140, %144 : vector<8x2x2xf32>
    %146 = arith.truncf %145 : vector<8x2x2xf32> to vector<8x2x2xbf16>
    "tpu.trace_start"() <{level = 10 : i32, message = "sij,sjd->sid"}> : () -> ()
    %cst_36 = arith.constant dense<0.000000e+00> : vector<8x2x8xf32>
    %147 = tpu.matmul %146, %134, %cst_36 {dimension_numbers = #tpu.dot_dimension_numbers<[2], [1], [1], [2], [0, 0, 0, 1, 1, 2], [0], [0]>} : vector<8x2x2xbf16>, vector<8x2x8xbf16>, vector<8x2x8xf32> -> vector<8x2x8xf32>
    "tpu.trace_stop"() : () -> ()
    %148 = vector.shape_cast %147 : vector<8x2x8xf32> to vector<16x8xf32>
    %149 = arith.truncf %148 : vector<16x8xf32> to vector<16x8xbf16>
    %150 = vector.extract_strided_slice %35 {offsets = [24, 0], sizes = [8, 32], strides = [1, 1]} : vector<32x32xbf16> to vector<8x32xbf16>
    %cst_37 = arith.constant dense<0.000000e+00> : vector<16x32xf32>
    %151 = tpu.matmul %149, %150, %cst_37 {dimension_numbers = #tpu.dot_dimension_numbers<[1], [0], [0], [1], [0, 0, 1, 1], [], []>} : vector<16x8xbf16>, vector<8x32xbf16>, vector<16x32xf32> -> vector<16x32xf32>
    %152 = arith.addf %123, %151 : vector<16x32xf32>
    %153 = vector.broadcast %7 : vector<1x32xf32> to vector<16x32xf32>
    %154 = arith.addf %152, %153 : vector<16x32xf32>
    %155 = arith.addf %0, %154 : vector<16x32xf32>
    %cst_38 = arith.constant dense<0.000000e+00> : vector<16xf32>
    %156 = vector.multi_reduction <add>, %155, %cst_38 [1] : vector<16x32xf32> to vector<16xf32>
    %157 = vector.shape_cast %156 : vector<16xf32> to vector<16x1xf32>
    %cst_39 = arith.constant 3.200000e+01 : f32
    %158 = vector.broadcast %cst_39 : f32 to vector<16x1xf32>
    %159 = arith.divf %157, %158 : vector<16x1xf32>
    %160 = vector.broadcast %159 : vector<16x1xf32> to vector<16x32xf32>
    %161 = arith.subf %155, %160 : vector<16x32xf32>
    %162 = arith.mulf %161, %161 : vector<16x32xf32>
    %cst_40 = arith.constant dense<0.000000e+00> : vector<16xf32>
    %163 = vector.multi_reduction <add>, %162, %cst_40 [1] : vector<16x32xf32> to vector<16xf32>
    %164 = vector.shape_cast %163 : vector<16xf32> to vector<16x1xf32>
    %cst_41 = arith.constant 3.200000e+01 : f32
    %165 = vector.broadcast %cst_41 : f32 to vector<16x1xf32>
    %166 = arith.divf %164, %165 : vector<16x1xf32>
    %167 = vector.broadcast %159 : vector<16x1xf32> to vector<16x32xf32>
    %168 = arith.subf %155, %167 : vector<16x32xf32>
    %cst_42 = arith.constant 9.99999974E-6 : f32
    %169 = vector.broadcast %cst_42 : f32 to vector<16x1xf32>
    %170 = arith.addf %166, %169 : vector<16x1xf32>
    %171 = math.rsqrt %170 : vector<16x1xf32>
    %172 = vector.broadcast %171 : vector<16x1xf32> to vector<16x32xf32>
    %173 = arith.mulf %168, %172 : vector<16x32xf32>
    %174 = vector.broadcast %8 : vector<1x32xf32> to vector<16x32xf32>
    %175 = arith.mulf %173, %174 : vector<16x32xf32>
    %176 = vector.broadcast %9 : vector<1x32xf32> to vector<16x32xf32>
    %177 = arith.addf %175, %176 : vector<16x32xf32>
    %178 = arith.truncf %177 : vector<16x32xf32> to vector<16x32xbf16>
    %179 = arith.index_cast %c0_i32 : i32 to index
    %c0_43 = arith.constant 0 : index
    %c0_44 = arith.constant 0 : index
    %180 = vector.load %arg5[%179, %c0_43, %c0_44] : memref<2x32x32xbf16, #tpu.memory_space<vmem>>, vector<1x32x32xbf16>
    %181 = vector.shape_cast %180 : vector<1x32x32xbf16> to vector<32x32xbf16>
    %cst_45 = arith.constant dense<0.000000e+00> : vector<16x32xf32>
    %182 = tpu.matmul %178, %181, %cst_45 {dimension_numbers = #tpu.dot_dimension_numbers<[1], [0], [0], [1], [0, 0, 1, 1], [], []>} : vector<16x32xbf16>, vector<32x32xbf16>, vector<16x32xf32> -> vector<16x32xf32>
    %183 = vector.broadcast %10 : vector<1x32xf32> to vector<16x32xf32>
    %184 = arith.addf %182, %183 : vector<16x32xf32>
    %cst_46 = arith.constant 0.000000e+00 : f32
    %185 = vector.broadcast %cst_46 : f32 to vector<16x32xf32>
    %186 = arith.maximumf %184, %185 : vector<16x32xf32>
    %187 = arith.truncf %186 : vector<16x32xf32> to vector<16x32xbf16>
    %188 = arith.index_cast %c0_i32 : i32 to index
    %c0_47 = arith.constant 0 : index
    %c0_48 = arith.constant 0 : index
    %189 = vector.load %arg6[%188, %c0_47, %c0_48] : memref<2x32x32xbf16, #tpu.memory_space<vmem>>, vector<1x32x32xbf16>
    %190 = vector.shape_cast %189 : vector<1x32x32xbf16> to vector<32x32xbf16>
    %cst_49 = arith.constant dense<0.000000e+00> : vector<16x32xf32>
    %191 = tpu.matmul %187, %190, %cst_49 {dimension_numbers = #tpu.dot_dimension_numbers<[1], [0], [0], [1], [0, 0, 1, 1], [], []>} : vector<16x32xbf16>, vector<32x32xbf16>, vector<16x32xf32> -> vector<16x32xf32>
    %192 = vector.broadcast %11 : vector<1x32xf32> to vector<16x32xf32>
    %193 = arith.addf %191, %192 : vector<16x32xf32>
    %194 = arith.addf %177, %193 : vector<16x32xf32>
    %cst_50 = arith.constant dense<0.000000e+00> : vector<16xf32>
    %195 = vector.multi_reduction <add>, %194, %cst_50 [1] : vector<16x32xf32> to vector<16xf32>
    %196 = vector.shape_cast %195 : vector<16xf32> to vector<16x1xf32>
    %cst_51 = arith.constant 3.200000e+01 : f32
    %197 = vector.broadcast %cst_51 : f32 to vector<16x1xf32>
    %198 = arith.divf %196, %197 : vector<16x1xf32>
    %199 = vector.broadcast %198 : vector<16x1xf32> to vector<16x32xf32>
    %200 = arith.subf %194, %199 : vector<16x32xf32>
    %201 = arith.mulf %200, %200 : vector<16x32xf32>
    %cst_52 = arith.constant dense<0.000000e+00> : vector<16xf32>
    %202 = vector.multi_reduction <add>, %201, %cst_52 [1] : vector<16x32xf32> to vector<16xf32>
    %203 = vector.shape_cast %202 : vector<16xf32> to vector<16x1xf32>
    %cst_53 = arith.constant 3.200000e+01 : f32
    %204 = vector.broadcast %cst_53 : f32 to vector<16x1xf32>
    %205 = arith.divf %203, %204 : vector<16x1xf32>
    %206 = vector.broadcast %198 : vector<16x1xf32> to vector<16x32xf32>
    %207 = arith.subf %194, %206 : vector<16x32xf32>
    %cst_54 = arith.constant 9.99999974E-6 : f32
    %208 = vector.broadcast %cst_54 : f32 to vector<16x1xf32>
    %209 = arith.addf %205, %208 : vector<16x1xf32>
    %210 = math.rsqrt %209 : vector<16x1xf32>
    %211 = vector.broadcast %210 : vector<16x1xf32> to vector<16x32xf32>
    %212 = arith.mulf %207, %211 : vector<16x32xf32>
    %213 = vector.broadcast %12 : vector<1x32xf32> to vector<16x32xf32>
    %214 = arith.mulf %212, %213 : vector<16x32xf32>
    %215 = vector.broadcast %13 : vector<1x32xf32> to vector<16x32xf32>
    %216 = arith.addf %214, %215 : vector<16x32xf32>
    %c1_i32 = arith.constant 1 : i32
    %217 = arith.index_cast %c1_i32 : i32 to index
    %c0_55 = arith.constant 0 : index
    %c0_56 = arith.constant 0 : index
    %218 = vector.load %arg7[%217, %c0_55, %c0_56] : memref<2x10x32xf32, #tpu.memory_space<vmem>>, vector<1x10x32xf32>
    %219 = vector.shape_cast %218 : vector<1x10x32xf32> to vector<10x32xf32>
    %220 = vector.extract_strided_slice %219 {offsets = [0, 0], sizes = [1, 32], strides = [1, 1]} : vector<10x32xf32> to vector<1x32xf32>
    %221 = vector.extract_strided_slice %219 {offsets = [1, 0], sizes = [1, 32], strides = [1, 1]} : vector<10x32xf32> to vector<1x32xf32>
    %222 = vector.extract_strided_slice %219 {offsets = [2, 0], sizes = [1, 32], strides = [1, 1]} : vector<10x32xf32> to vector<1x32xf32>
    %223 = vector.extract_strided_slice %219 {offsets = [3, 0], sizes = [1, 32], strides = [1, 1]} : vector<10x32xf32> to vector<1x32xf32>
    %224 = vector.extract_strided_slice %219 {offsets = [4, 0], sizes = [1, 32], strides = [1, 1]} : vector<10x32xf32> to vector<1x32xf32>
    %225 = vector.extract_strided_slice %219 {offsets = [5, 0], sizes = [1, 32], strides = [1, 1]} : vector<10x32xf32> to vector<1x32xf32>
    %226 = vector.extract_strided_slice %219 {offsets = [6, 0], sizes = [1, 32], strides = [1, 1]} : vector<10x32xf32> to vector<1x32xf32>
    %227 = vector.extract_strided_slice %219 {offsets = [7, 0], sizes = [1, 32], strides = [1, 1]} : vector<10x32xf32> to vector<1x32xf32>
    %228 = vector.extract_strided_slice %219 {offsets = [8, 0], sizes = [1, 32], strides = [1, 1]} : vector<10x32xf32> to vector<1x32xf32>
    %229 = vector.extract_strided_slice %219 {offsets = [9, 0], sizes = [1, 32], strides = [1, 1]} : vector<10x32xf32> to vector<1x32xf32>
    %230 = arith.truncf %216 : vector<16x32xf32> to vector<16x32xbf16>
    %231 = arith.index_cast %c1_i32 : i32 to index
    %c0_57 = arith.constant 0 : index
    %c0_58 = arith.constant 0 : index
    %232 = vector.load %arg1[%231, %c0_57, %c0_58] : memref<2x32x32xbf16, #tpu.memory_space<vmem>>, vector<1x32x32xbf16>
    %233 = vector.shape_cast %232 : vector<1x32x32xbf16> to vector<32x32xbf16>
    %cst_59 = arith.constant dense<0.000000e+00> : vector<16x32xf32>
    %234 = tpu.matmul %230, %233, %cst_59 {dimension_numbers = #tpu.dot_dimension_numbers<[1], [0], [0], [1], [0, 0, 1, 1], [], []>} : vector<16x32xbf16>, vector<32x32xbf16>, vector<16x32xf32> -> vector<16x32xf32>
    %235 = vector.broadcast %220 : vector<1x32xf32> to vector<16x32xf32>
    %236 = arith.addf %234, %235 : vector<16x32xf32>
    %237 = arith.index_cast %c1_i32 : i32 to index
    %c0_60 = arith.constant 0 : index
    %c0_61 = arith.constant 0 : index
    %238 = vector.load %arg2[%237, %c0_60, %c0_61] : memref<2x32x32xbf16, #tpu.memory_space<vmem>>, vector<1x32x32xbf16>
    %239 = vector.shape_cast %238 : vector<1x32x32xbf16> to vector<32x32xbf16>
    %cst_62 = arith.constant dense<0.000000e+00> : vector<16x32xf32>
    %240 = tpu.matmul %230, %239, %cst_62 {dimension_numbers = #tpu.dot_dimension_numbers<[1], [0], [0], [1], [0, 0, 1, 1], [], []>} : vector<16x32xbf16>, vector<32x32xbf16>, vector<16x32xf32> -> vector<16x32xf32>
    %241 = vector.broadcast %221 : vector<1x32xf32> to vector<16x32xf32>
    %242 = arith.addf %240, %241 : vector<16x32xf32>
    %243 = arith.index_cast %c1_i32 : i32 to index
    %c0_63 = arith.constant 0 : index
    %c0_64 = arith.constant 0 : index
    %244 = vector.load %arg3[%243, %c0_63, %c0_64] : memref<2x32x32xbf16, #tpu.memory_space<vmem>>, vector<1x32x32xbf16>
    %245 = vector.shape_cast %244 : vector<1x32x32xbf16> to vector<32x32xbf16>
    %cst_65 = arith.constant dense<0.000000e+00> : vector<16x32xf32>
    %246 = tpu.matmul %230, %245, %cst_65 {dimension_numbers = #tpu.dot_dimension_numbers<[1], [0], [0], [1], [0, 0, 1, 1], [], []>} : vector<16x32xbf16>, vector<32x32xbf16>, vector<16x32xf32> -> vector<16x32xf32>
    %247 = vector.broadcast %222 : vector<1x32xf32> to vector<16x32xf32>
    %248 = arith.addf %246, %247 : vector<16x32xf32>
    %249 = arith.index_cast %c1_i32 : i32 to index
    %c0_66 = arith.constant 0 : index
    %c0_67 = arith.constant 0 : index
    %250 = vector.load %arg4[%249, %c0_66, %c0_67] : memref<2x32x32xbf16, #tpu.memory_space<vmem>>, vector<1x32x32xbf16>
    %251 = vector.shape_cast %250 : vector<1x32x32xbf16> to vector<32x32xbf16>
    %cst_68 = arith.constant 0.000000e+00 : f32
    %252 = vector.broadcast %cst_68 : f32 to vector<16x32xf32>
    %253 = vector.extract_strided_slice %236 {offsets = [0, 0], sizes = [16, 8], strides = [1, 1]} : vector<16x32xf32> to vector<16x8xf32>
    %cst_69 = arith.constant 0.353553385 : f32
    %254 = vector.broadcast %cst_69 : f32 to vector<16x8xf32>
    %255 = arith.mulf %253, %254 : vector<16x8xf32>
    %256 = vector.shape_cast %255 : vector<16x8xf32> to vector<8x2x8xf32>
    %257 = arith.truncf %256 : vector<8x2x8xf32> to vector<8x2x8xbf16>
    %258 = vector.extract_strided_slice %242 {offsets = [0, 0], sizes = [16, 8], strides = [1, 1]} : vector<16x32xf32> to vector<16x8xf32>
    %259 = vector.shape_cast %258 : vector<16x8xf32> to vector<8x2x8xf32>
    %260 = arith.truncf %259 : vector<8x2x8xf32> to vector<8x2x8xbf16>
    %261 = vector.extract_strided_slice %248 {offsets = [0, 0], sizes = [16, 8], strides = [1, 1]} : vector<16x32xf32> to vector<16x8xf32>
    %262 = vector.shape_cast %261 : vector<16x8xf32> to vector<8x2x8xf32>
    %263 = arith.truncf %262 : vector<8x2x8xf32> to vector<8x2x8xbf16>
    "tpu.trace_start"() <{level = 10 : i32, message = "sid,sjd->sij"}> : () -> ()
    %cst_70 = arith.constant dense<0.000000e+00> : vector<8x2x2xf32>
    %264 = tpu.matmul %257, %260, %cst_70 {dimension_numbers = #tpu.dot_dimension_numbers<[2], [2], [1], [1], [0, 0, 0, 1, 1, 1], [0], [0]>} : vector<8x2x8xbf16>, vector<8x2x8xbf16>, vector<8x2x2xf32> -> vector<8x2x2xf32>
    "tpu.trace_stop"() : () -> ()
    %cst_71 = arith.constant dense<0xFF800000> : vector<8x2xf32>
    %265 = vector.multi_reduction <maximumf>, %264, %cst_71 [2] : vector<8x2x2xf32> to vector<8x2xf32>
    %266 = vector.shape_cast %265 : vector<8x2xf32> to vector<8x2x1xf32>
    %267 = vector.broadcast %266 : vector<8x2x1xf32> to vector<8x2x2xf32>
    %268 = arith.subf %264, %267 : vector<8x2x2xf32>
    %269 = math.exp %268 : vector<8x2x2xf32>
    %cst_72 = arith.constant dense<0.000000e+00> : vector<8x2xf32>
    %270 = vector.multi_reduction <add>, %269, %cst_72 [2] : vector<8x2x2xf32> to vector<8x2xf32>
    %271 = vector.shape_cast %270 : vector<8x2xf32> to vector<8x2x1xf32>
    %272 = tpu.reciprocal %271 {approx = true} : vector<8x2x1xf32> -> vector<8x2x1xf32>
    %273 = vector.broadcast %272 : vector<8x2x1xf32> to vector<8x2x2xf32>
    %274 = arith.mulf %269, %273 : vector<8x2x2xf32>
    %275 = arith.truncf %274 : vector<8x2x2xf32> to vector<8x2x2xbf16>
    "tpu.trace_start"() <{level = 10 : i32, message = "sij,sjd->sid"}> : () -> ()
    %cst_73 = arith.constant dense<0.000000e+00> : vector<8x2x8xf32>
    %276 = tpu.matmul %275, %263, %cst_73 {dimension_numbers = #tpu.dot_dimension_numbers<[2], [1], [1], [2], [0, 0, 0, 1, 1, 2], [0], [0]>} : vector<8x2x2xbf16>, vector<8x2x8xbf16>, vector<8x2x8xf32> -> vector<8x2x8xf32>
    "tpu.trace_stop"() : () -> ()
    %277 = vector.shape_cast %276 : vector<8x2x8xf32> to vector<16x8xf32>
    %278 = arith.truncf %277 : vector<16x8xf32> to vector<16x8xbf16>
    %279 = vector.extract_strided_slice %251 {offsets = [0, 0], sizes = [8, 32], strides = [1, 1]} : vector<32x32xbf16> to vector<8x32xbf16>
    %cst_74 = arith.constant dense<0.000000e+00> : vector<16x32xf32>
    %280 = tpu.matmul %278, %279, %cst_74 {dimension_numbers = #tpu.dot_dimension_numbers<[1], [0], [0], [1], [0, 0, 1, 1], [], []>} : vector<16x8xbf16>, vector<8x32xbf16>, vector<16x32xf32> -> vector<16x32xf32>
    %281 = arith.addf %252, %280 : vector<16x32xf32>
    %282 = vector.extract_strided_slice %236 {offsets = [0, 8], sizes = [16, 8], strides = [1, 1]} : vector<16x32xf32> to vector<16x8xf32>
    %cst_75 = arith.constant 0.353553385 : f32
    %283 = vector.broadcast %cst_75 : f32 to vector<16x8xf32>
    %284 = arith.mulf %282, %283 : vector<16x8xf32>
    %285 = vector.shape_cast %284 : vector<16x8xf32> to vector<8x2x8xf32>
    %286 = arith.truncf %285 : vector<8x2x8xf32> to vector<8x2x8xbf16>
    %287 = vector.extract_strided_slice %242 {offsets = [0, 8], sizes = [16, 8], strides = [1, 1]} : vector<16x32xf32> to vector<16x8xf32>
    %288 = vector.shape_cast %287 : vector<16x8xf32> to vector<8x2x8xf32>
    %289 = arith.truncf %288 : vector<8x2x8xf32> to vector<8x2x8xbf16>
    %290 = vector.extract_strided_slice %248 {offsets = [0, 8], sizes = [16, 8], strides = [1, 1]} : vector<16x32xf32> to vector<16x8xf32>
    %291 = vector.shape_cast %290 : vector<16x8xf32> to vector<8x2x8xf32>
    %292 = arith.truncf %291 : vector<8x2x8xf32> to vector<8x2x8xbf16>
    "tpu.trace_start"() <{level = 10 : i32, message = "sid,sjd->sij"}> : () -> ()
    %cst_76 = arith.constant dense<0.000000e+00> : vector<8x2x2xf32>
    %293 = tpu.matmul %286, %289, %cst_76 {dimension_numbers = #tpu.dot_dimension_numbers<[2], [2], [1], [1], [0, 0, 0, 1, 1, 1], [0], [0]>} : vector<8x2x8xbf16>, vector<8x2x8xbf16>, vector<8x2x2xf32> -> vector<8x2x2xf32>
    "tpu.trace_stop"() : () -> ()
    %cst_77 = arith.constant dense<0xFF800000> : vector<8x2xf32>
    %294 = vector.multi_reduction <maximumf>, %293, %cst_77 [2] : vector<8x2x2xf32> to vector<8x2xf32>
    %295 = vector.shape_cast %294 : vector<8x2xf32> to vector<8x2x1xf32>
    %296 = vector.broadcast %295 : vector<8x2x1xf32> to vector<8x2x2xf32>
    %297 = arith.subf %293, %296 : vector<8x2x2xf32>
    %298 = math.exp %297 : vector<8x2x2xf32>
    %cst_78 = arith.constant dense<0.000000e+00> : vector<8x2xf32>
    %299 = vector.multi_reduction <add>, %298, %cst_78 [2] : vector<8x2x2xf32> to vector<8x2xf32>
    %300 = vector.shape_cast %299 : vector<8x2xf32> to vector<8x2x1xf32>
    %301 = tpu.reciprocal %300 {approx = true} : vector<8x2x1xf32> -> vector<8x2x1xf32>
    %302 = vector.broadcast %301 : vector<8x2x1xf32> to vector<8x2x2xf32>
    %303 = arith.mulf %298, %302 : vector<8x2x2xf32>
    %304 = arith.truncf %303 : vector<8x2x2xf32> to vector<8x2x2xbf16>
    "tpu.trace_start"() <{level = 10 : i32, message = "sij,sjd->sid"}> : () -> ()
    %cst_79 = arith.constant dense<0.000000e+00> : vector<8x2x8xf32>
    %305 = tpu.matmul %304, %292, %cst_79 {dimension_numbers = #tpu.dot_dimension_numbers<[2], [1], [1], [2], [0, 0, 0, 1, 1, 2], [0], [0]>} : vector<8x2x2xbf16>, vector<8x2x8xbf16>, vector<8x2x8xf32> -> vector<8x2x8xf32>
    "tpu.trace_stop"() : () -> ()
    %306 = vector.shape_cast %305 : vector<8x2x8xf32> to vector<16x8xf32>
    %307 = arith.truncf %306 : vector<16x8xf32> to vector<16x8xbf16>
    %308 = vector.extract_strided_slice %251 {offsets = [8, 0], sizes = [8, 32], strides = [1, 1]} : vector<32x32xbf16> to vector<8x32xbf16>
    %cst_80 = arith.constant dense<0.000000e+00> : vector<16x32xf32>
    %309 = tpu.matmul %307, %308, %cst_80 {dimension_numbers = #tpu.dot_dimension_numbers<[1], [0], [0], [1], [0, 0, 1, 1], [], []>} : vector<16x8xbf16>, vector<8x32xbf16>, vector<16x32xf32> -> vector<16x32xf32>
    %310 = arith.addf %281, %309 : vector<16x32xf32>
    %311 = vector.extract_strided_slice %236 {offsets = [0, 16], sizes = [16, 8], strides = [1, 1]} : vector<16x32xf32> to vector<16x8xf32>
    %cst_81 = arith.constant 0.353553385 : f32
    %312 = vector.broadcast %cst_81 : f32 to vector<16x8xf32>
    %313 = arith.mulf %311, %312 : vector<16x8xf32>
    %314 = vector.shape_cast %313 : vector<16x8xf32> to vector<8x2x8xf32>
    %315 = arith.truncf %314 : vector<8x2x8xf32> to vector<8x2x8xbf16>
    %316 = vector.extract_strided_slice %242 {offsets = [0, 16], sizes = [16, 8], strides = [1, 1]} : vector<16x32xf32> to vector<16x8xf32>
    %317 = vector.shape_cast %316 : vector<16x8xf32> to vector<8x2x8xf32>
    %318 = arith.truncf %317 : vector<8x2x8xf32> to vector<8x2x8xbf16>
    %319 = vector.extract_strided_slice %248 {offsets = [0, 16], sizes = [16, 8], strides = [1, 1]} : vector<16x32xf32> to vector<16x8xf32>
    %320 = vector.shape_cast %319 : vector<16x8xf32> to vector<8x2x8xf32>
    %321 = arith.truncf %320 : vector<8x2x8xf32> to vector<8x2x8xbf16>
    "tpu.trace_start"() <{level = 10 : i32, message = "sid,sjd->sij"}> : () -> ()
    %cst_82 = arith.constant dense<0.000000e+00> : vector<8x2x2xf32>
    %322 = tpu.matmul %315, %318, %cst_82 {dimension_numbers = #tpu.dot_dimension_numbers<[2], [2], [1], [1], [0, 0, 0, 1, 1, 1], [0], [0]>} : vector<8x2x8xbf16>, vector<8x2x8xbf16>, vector<8x2x2xf32> -> vector<8x2x2xf32>
    "tpu.trace_stop"() : () -> ()
    %cst_83 = arith.constant dense<0xFF800000> : vector<8x2xf32>
    %323 = vector.multi_reduction <maximumf>, %322, %cst_83 [2] : vector<8x2x2xf32> to vector<8x2xf32>
    %324 = vector.shape_cast %323 : vector<8x2xf32> to vector<8x2x1xf32>
    %325 = vector.broadcast %324 : vector<8x2x1xf32> to vector<8x2x2xf32>
    %326 = arith.subf %322, %325 : vector<8x2x2xf32>
    %327 = math.exp %326 : vector<8x2x2xf32>
    %cst_84 = arith.constant dense<0.000000e+00> : vector<8x2xf32>
    %328 = vector.multi_reduction <add>, %327, %cst_84 [2] : vector<8x2x2xf32> to vector<8x2xf32>
    %329 = vector.shape_cast %328 : vector<8x2xf32> to vector<8x2x1xf32>
    %330 = tpu.reciprocal %329 {approx = true} : vector<8x2x1xf32> -> vector<8x2x1xf32>
    %331 = vector.broadcast %330 : vector<8x2x1xf32> to vector<8x2x2xf32>
    %332 = arith.mulf %327, %331 : vector<8x2x2xf32>
    %333 = arith.truncf %332 : vector<8x2x2xf32> to vector<8x2x2xbf16>
    "tpu.trace_start"() <{level = 10 : i32, message = "sij,sjd->sid"}> : () -> ()
    %cst_85 = arith.constant dense<0.000000e+00> : vector<8x2x8xf32>
    %334 = tpu.matmul %333, %321, %cst_85 {dimension_numbers = #tpu.dot_dimension_numbers<[2], [1], [1], [2], [0, 0, 0, 1, 1, 2], [0], [0]>} : vector<8x2x2xbf16>, vector<8x2x8xbf16>, vector<8x2x8xf32> -> vector<8x2x8xf32>
    "tpu.trace_stop"() : () -> ()
    %335 = vector.shape_cast %334 : vector<8x2x8xf32> to vector<16x8xf32>
    %336 = arith.truncf %335 : vector<16x8xf32> to vector<16x8xbf16>
    %337 = vector.extract_strided_slice %251 {offsets = [16, 0], sizes = [8, 32], strides = [1, 1]} : vector<32x32xbf16> to vector<8x32xbf16>
    %cst_86 = arith.constant dense<0.000000e+00> : vector<16x32xf32>
    %338 = tpu.matmul %336, %337, %cst_86 {dimension_numbers = #tpu.dot_dimension_numbers<[1], [0], [0], [1], [0, 0, 1, 1], [], []>} : vector<16x8xbf16>, vector<8x32xbf16>, vector<16x32xf32> -> vector<16x32xf32>
    %339 = arith.addf %310, %338 : vector<16x32xf32>
    %340 = vector.extract_strided_slice %236 {offsets = [0, 24], sizes = [16, 8], strides = [1, 1]} : vector<16x32xf32> to vector<16x8xf32>
    %cst_87 = arith.constant 0.353553385 : f32
    %341 = vector.broadcast %cst_87 : f32 to vector<16x8xf32>
    %342 = arith.mulf %340, %341 : vector<16x8xf32>
    %343 = vector.shape_cast %342 : vector<16x8xf32> to vector<8x2x8xf32>
    %344 = arith.truncf %343 : vector<8x2x8xf32> to vector<8x2x8xbf16>
    %345 = vector.extract_strided_slice %242 {offsets = [0, 24], sizes = [16, 8], strides = [1, 1]} : vector<16x32xf32> to vector<16x8xf32>
    %346 = vector.shape_cast %345 : vector<16x8xf32> to vector<8x2x8xf32>
    %347 = arith.truncf %346 : vector<8x2x8xf32> to vector<8x2x8xbf16>
    %348 = vector.extract_strided_slice %248 {offsets = [0, 24], sizes = [16, 8], strides = [1, 1]} : vector<16x32xf32> to vector<16x8xf32>
    %349 = vector.shape_cast %348 : vector<16x8xf32> to vector<8x2x8xf32>
    %350 = arith.truncf %349 : vector<8x2x8xf32> to vector<8x2x8xbf16>
    "tpu.trace_start"() <{level = 10 : i32, message = "sid,sjd->sij"}> : () -> ()
    %cst_88 = arith.constant dense<0.000000e+00> : vector<8x2x2xf32>
    %351 = tpu.matmul %344, %347, %cst_88 {dimension_numbers = #tpu.dot_dimension_numbers<[2], [2], [1], [1], [0, 0, 0, 1, 1, 1], [0], [0]>} : vector<8x2x8xbf16>, vector<8x2x8xbf16>, vector<8x2x2xf32> -> vector<8x2x2xf32>
    "tpu.trace_stop"() : () -> ()
    %cst_89 = arith.constant dense<0xFF800000> : vector<8x2xf32>
    %352 = vector.multi_reduction <maximumf>, %351, %cst_89 [2] : vector<8x2x2xf32> to vector<8x2xf32>
    %353 = vector.shape_cast %352 : vector<8x2xf32> to vector<8x2x1xf32>
    %354 = vector.broadcast %353 : vector<8x2x1xf32> to vector<8x2x2xf32>
    %355 = arith.subf %351, %354 : vector<8x2x2xf32>
    %356 = math.exp %355 : vector<8x2x2xf32>
    %cst_90 = arith.constant dense<0.000000e+00> : vector<8x2xf32>
    %357 = vector.multi_reduction <add>, %356, %cst_90 [2] : vector<8x2x2xf32> to vector<8x2xf32>
    %358 = vector.shape_cast %357 : vector<8x2xf32> to vector<8x2x1xf32>
    %359 = tpu.reciprocal %358 {approx = true} : vector<8x2x1xf32> -> vector<8x2x1xf32>
    %360 = vector.broadcast %359 : vector<8x2x1xf32> to vector<8x2x2xf32>
    %361 = arith.mulf %356, %360 : vector<8x2x2xf32>
    %362 = arith.truncf %361 : vector<8x2x2xf32> to vector<8x2x2xbf16>
    "tpu.trace_start"() <{level = 10 : i32, message = "sij,sjd->sid"}> : () -> ()
    %cst_91 = arith.constant dense<0.000000e+00> : vector<8x2x8xf32>
    %363 = tpu.matmul %362, %350, %cst_91 {dimension_numbers = #tpu.dot_dimension_numbers<[2], [1], [1], [2], [0, 0, 0, 1, 1, 2], [0], [0]>} : vector<8x2x2xbf16>, vector<8x2x8xbf16>, vector<8x2x8xf32> -> vector<8x2x8xf32>
    "tpu.trace_stop"() : () -> ()
    %364 = vector.shape_cast %363 : vector<8x2x8xf32> to vector<16x8xf32>
    %365 = arith.truncf %364 : vector<16x8xf32> to vector<16x8xbf16>
    %366 = vector.extract_strided_slice %251 {offsets = [24, 0], sizes = [8, 32], strides = [1, 1]} : vector<32x32xbf16> to vector<8x32xbf16>
    %cst_92 = arith.constant dense<0.000000e+00> : vector<16x32xf32>
    %367 = tpu.matmul %365, %366, %cst_92 {dimension_numbers = #tpu.dot_dimension_numbers<[1], [0], [0], [1], [0, 0, 1, 1], [], []>} : vector<16x8xbf16>, vector<8x32xbf16>, vector<16x32xf32> -> vector<16x32xf32>
    %368 = arith.addf %339, %367 : vector<16x32xf32>
    %369 = vector.broadcast %223 : vector<1x32xf32> to vector<16x32xf32>
    %370 = arith.addf %368, %369 : vector<16x32xf32>
    %371 = arith.addf %216, %370 : vector<16x32xf32>
    %cst_93 = arith.constant dense<0.000000e+00> : vector<16xf32>
    %372 = vector.multi_reduction <add>, %371, %cst_93 [1] : vector<16x32xf32> to vector<16xf32>
    %373 = vector.shape_cast %372 : vector<16xf32> to vector<16x1xf32>
    %cst_94 = arith.constant 3.200000e+01 : f32
    %374 = vector.broadcast %cst_94 : f32 to vector<16x1xf32>
    %375 = arith.divf %373, %374 : vector<16x1xf32>
    %376 = vector.broadcast %375 : vector<16x1xf32> to vector<16x32xf32>
    %377 = arith.subf %371, %376 : vector<16x32xf32>
    %378 = arith.mulf %377, %377 : vector<16x32xf32>
    %cst_95 = arith.constant dense<0.000000e+00> : vector<16xf32>
    %379 = vector.multi_reduction <add>, %378, %cst_95 [1] : vector<16x32xf32> to vector<16xf32>
    %380 = vector.shape_cast %379 : vector<16xf32> to vector<16x1xf32>
    %cst_96 = arith.constant 3.200000e+01 : f32
    %381 = vector.broadcast %cst_96 : f32 to vector<16x1xf32>
    %382 = arith.divf %380, %381 : vector<16x1xf32>
    %383 = vector.broadcast %375 : vector<16x1xf32> to vector<16x32xf32>
    %384 = arith.subf %371, %383 : vector<16x32xf32>
    %cst_97 = arith.constant 9.99999974E-6 : f32
    %385 = vector.broadcast %cst_97 : f32 to vector<16x1xf32>
    %386 = arith.addf %382, %385 : vector<16x1xf32>
    %387 = math.rsqrt %386 : vector<16x1xf32>
    %388 = vector.broadcast %387 : vector<16x1xf32> to vector<16x32xf32>
    %389 = arith.mulf %384, %388 : vector<16x32xf32>
    %390 = vector.broadcast %224 : vector<1x32xf32> to vector<16x32xf32>
    %391 = arith.mulf %389, %390 : vector<16x32xf32>
    %392 = vector.broadcast %225 : vector<1x32xf32> to vector<16x32xf32>
    %393 = arith.addf %391, %392 : vector<16x32xf32>
    %394 = arith.truncf %393 : vector<16x32xf32> to vector<16x32xbf16>
    %395 = arith.index_cast %c1_i32 : i32 to index
    %c0_98 = arith.constant 0 : index
    %c0_99 = arith.constant 0 : index
    %396 = vector.load %arg5[%395, %c0_98, %c0_99] : memref<2x32x32xbf16, #tpu.memory_space<vmem>>, vector<1x32x32xbf16>
    %397 = vector.shape_cast %396 : vector<1x32x32xbf16> to vector<32x32xbf16>
    %cst_100 = arith.constant dense<0.000000e+00> : vector<16x32xf32>
    %398 = tpu.matmul %394, %397, %cst_100 {dimension_numbers = #tpu.dot_dimension_numbers<[1], [0], [0], [1], [0, 0, 1, 1], [], []>} : vector<16x32xbf16>, vector<32x32xbf16>, vector<16x32xf32> -> vector<16x32xf32>
    %399 = vector.broadcast %226 : vector<1x32xf32> to vector<16x32xf32>
    %400 = arith.addf %398, %399 : vector<16x32xf32>
    %cst_101 = arith.constant 0.000000e+00 : f32
    %401 = vector.broadcast %cst_101 : f32 to vector<16x32xf32>
    %402 = arith.maximumf %400, %401 : vector<16x32xf32>
    %403 = arith.truncf %402 : vector<16x32xf32> to vector<16x32xbf16>
    %404 = arith.index_cast %c1_i32 : i32 to index
    %c0_102 = arith.constant 0 : index
    %c0_103 = arith.constant 0 : index
    %405 = vector.load %arg6[%404, %c0_102, %c0_103] : memref<2x32x32xbf16, #tpu.memory_space<vmem>>, vector<1x32x32xbf16>
    %406 = vector.shape_cast %405 : vector<1x32x32xbf16> to vector<32x32xbf16>
    %cst_104 = arith.constant dense<0.000000e+00> : vector<16x32xf32>
    %407 = tpu.matmul %403, %406, %cst_104 {dimension_numbers = #tpu.dot_dimension_numbers<[1], [0], [0], [1], [0, 0, 1, 1], [], []>} : vector<16x32xbf16>, vector<32x32xbf16>, vector<16x32xf32> -> vector<16x32xf32>
    %408 = vector.broadcast %227 : vector<1x32xf32> to vector<16x32xf32>
    %409 = arith.addf %407, %408 : vector<16x32xf32>
    %410 = arith.addf %393, %409 : vector<16x32xf32>
    %cst_105 = arith.constant dense<0.000000e+00> : vector<16xf32>
    %411 = vector.multi_reduction <add>, %410, %cst_105 [1] : vector<16x32xf32> to vector<16xf32>
    %412 = vector.shape_cast %411 : vector<16xf32> to vector<16x1xf32>
    %cst_106 = arith.constant 3.200000e+01 : f32
    %413 = vector.broadcast %cst_106 : f32 to vector<16x1xf32>
    %414 = arith.divf %412, %413 : vector<16x1xf32>
    %415 = vector.broadcast %414 : vector<16x1xf32> to vector<16x32xf32>
    %416 = arith.subf %410, %415 : vector<16x32xf32>
    %417 = arith.mulf %416, %416 : vector<16x32xf32>
    %cst_107 = arith.constant dense<0.000000e+00> : vector<16xf32>
    %418 = vector.multi_reduction <add>, %417, %cst_107 [1] : vector<16x32xf32> to vector<16xf32>
    %419 = vector.shape_cast %418 : vector<16xf32> to vector<16x1xf32>
    %cst_108 = arith.constant 3.200000e+01 : f32
    %420 = vector.broadcast %cst_108 : f32 to vector<16x1xf32>
    %421 = arith.divf %419, %420 : vector<16x1xf32>
    %422 = vector.broadcast %414 : vector<16x1xf32> to vector<16x32xf32>
    %423 = arith.subf %410, %422 : vector<16x32xf32>
    %cst_109 = arith.constant 9.99999974E-6 : f32
    %424 = vector.broadcast %cst_109 : f32 to vector<16x1xf32>
    %425 = arith.addf %421, %424 : vector<16x1xf32>
    %426 = math.rsqrt %425 : vector<16x1xf32>
    %427 = vector.broadcast %426 : vector<16x1xf32> to vector<16x32xf32>
    %428 = arith.mulf %423, %427 : vector<16x32xf32>
    %429 = vector.broadcast %228 : vector<1x32xf32> to vector<16x32xf32>
    %430 = arith.mulf %428, %429 : vector<16x32xf32>
    %431 = vector.broadcast %229 : vector<1x32xf32> to vector<16x32xf32>
    %432 = arith.addf %430, %431 : vector<16x32xf32>
    %c2_i32 = arith.constant 2 : i32
    %433 = vector.shape_cast %432 : vector<16x32xf32> to vector<8x2x32xf32>
    %cst_110 = arith.constant dense<0.000000e+00> : vector<2x32xf32>
    %434 = vector.multi_reduction <add>, %433, %cst_110 [0] : vector<8x2x32xf32> to vector<2x32xf32>
    %cst_111 = arith.constant 8.000000e+00 : f32
    %435 = vector.broadcast %cst_111 : f32 to vector<2x32xf32>
    %436 = arith.divf %434, %435 : vector<2x32xf32>
    %c0_112 = arith.constant 0 : index
    %c0_113 = arith.constant 0 : index
    %437 = vector.load %arg8[%c0_112, %c0_113] : memref<32x4xf32, #tpu.memory_space<vmem>>, vector<32x4xf32>
    %cst_114 = arith.constant dense<0.000000e+00> : vector<2x4xf32>
    %438 = tpu.matmul %436, %437, %cst_114 {dimension_numbers = #tpu.dot_dimension_numbers<[1], [0], [0], [1], [0, 0, 1, 1], [], []>} : vector<2x32xf32>, vector<32x4xf32>, vector<2x4xf32> -> vector<2x4xf32>
    %c0_115 = arith.constant 0 : index
    %c0_116 = arith.constant 0 : index
    %439 = vector.load %arg9[%c0_115, %c0_116] : memref<1x4xf32, #tpu.memory_space<vmem>>, vector<1x4xf32>
    %440 = vector.broadcast %439 : vector<1x4xf32> to vector<2x4xf32>
    %441 = arith.addf %438, %440 : vector<2x4xf32>
    %c0_117 = arith.constant 0 : index
    %c0_118 = arith.constant 0 : index
    %442 = vector.load %arg10[%c0_117, %c0_118] : memref<2x4xf32, #tpu.memory_space<vmem>>, vector<2x4xf32>
    tpu.vector_store %arg10[%c0_117, %c0_118], %441 {strides = array<i32>} : memref<2x4xf32, #tpu.memory_space<vmem>>, vector<2x4xf32>,
    return
  }
}

</mosaic_0001>

<llo_original>
// kernel: tpu_custom_call.1
$region0: #{tpu_custom_call.1}
  #allocation0 [shape = 'u32[]', space=smem, size = 0x4, offset = 0x4, fixed_abs, tag = 'smem constant byte address 0x4 - core index']
  #allocation1 [shape = 'u32[72,128]{1,0:T(1,128)}', space=vmem, size = 0x9000, scoped, tag = 'internal scratch']
  %s0 = inlined_call_operand.vmem [shape: f32[16,32], index: 0, kind: input, shape index: {}]
  %s1 = inlined_call_operand.vmem [shape: bf16[2,32,32], index: 1, kind: input, shape index: {}]
  %s2 = inlined_call_operand.vmem [shape: bf16[2,32,32], index: 2, kind: input, shape index: {}]
  %s3 = inlined_call_operand.hbm [shape: bf16[2,32,32], index: 3, kind: input, shape index: {}]
  %s4 = inlined_call_operand.hbm [shape: bf16[2,32,32], index: 4, kind: input, shape index: {}]
  %s5 = inlined_call_operand.hbm [shape: bf16[2,32,32], index: 5, kind: input, shape index: {}]
  %s6 = inlined_call_operand.hbm [shape: bf16[2,32,32], index: 6, kind: input, shape index: {}]
  %s7 = inlined_call_operand.vmem [shape: f32[2,10,32], index: 7, kind: input, shape index: {}]
  %s8 = inlined_call_operand.vmem [shape: f32[32,4], index: 8, kind: input, shape index: {}]
  %s9 = inlined_call_operand.vmem [shape: f32[1,4], index: 9, kind: input, shape index: {}]
  %s10 = inlined_call_operand.hbm [shape: f32[2,4], index: 10, kind: output, shape index: {}]
  %s11 = sld [smem:[#allocation0]]
  $region66: #{tpu_custom_call.1} parent=0
    _
  %s13 = ssub.s32 1, %s11
  %s14 = scalar_select 0, %s13, %s11
  $region1: #{tpu_custom_call.1} parent=0
    #allocation2 [shape = 'u8[16384]{0}', space=vmem, size = 0x4000, scoped, tag = 'input window, operand 3, single buffered']
    #allocation3 [shape = 's32[1]{0}', space=sflag, size = 0x4, scoped, tag = 'scoped memory for tpu_custom_call.1']
    #allocation4 [shape = 's32[1]{0}', space=sflag, size = 0x4, scoped, tag = 'scoped memory for tpu_custom_call.1']
    #allocation5 [shape = 'u8[16384]{0}', space=vmem, size = 0x4000, scoped, tag = 'input window, operand 4, single buffered']
    #allocation6 [shape = 's32[1]{0}', space=sflag, size = 0x4, scoped, tag = 'scoped memory for tpu_custom_call.1']
    #allocation7 [shape = 'u8[16384]{0}', space=vmem, size = 0x4000, scoped, tag = 'input window, operand 5, single buffered']
    #allocation8 [shape = 'u8[16384]{0}', space=vmem, size = 0x4000, scoped, tag = 'input window, operand 6, single buffered']
    #allocation9 [shape = 's32[1]{0}', space=sflag, size = 0x4, scoped, tag = 'scoped memory for tpu_custom_call.1']
    #allocation10 [shape = 'u8[1024]{0}', space=vmem, size = 0x400, scoped, tag = 'output window, operand 0, single buffered']
    %15 = vsyncpa [#allocation3], 0
    %16 = vsyncpa [#allocation6], 0
    %17 = vsyncpa [#allocation9], 0
    %18 = vsyncpa [#allocation4], 0
    // Predicated region
    $region2: #{tpu_custom_call.1} parent=1 // pred_check
      _
    $region3: #{tpu_custom_call.1} parent=1 // pred_check_branch
      %20 = sbr.rel (0) target = $region5
    $region4: #{tpu_custom_call.1} parent=1 // pred_region
      _
    $region5: #{tpu_custom_call.1} parent=1 // pred_fallthru
      _
    // Predicated region
    $region6: #{tpu_custom_call.1} parent=1 // pred_check
      _
    $region7: #{tpu_custom_call.1} parent=1 // pred_check_branch
      %22 = sbr.rel (0) target = $region9
    $region8: #{tpu_custom_call.1} parent=1 // pred_region
      _
    $region9: #{tpu_custom_call.1} parent=1 // pred_fallthru
      _
    // Predicated region
    $region10: #{tpu_custom_call.1} parent=1 // pred_check
      _
    $region11: #{tpu_custom_call.1} parent=1 // pred_check_branch
      %24 = sbr.rel (0) target = $region13
    $region12: #{tpu_custom_call.1} parent=1 // pred_region
      _
    $region13: #{tpu_custom_call.1} parent=1 // pred_fallthru
      _
    // Predicated region
    $region14: #{tpu_custom_call.1} parent=1 // pred_check
      _
    $region15: #{tpu_custom_call.1} parent=1 // pred_check_branch
      %26 = sbr.rel (0) target = $region17
    $region16: #{tpu_custom_call.1} parent=1 // pred_region
      %28 = vsyncadd [#allocation3], 0
      %s29 = sshll.u32 %s3, 4
      %s30 = int_to_ptr.hbm [resolvable:$true] %s29
      %s31 = sshll.u32 [#allocation2], 4
      %s32 = int_to_ptr.vmem [resolvable:$true] %s31
      %37 = dma.hbm_to_vmem [thread:$0]  %s30, 512, %s32, [#allocation3], 64, 64, 4
    $region17: #{tpu_custom_call.1} parent=1 // pred_fallthru
      _
    // Predicated region
    $region18: #{tpu_custom_call.1} parent=1 // pred_check
      _
    $region19: #{tpu_custom_call.1} parent=1 // pred_check_branch
      %39 = sbr.rel (0) target = $region21
    $region20: #{tpu_custom_call.1} parent=1 // pred_region
      %41 = vsyncadd [#allocation6], 0
      %s42 = sshll.u32 %s4, 4
      %s43 = int_to_ptr.hbm [resolvable:$true] %s42
      %s44 = sshll.u32 [#allocation5], 4
      %s45 = int_to_ptr.vmem [resolvable:$true] %s44
      %50 = dma.hbm_to_vmem [thread:$0]  %s43, 512, %s45, [#allocation6], 64, 64, 4
    $region21: #{tpu_custom_call.1} parent=1 // pred_fallthru
      _
    // Predicated region
    $region22: #{tpu_custom_call.1} parent=1 // pred_check
      _
    $region23: #{tpu_custom_call.1} parent=1 // pred_check_branch
      %52 = sbr.rel (0) target = $region25
    $region24: #{tpu_custom_call.1} parent=1 // pred_region
      %54 = vsyncadd [#allocation6], 0
      %s55 = sshll.u32 %s5, 4
      %s56 = int_to_ptr.hbm [resolvable:$true] %s55
      %s57 = sshll.u32 [#allocation7], 4
      %s58 = int_to_ptr.vmem [resolvable:$true] %s57
      %63 = dma.hbm_to_vmem [thread:$0]  %s56, 512, %s58, [#allocation6], 64, 64, 4
    $region25: #{tpu_custom_call.1} parent=1 // pred_fallthru
      _
    // Predicated region
    $region26: #{tpu_custom_call.1} parent=1 // pred_check
      _
    $region27: #{tpu_custom_call.1} parent=1 // pred_check_branch
      %65 = sbr.rel (0) target = $region29
    $region28: #{tpu_custom_call.1} parent=1 // pred_region
      %67 = vsyncadd [#allocation9], 0
      %s68 = sshll.u32 %s6, 4
      %s69 = int_to_ptr.hbm [resolvable:$true] %s68
      %s70 = sshll.u32 [#allocation8], 4
      %s71 = int_to_ptr.vmem [resolvable:$true] %s70
      %76 = dma.hbm_to_vmem [thread:$0]  %s69, 512, %s71, [#allocation9], 64, 64, 4
    $region29: #{tpu_custom_call.1} parent=1 // pred_fallthru
      _
    // Predicated region
    $region30: #{tpu_custom_call.1} parent=1 // pred_check
      _
    $region31: #{tpu_custom_call.1} parent=1 // pred_check_branch
      %78 = sbr.rel (0) target = $region33
    $region32: #{tpu_custom_call.1} parent=1 // pred_region
      _
    $region33: #{tpu_custom_call.1} parent=1 // pred_fallthru
      _
    // Predicated region
    $region34: #{tpu_custom_call.1} parent=1 // pred_check
      _
    $region35: #{tpu_custom_call.1} parent=1 // pred_check_branch
      %80 = sbr.rel (0) target = $region37
    $region36: #{tpu_custom_call.1} parent=1 // pred_region
      _
    $region37: #{tpu_custom_call.1} parent=1 // pred_fallthru
      _
    // Predicated region
    $region38: #{tpu_custom_call.1} parent=1 // pred_check
      _
    $region39: #{tpu_custom_call.1} parent=1 // pred_check_branch
      %82 = sbr.rel (0) target = $region41
    $region40: #{tpu_custom_call.1} parent=1 // pred_region
      _
    $region41: #{tpu_custom_call.1} parent=1 // pred_fallthru
      _
    // Predicated region
    $region42: #{tpu_custom_call.1} parent=1 // pred_check
      _
    $region43: #{tpu_custom_call.1} parent=1 // pred_check_branch
      %84 = sbr.rel (0) target = $region45
    $region44: #{tpu_custom_call.1} parent=1 // pred_region
      %86 = dma.done [#allocation3], 512
    $region45: #{tpu_custom_call.1} parent=1 // pred_fallthru
      _
    // Predicated region
    $region46: #{tpu_custom_call.1} parent=1 // pred_check
      _
    $region47: #{tpu_custom_call.1} parent=1 // pred_check_branch
      %88 = sbr.rel (0) target = $region49
    $region48: #{tpu_custom_call.1} parent=1 // pred_region
      %90 = dma.done [#allocation6], 512
    $region49: #{tpu_custom_call.1} parent=1 // pred_fallthru
      _
    // Predicated region
    $region50: #{tpu_custom_call.1} parent=1 // pred_check
      _
    $region51: #{tpu_custom_call.1} parent=1 // pred_check_branch
      %92 = sbr.rel (0) target = $region53
    $region52: #{tpu_custom_call.1} parent=1 // pred_region
      %94 = dma.done [#allocation6], 512
    $region53: #{tpu_custom_call.1} parent=1 // pred_fallthru
      _
    // Predicated region
    $region54: #{tpu_custom_call.1} parent=1 // pred_check
      _
    $region55: #{tpu_custom_call.1} parent=1 // pred_check_branch
      %96 = sbr.rel (0) target = $region57
    $region56: #{tpu_custom_call.1} parent=1 // pred_region
      %98 = dma.done [#allocation9], 512
    $region57: #{tpu_custom_call.1} parent=1 // pred_fallthru
      _
    %v100 = vld [vmem:[%s0] sm:$0xff]
    %v101 = vld [vmem:[%s0 + $0x8] sm:$0xff]
    %v102 = vld [vmem:[%s7] sm:$0xff]
    %v103 = vld [vmem:[%s7 + $0x8] sm:$0x3]
    %v104 = vpack.c.bf16 %v101, %v100
    %v105 = vld [vmem:[%s1] sm:$0xf]
    %v106 = vld [vmem:[%s1 + $0x4] sm:$0xf]
    %v107 = vld [vmem:[%s1 + $0x8] sm:$0xf]
    %v108 = vld [vmem:[%s1 + $0xc] sm:$0xf]
    %v109 = vperm.slane %v102, 0
    %v114 = vunpack.c.l.b16 %v105
    %v115 = vunpack.c.l.b16 %v106
    %v116 = vunpack.c.l.b16 %v107
    %v117 = vunpack.c.l.b16 %v108
    %v118 = vpack.c.b16 %v115, %v114
    %v119 = vpack.c.b16 %v117, %v116
    %vm122 = vcmask 261120
    %v124 = vsel %vm122, %v104, 0
    %126 = vmatpush.bf16.msra.mxu0 0
    %127 = vmatpush.bf16.msra.mxu0 0
    %128 = vmatpush.bf16.msra.mxu0 0
    %129 = vmatpush.bf16.msra.mxu0 0
    %130 = vmatpush.bf16.msra.mxu0 0
    %131 = vmatpush.bf16.msra.mxu0 0
    %132 = vmatpush.bf16.msra.mxu0 %v119
    %133 = vmatpush.bf16.msra.mxu0 %v118
    %134 = vmatmul.bf16.gmra.mxu0 %v124
    %v135 = vpop.f32.mrf.mxu0
    %v136 = vadd.f32 %v109, %v135
    %v137 = vpop.f32.mrf.mxu0
    %v138 = vadd.f32 %v109, %v137
    %139 = vdwg.mxu0
    %v140 = vld [vmem:[%s2] sm:$0xf]
    %v141 = vld [vmem:[%s2 + $0x4] sm:$0xf]
    %v142 = vld [vmem:[%s2 + $0x8] sm:$0xf]
    %v143 = vld [vmem:[%s2 + $0xc] sm:$0xf]
    %v144 = vperm.slane %v102, 1
    %v149 = vunpack.c.l.b16 %v140
    %v150 = vunpack.c.l.b16 %v141
    %v151 = vunpack.c.l.b16 %v142
    %v152 = vunpack.c.l.b16 %v143
    %v153 = vpack.c.b16 %v150, %v149
    %v154 = vpack.c.b16 %v152, %v151
    %157 = vmatpush.bf16.msra.mxu0 0
    %158 = vmatpush.bf16.msra.mxu0 0
    %159 = vmatpush.bf16.msra.mxu0 0
    %160 = vmatpush.bf16.msra.mxu0 0
    %161 = vmatpush.bf16.msra.mxu0 0
    %162 = vmatpush.bf16.msra.mxu0 0
    %163 = vmatpush.bf16.msra.mxu0 %v154
    %164 = vmatpush.bf16.msra.mxu0 %v153
    %165 = vmatmul.bf16.gmra.mxu0 %v124
    %v166 = vpop.f32.mrf.mxu0
    %v167 = vadd.f32 %v144, %v166
    %v168 = vpop.f32.mrf.mxu0
    %v169 = vadd.f32 %v144, %v168
    %170 = vdwg.mxu0
    %v171 = vld [vmem:[#allocation2] sm:$0xf]
    %v172 = vld [vmem:[#allocation2 + $0x4] sm:$0xf]
    %v173 = vld [vmem:[#allocation2 + $0x8] sm:$0xf]
    %v174 = vld [vmem:[#allocation2 + $0xc] sm:$0xf]
    %v175 = vperm.slane %v102, 2
    %v180 = vunpack.c.l.b16 %v171
    %v181 = vunpack.c.l.b16 %v172
    %v182 = vunpack.c.l.b16 %v173
    %v183 = vunpack.c.l.b16 %v174
    %v184 = vpack.c.b16 %v181, %v180
    %v185 = vpack.c.b16 %v183, %v182
    %188 = vmatpush.bf16.msra.mxu0 0
    %189 = vmatpush.bf16.msra.mxu0 0
    %190 = vmatpush.bf16.msra.mxu0 0
    %191 = vmatpush.bf16.msra.mxu0 0
    %192 = vmatpush.bf16.msra.mxu0 0
    %193 = vmatpush.bf16.msra.mxu0 0
    %194 = vmatpush.bf16.msra.mxu0 %v185
    %195 = vmatpush.bf16.msra.mxu0 %v184
    %196 = vmatmul.bf16.gmra.mxu0 %v124
    %v197 = vpop.f32.mrf.mxu0
    %v198 = vadd.f32 %v175, %v197
    %v199 = vpop.f32.mrf.mxu0
    %v200 = vadd.f32 %v175, %v199
    %201 = vdwg.mxu0
    %v202 = vld [vmem:[#allocation5] sm:$0xf]
    %v203 = vld [vmem:[#allocation5 + $0x4] sm:$0xf]
    %v204 = vld [vmem:[#allocation5 + $0x8] sm:$0xf]
    %v205 = vld [vmem:[#allocation5 + $0xc] sm:$0xf]
    %v206 = vmul.f32 %v136, 0.35355338
    %v207 = vmul.f32 %v138, 0.35355338
    %v210 = vrot.slane %v206, 2
    %v211 = vrot.slane %v206, 4
    %v212 = vrot.slane %v206, 6
    %v213 = vrot.slane %v207, 2
    %v214 = vrot.slane %v207, 4
    %v215 = vrot.slane %v207, 6
    %v222 = vpack.c.bf16 %v206, %v206
    %v223 = vpack.c.bf16 %v210, %v210
    %v224 = vpack.c.bf16 %v211, %v211
    %v225 = vpack.c.bf16 %v212, %v212
    %v226 = vpack.c.bf16 %v207, %v207
    %v227 = vpack.c.bf16 %v213, %v213
    %v228 = vpack.c.bf16 %v214, %v214
    %v229 = vpack.c.bf16 %v215, %v215
    %v232 = vrot.slane %v167, 2
    %v233 = vrot.slane %v167, 4
    %v234 = vrot.slane %v167, 6
    %v235 = vrot.slane %v169, 2
    %v236 = vrot.slane %v169, 4
    %v237 = vrot.slane %v169, 6
    %v244 = vpack.c.bf16 %v167, %v167
    %v245 = vpack.c.bf16 %v232, %v232
    %v246 = vpack.c.bf16 %v233, %v233
    %v247 = vpack.c.bf16 %v234, %v234
    %v248 = vpack.c.bf16 %v169, %v169
    %v249 = vpack.c.bf16 %v235, %v235
    %v250 = vpack.c.bf16 %v236, %v236
    %v251 = vpack.c.bf16 %v237, %v237
    %v254 = vrot.slane %v198, 2
    %v255 = vrot.slane %v198, 4
    %v256 = vrot.slane %v198, 6
    %v257 = vrot.slane %v200, 2
    %v258 = vrot.slane %v200, 4
    %v259 = vrot.slane %v200, 6
    %v266 = vpack.c.bf16 %v198, %v198
    %v267 = vpack.c.bf16 %v254, %v254
    %v268 = vpack.c.bf16 %v255, %v255
    %v269 = vpack.c.bf16 %v256, %v256
    %v270 = vpack.c.bf16 %v200, %v200
    %v271 = vpack.c.bf16 %v257, %v257
    %v272 = vpack.c.bf16 %v258, %v258
    %v273 = vpack.c.bf16 %v259, %v259
    %vm274 = vcmask 64512
    %v276 = vsel %vm274, %v222, 0
    %v279 = vsel %vm274, %v244, 0
    %281 = vmatpush.bf16.xpose.msra.mxu0 0
    %282 = vmatpush.bf16.xpose.msra.mxu0 0
    %283 = vmatpush.bf16.xpose.msra.mxu0 0
    %284 = vmatpush.bf16.xpose.msra.mxu0 0
    %285 = vmatpush.bf16.xpose.msra.mxu0 0
    %286 = vmatpush.bf16.xpose.msra.mxu0 0
    %287 = vmatpush.bf16.xpose.msra.mxu0 0
    %288 = vmatpush.bf16.xpose.msra.mxu0 %v279
    %289 = vmatmul.bf16.gmra.mxu0 %v276
    %v290 = vpop.f32.mrf.mxu0
    %v291 = vadd.f32 0.0, %v290
    %v292 = vpop.f32.mrf.mxu0
    %293 = vdwg.mxu0
    %v295 = vsel %vm274, %v223, 0
    %v298 = vsel %vm274, %v245, 0
    %300 = vmatpush.bf16.xpose.msra.mxu0 0
    %301 = vmatpush.bf16.xpose.msra.mxu0 0
    %302 = vmatpush.bf16.xpose.msra.mxu0 0
    %303 = vmatpush.bf16.xpose.msra.mxu0 0
    %304 = vmatpush.bf16.xpose.msra.mxu0 0
    %305 = vmatpush.bf16.xpose.msra.mxu0 0
    %306 = vmatpush.bf16.xpose.msra.mxu0 0
    %307 = vmatpush.bf16.xpose.msra.mxu0 %v298
    %308 = vmatmul.bf16.gmra.mxu0 %v295
    %v309 = vpop.f32.mrf.mxu0
    %v310 = vadd.f32 0.0, %v309
    %v311 = vpop.f32.mrf.mxu0
    %312 = vdwg.mxu0
    %v314 = vsel %vm274, %v224, 0
    %v317 = vsel %vm274, %v246, 0
    %319 = vmatpush.bf16.xpose.msra.mxu0 0
    %320 = vmatpush.bf16.xpose.msra.mxu0 0
    %321 = vmatpush.bf16.xpose.msra.mxu0 0
    %322 = vmatpush.bf16.xpose.msra.mxu0 0
    %323 = vmatpush.bf16.xpose.msra.mxu0 0
    %324 = vmatpush.bf16.xpose.msra.mxu0 0
    %325 = vmatpush.bf16.xpose.msra.mxu0 0
    %326 = vmatpush.bf16.xpose.msra.mxu0 %v317
    %327 = vmatmul.bf16.gmra.mxu0 %v314
    %v328 = vpop.f32.mrf.mxu0
    %v329 = vadd.f32 0.0, %v328
    %v330 = vpop.f32.mrf.mxu0
    %331 = vdwg.mxu0
    %v333 = vsel %vm274, %v225, 0
    %v336 = vsel %vm274, %v247, 0
    %338 = vmatpush.bf16.xpose.msra.mxu0 0
    %339 = vmatpush.bf16.xpose.msra.mxu0 0
    %340 = vmatpush.bf16.xpose.msra.mxu0 0
    %341 = vmatpush.bf16.xpose.msra.mxu0 0
    %342 = vmatpush.bf16.xpose.msra.mxu0 0
    %343 = vmatpush.bf16.xpose.msra.mxu0 0
    %344 = vmatpush.bf16.xpose.msra.mxu0 0
    %345 = vmatpush.bf16.xpose.msra.mxu0 %v336
    %346 = vmatmul.bf16.gmra.mxu0 %v333
    %v347 = vpop.f32.mrf.mxu0
    %v348 = vadd.f32 0.0, %v347
    %v349 = vpop.f32.mrf.mxu0
    %350 = vdwg.mxu0
    %v352 = vsel %vm274, %v226, 0
    %v355 = vsel %vm274, %v248, 0
    %357 = vmatpush.bf16.xpose.msra.mxu0 0
    %358 = vmatpush.bf16.xpose.msra.mxu0 0
    %359 = vmatpush.bf16.xpose.msra.mxu0 0
    %360 = vmatpush.bf16.xpose.msra.mxu0 0
    %361 = vmatpush.bf16.xpose.msra.mxu0 0
    %362 = vmatpush.bf16.xpose.msra.mxu0 0
    %363 = vmatpush.bf16.xpose.msra.mxu0 0
    %364 = vmatpush.bf16.xpose.msra.mxu0 %v355
    %365 = vmatmul.bf16.gmra.mxu0 %v352
    %v366 = vpop.f32.mrf.mxu0
    %v367 = vadd.f32 0.0, %v366
    %v368 = vpop.f32.mrf.mxu0
    %369 = vdwg.mxu0
    %v371 = vsel %vm274, %v227, 0
    %v374 = vsel %vm274, %v249, 0
    %376 = vmatpush.bf16.xpose.msra.mxu0 0
    %377 = vmatpush.bf16.xpose.msra.mxu0 0
    %378 = vmatpush.bf16.xpose.msra.mxu0 0
    %379 = vmatpush.bf16.xpose.msra.mxu0 0
    %380 = vmatpush.bf16.xpose.msra.mxu0 0
    %381 = vmatpush.bf16.xpose.msra.mxu0 0
    %382 = vmatpush.bf16.xpose.msra.mxu0 0
    %383 = vmatpush.bf16.xpose.msra.mxu0 %v374
    %384 = vmatmul.bf16.gmra.mxu0 %v371
    %v385 = vpop.f32.mrf.mxu0
    %v386 = vadd.f32 0.0, %v385
    %v387 = vpop.f32.mrf.mxu0
    %388 = vdwg.mxu0
    %v390 = vsel %vm274, %v228, 0
    %v393 = vsel %vm274, %v250, 0
    %395 = vmatpush.bf16.xpose.msra.mxu0 0
    %396 = vmatpush.bf16.xpose.msra.mxu0 0
    %397 = vmatpush.bf16.xpose.msra.mxu0 0
    %398 = vmatpush.bf16.xpose.msra.mxu0 0
    %399 = vmatpush.bf16.xpose.msra.mxu0 0
    %400 = vmatpush.bf16.xpose.msra.mxu0 0
    %401 = vmatpush.bf16.xpose.msra.mxu0 0
    %402 = vmatpush.bf16.xpose.msra.mxu0 %v393
    %403 = vmatmul.bf16.gmra.mxu0 %v390
    %v404 = vpop.f32.mrf.mxu0
    %v405 = vadd.f32 0.0, %v404
    %v406 = vpop.f32.mrf.mxu0
    %407 = vdwg.mxu0
    %v409 = vsel %vm274, %v229, 0
    %v412 = vsel %vm274, %v251, 0
    %414 = vmatpush.bf16.xpose.msra.mxu0 0
    %415 = vmatpush.bf16.xpose.msra.mxu0 0
    %416 = vmatpush.bf16.xpose.msra.mxu0 0
    %417 = vmatpush.bf16.xpose.msra.mxu0 0
    %418 = vmatpush.bf16.xpose.msra.mxu0 0
    %419 = vmatpush.bf16.xpose.msra.mxu0 0
    %420 = vmatpush.bf16.xpose.msra.mxu0 0
    %421 = vmatpush.bf16.xpose.msra.mxu0 %v412
    %422 = vmatmul.bf16.gmra.mxu0 %v409
    %v423 = vpop.f32.mrf.mxu0
    %v424 = vadd.f32 0.0, %v423
    %v425 = vpop.f32.mrf.mxu0
    %426 = vdwg.mxu0
    %vm427 = vcmask 9216
    %v428 = vsel %vm427, %v291, -inf
    %429 = vmax.xlane.f32.xlu0 %v428
    %v430 = vpop.xlane.xlu0 %429
    %v431 = vsel %vm427, %v310, -inf
    %432 = vmax.xlane.f32.xlu0 %v431
    %v433 = vpop.xlane.xlu0 %432
    %v434 = vsel %vm427, %v329, -inf
    %435 = vmax.xlane.f32.xlu0 %v434
    %v436 = vpop.xlane.xlu0 %435
    %v437 = vsel %vm427, %v348, -inf
    %438 = vmax.xlane.f32.xlu0 %v437
    %v439 = vpop.xlane.xlu0 %438
    %v440 = vsel %vm427, %v367, -inf
    %441 = vmax.xlane.f32.xlu0 %v440
    %v442 = vpop.xlane.xlu0 %441
    %v443 = vsel %vm427, %v386, -inf
    %444 = vmax.xlane.f32.xlu0 %v443
    %v445 = vpop.xlane.xlu0 %444
    %v446 = vsel %vm427, %v405, -inf
    %447 = vmax.xlane.f32.xlu0 %v446
    %v448 = vpop.xlane.xlu0 %447
    %v449 = vsel %vm427, %v424, -inf
    %450 = vmax.xlane.f32.xlu0 %v449
    %v451 = vpop.xlane.xlu0 %450
    %v452 = vsub.f32 %v291, %v430
    %v453 = vsub.f32 %v310, %v433
    %v454 = vsub.f32 %v329, %v436
    %v455 = vsub.f32 %v348, %v439
    %v456 = vsub.f32 %v367, %v442
    %v457 = vsub.f32 %v386, %v445
    %v458 = vsub.f32 %v405, %v448
    %v459 = vsub.f32 %v424, %v451
    %v460 = vmul.f32 %v452, 1.442695
    %v461 = vpow.pop %v460
    %v462 = vmul.f32 %v453, 1.442695
    %v463 = vpow.pop %v462
    %v464 = vmul.f32 %v454, 1.442695
    %v465 = vpow.pop %v464
    %v466 = vmul.f32 %v455, 1.442695
    %v467 = vpow.pop %v466
    %v468 = vmul.f32 %v456, 1.442695
    %v469 = vpow.pop %v468
    %v470 = vmul.f32 %v457, 1.442695
    %v471 = vpow.pop %v470
    %v472 = vmul.f32 %v458, 1.442695
    %v473 = vpow.pop %v472
    %v474 = vmul.f32 %v459, 1.442695
    %v475 = vpow.pop %v474
    %v476 = vsel %vm427, %v461, 0.0
    %477 = vadd.xlane.f32.xlu0 %v476
    %v478 = vpop.xlane.xlu0 %477
    %v479 = vsel %vm427, %v463, 0.0
    %480 = vadd.xlane.f32.xlu0 %v479
    %v481 = vpop.xlane.xlu0 %480
    %v482 = vsel %vm427, %v465, 0.0
    %483 = vadd.xlane.f32.xlu0 %v482
    %v484 = vpop.xlane.xlu0 %483
    %v485 = vsel %vm427, %v467, 0.0
    %486 = vadd.xlane.f32.xlu0 %v485
    %v487 = vpop.xlane.xlu0 %486
    %v488 = vsel %vm427, %v469, 0.0
    %489 = vadd.xlane.f32.xlu0 %v488
    %v490 = vpop.xlane.xlu0 %489
    %v491 = vsel %vm427, %v471, 0.0
    %492 = vadd.xlane.f32.xlu0 %v491
    %v493 = vpop.xlane.xlu0 %492
    %v494 = vsel %vm427, %v473, 0.0
    %495 = vadd.xlane.f32.xlu0 %v494
    %v496 = vpop.xlane.xlu0 %495
    %v497 = vsel %vm427, %v475, 0.0
    %498 = vadd.xlane.f32.xlu0 %v497
    %v499 = vpop.xlane.xlu0 %498
    %v500 = vrcp.pop %v478
    %v501 = vrcp.pop %v481
    %v502 = vrcp.pop %v484
    %v503 = vrcp.pop %v487
    %v504 = vrcp.pop %v490
    %v505 = vrcp.pop %v493
    %v506 = vrcp.pop %v496
    %v507 = vrcp.pop %v499
    %v508 = vmul.f32 %v461, %v500
    %v509 = vmul.f32 %v463, %v501
    %v510 = vmul.f32 %v465, %v502
    %v511 = vmul.f32 %v467, %v503
    %v512 = vmul.f32 %v469, %v504
    %v513 = vmul.f32 %v471, %v505
    %v514 = vmul.f32 %v473, %v506
    %v515 = vmul.f32 %v475, %v507
    %v516 = vpack.c.bf16 %v508, %v508
    %v517 = vpack.c.bf16 %v509, %v509
    %v518 = vpack.c.bf16 %v510, %v510
    %v519 = vpack.c.bf16 %v511, %v511
    %v520 = vpack.c.bf16 %v512, %v512
    %v521 = vpack.c.bf16 %v513, %v513
    %v522 = vpack.c.bf16 %v514, %v514
    %v523 = vpack.c.bf16 %v515, %v515
    %vm524 = vcmask 15360
    %v526 = vsel %vm524, %v516, 0
    %vm528 = vcmask 1040384
    %v530 = vsel %vm528, %v266, 0
    %532 = vmatpush.bf16.msra.mxu0 0
    %533 = vmatpush.bf16.msra.mxu0 0
    %534 = vmatpush.bf16.msra.mxu0 0
    %535 = vmatpush.bf16.msra.mxu0 0
    %536 = vmatpush.bf16.msra.mxu0 0
    %537 = vmatpush.bf16.msra.mxu0 0
    %538 = vmatpush.bf16.msra.mxu0 0
    %539 = vmatpush.bf16.msra.mxu0 %v530
    %540 = vmatmul.bf16.gmra.mxu0 %v526
    %v541 = vpop.f32.mrf.mxu0
    %v542 = vadd.f32 0.0, %v541
    %v543 = vpop.f32.mrf.mxu0
    %544 = vdwg.mxu0
    %v546 = vsel %vm524, %v517, 0
    %v549 = vsel %vm528, %v267, 0
    %551 = vmatpush.bf16.msra.mxu0 0
    %552 = vmatpush.bf16.msra.mxu0 0
    %553 = vmatpush.bf16.msra.mxu0 0
    %554 = vmatpush.bf16.msra.mxu0 0
    %555 = vmatpush.bf16.msra.mxu0 0
    %556 = vmatpush.bf16.msra.mxu0 0
    %557 = vmatpush.bf16.msra.mxu0 0
    %558 = vmatpush.bf16.msra.mxu0 %v549
    %559 = vmatmul.bf16.gmra.mxu0 %v546
    %v560 = vpop.f32.mrf.mxu0
    %v561 = vadd.f32 0.0, %v560
    %v562 = vpop.f32.mrf.mxu0
    %563 = vdwg.mxu0
    %v565 = vsel %vm524, %v518, 0
    %v568 = vsel %vm528, %v268, 0
    %570 = vmatpush.bf16.msra.mxu0 0
    %571 = vmatpush.bf16.msra.mxu0 0
    %572 = vmatpush.bf16.msra.mxu0 0
    %573 = vmatpush.bf16.msra.mxu0 0
    %574 = vmatpush.bf16.msra.mxu0 0
    %575 = vmatpush.bf16.msra.mxu0 0
    %576 = vmatpush.bf16.msra.mxu0 0
    %577 = vmatpush.bf16.msra.mxu0 %v568
    %578 = vmatmul.bf16.gmra.mxu0 %v565
    %v579 = vpop.f32.mrf.mxu0
    %v580 = vadd.f32 0.0, %v579
    %v581 = vpop.f32.mrf.mxu0
    %582 = vdwg.mxu0
    %v584 = vsel %vm524, %v519, 0
    %v587 = vsel %vm528, %v269, 0
    %589 = vmatpush.bf16.msra.mxu0 0
    %590 = vmatpush.bf16.msra.mxu0 0
    %591 = vmatpush.bf16.msra.mxu0 0
    %592 = vmatpush.bf16.msra.mxu0 0
    %593 = vmatpush.bf16.msra.mxu0 0
    %594 = vmatpush.bf16.msra.mxu0 0
    %595 = vmatpush.bf16.msra.mxu0 0
    %596 = vmatpush.bf16.msra.mxu0 %v587
    %597 = vmatmul.bf16.gmra.mxu0 %v584
    %v598 = vpop.f32.mrf.mxu0
    %v599 = vadd.f32 0.0, %v598
    %v600 = vpop.f32.mrf.mxu0
    %601 = vdwg.mxu0
    %v603 = vsel %vm524, %v520, 0
    %v606 = vsel %vm528, %v270, 0
    %608 = vmatpush.bf16.msra.mxu0 0
    %609 = vmatpush.bf16.msra.mxu0 0
    %610 = vmatpush.bf16.msra.mxu0 0
    %611 = vmatpush.bf16.msra.mxu0 0
    %612 = vmatpush.bf16.msra.mxu0 0
    %613 = vmatpush.bf16.msra.mxu0 0
    %614 = vmatpush.bf16.msra.mxu0 0
    %615 = vmatpush.bf16.msra.mxu0 %v606
    %616 = vmatmul.bf16.gmra.mxu0 %v603
    %v617 = vpop.f32.mrf.mxu0
    %v618 = vadd.f32 0.0, %v617
    %v619 = vpop.f32.mrf.mxu0
    %620 = vdwg.mxu0
    %v622 = vsel %vm524, %v521, 0
    %v625 = vsel %vm528, %v271, 0
    %627 = vmatpush.bf16.msra.mxu0 0
    %628 = vmatpush.bf16.msra.mxu0 0
    %629 = vmatpush.bf16.msra.mxu0 0
    %630 = vmatpush.bf16.msra.mxu0 0
    %631 = vmatpush.bf16.msra.mxu0 0
    %632 = vmatpush.bf16.msra.mxu0 0
    %633 = vmatpush.bf16.msra.mxu0 0
    %634 = vmatpush.bf16.msra.mxu0 %v625
    %635 = vmatmul.bf16.gmra.mxu0 %v622
    %v636 = vpop.f32.mrf.mxu0
    %v637 = vadd.f32 0.0, %v636
    %v638 = vpop.f32.mrf.mxu0
    %639 = vdwg.mxu0
    %v641 = vsel %vm524, %v522, 0
    %v644 = vsel %vm528, %v272, 0
    %646 = vmatpush.bf16.msra.mxu0 0
    %647 = vmatpush.bf16.msra.mxu0 0
    %648 = vmatpush.bf16.msra.mxu0 0
    %649 = vmatpush.bf16.msra.mxu0 0
    %650 = vmatpush.bf16.msra.mxu0 0
    %651 = vmatpush.bf16.msra.mxu0 0
    %652 = vmatpush.bf16.msra.mxu0 0
    %653 = vmatpush.bf16.msra.mxu0 %v644
    %654 = vmatmul.bf16.gmra.mxu0 %v641
    %v655 = vpop.f32.mrf.mxu0
    %v656 = vadd.f32 0.0, %v655
    %v657 = vpop.f32.mrf.mxu0
    %658 = vdwg.mxu0
    %v660 = vsel %vm524, %v523, 0
    %v663 = vsel %vm528, %v273, 0
    %665 = vmatpush.bf16.msra.mxu0 0
    %666 = vmatpush.bf16.msra.mxu0 0
    %667 = vmatpush.bf16.msra.mxu0 0
    %668 = vmatpush.bf16.msra.mxu0 0
    %669 = vmatpush.bf16.msra.mxu0 0
    %670 = vmatpush.bf16.msra.mxu0 0
    %671 = vmatpush.bf16.msra.mxu0 0
    %672 = vmatpush.bf16.msra.mxu0 %v663
    %673 = vmatmul.bf16.gmra.mxu0 %v660
    %v674 = vpop.f32.mrf.mxu0
    %v675 = vadd.f32 0.0, %v674
    %v676 = vpop.f32.mrf.mxu0
    %677 = vdwg.mxu0
    %686 = vst [vmem:[#allocation1] ss:$4 sm:$0xff] %v542
    %s687 = scalar_lea.vmem [#allocation1], 1
    %688 = vst [vmem:[%s687] ss:$4 sm:$0xff] %v561
    %s689 = scalar_lea.vmem [#allocation1], 2
    %690 = vst [vmem:[%s689] ss:$4 sm:$0xff] %v580
    %s691 = scalar_lea.vmem [#allocation1], 3
    %692 = vst [vmem:[%s691] ss:$4 sm:$0xff] %v599
    %s693 = scalar_lea.vmem [#allocation1], 32
    %694 = vst [vmem:[%s693] ss:$4 sm:$0xff] %v618
    %s695 = scalar_lea.vmem [#allocation1], 33
    %696 = vst [vmem:[%s695] ss:$4 sm:$0xff] %v637
    %s697 = scalar_lea.vmem [#allocation1], 34
    %698 = vst [vmem:[%s697] ss:$4 sm:$0xff] %v656
    %s699 = scalar_lea.vmem [#allocation1], 35
    %700 = vst [vmem:[%s699] ss:$4 sm:$0xff] %v675
    %v701 = vld.sshfl [vmem:[#allocation1] sm:$0xff pattern:$0x73625140]
    %v702 = vld.sshfl [vmem:[#allocation1 + $0x20] sm:$0xff pattern:$0x73625140]
    %v705 = vpack.c.bf16 %v702, %v701
    %v707 = vunpack.c.l.b16 %v222
    %v708 = vpack.c.b16 %v707, %v707
    %709 = vrot.lane.b32.xlu0 %v708, 120
    %v710 = vpop.permute.xlu0 %709
    %v712 = vunpack.c.l.b16 %v244
    %v713 = vpack.c.b16 %v712, %v712
    %714 = vrot.lane.b32.xlu0 %v713, 120
    %v715 = vpop.permute.xlu0 %714
    %v717 = vsel %vm274, %v710, 0
    %v720 = vsel %vm274, %v715, 0
    %722 = vmatpush.bf16.xpose.msra.mxu0 0
    %723 = vmatpush.bf16.xpose.msra.mxu0 0
    %724 = vmatpush.bf16.xpose.msra.mxu0 0
    %725 = vmatpush.bf16.xpose.msra.mxu0 0
    %726 = vmatpush.bf16.xpose.msra.mxu0 0
    %727 = vmatpush.bf16.xpose.msra.mxu0 0
    %728 = vmatpush.bf16.xpose.msra.mxu0 0
    %729 = vmatpush.bf16.xpose.msra.mxu0 %v720
    %730 = vmatmul.bf16.gmra.mxu0 %v717
    %v731 = vpop.f32.mrf.mxu0
    %v732 = vadd.f32 0.0, %v731
    %v733 = vpop.f32.mrf.mxu0
    %734 = vdwg.mxu0
    %v736 = vunpack.c.l.b16 %v223
    %v737 = vpack.c.b16 %v736, %v736
    %738 = vrot.lane.b32.xlu0 %v737, 120
    %v739 = vpop.permute.xlu0 %738
    %v741 = vunpack.c.l.b16 %v245
    %v742 = vpack.c.b16 %v741, %v741
    %743 = vrot.lane.b32.xlu0 %v742, 120
    %v744 = vpop.permute.xlu0 %743
    %v746 = vsel %vm274, %v739, 0
    %v749 = vsel %vm274, %v744, 0
    %751 = vmatpush.bf16.xpose.msra.mxu0 0
    %752 = vmatpush.bf16.xpose.msra.mxu0 0
    %753 = vmatpush.bf16.xpose.msra.mxu0 0
    %754 = vmatpush.bf16.xpose.msra.mxu0 0
    %755 = vmatpush.bf16.xpose.msra.mxu0 0
    %756 = vmatpush.bf16.xpose.msra.mxu0 0
    %757 = vmatpush.bf16.xpose.msra.mxu0 0
    %758 = vmatpush.bf16.xpose.msra.mxu0 %v749
    %759 = vmatmul.bf16.gmra.mxu0 %v746
    %v760 = vpop.f32.mrf.mxu0
    %v761 = vadd.f32 0.0, %v760
    %v762 = vpop.f32.mrf.mxu0
    %763 = vdwg.mxu0
    %v765 = vunpack.c.l.b16 %v224
    %v766 = vpack.c.b16 %v765, %v765
    %767 = vrot.lane.b32.xlu0 %v766, 120
    %v768 = vpop.permute.xlu0 %767
    %v770 = vunpack.c.l.b16 %v246
    %v771 = vpack.c.b16 %v770, %v770
    %772 = vrot.lane.b32.xlu0 %v771, 120
    %v773 = vpop.permute.xlu0 %772
    %v775 = vsel %vm274, %v768, 0
    %v778 = vsel %vm274, %v773, 0
    %780 = vmatpush.bf16.xpose.msra.mxu0 0
    %781 = vmatpush.bf16.xpose.msra.mxu0 0
    %782 = vmatpush.bf16.xpose.msra.mxu0 0
    %783 = vmatpush.bf16.xpose.msra.mxu0 0
    %784 = vmatpush.bf16.xpose.msra.mxu0 0
    %785 = vmatpush.bf16.xpose.msra.mxu0 0
    %786 = vmatpush.bf16.xpose.msra.mxu0 0
    %787 = vmatpush.bf16.xpose.msra.mxu0 %v778
    %788 = vmatmul.bf16.gmra.mxu0 %v775
    %v789 = vpop.f32.mrf.mxu0
    %v790 = vadd.f32 0.0, %v789
    %v791 = vpop.f32.mrf.mxu0
    %792 = vdwg.mxu0
    %v794 = vunpack.c.l.b16 %v225
    %v795 = vpack.c.b16 %v794, %v794
    %796 = vrot.lane.b32.xlu0 %v795, 120
    %v797 = vpop.permute.xlu0 %796
    %v799 = vunpack.c.l.b16 %v247
    %v800 = vpack.c.b16 %v799, %v799
    %801 = vrot.lane.b32.xlu0 %v800, 120
    %v802 = vpop.permute.xlu0 %801
    %v804 = vsel %vm274, %v797, 0
    %v807 = vsel %vm274, %v802, 0
    %809 = vmatpush.bf16.xpose.msra.mxu0 0
    %810 = vmatpush.bf16.xpose.msra.mxu0 0
    %811 = vmatpush.bf16.xpose.msra.mxu0 0
    %812 = vmatpush.bf16.xpose.msra.mxu0 0
    %813 = vmatpush.bf16.xpose.msra.mxu0 0
    %814 = vmatpush.bf16.xpose.msra.mxu0 0
    %815 = vmatpush.bf16.xpose.msra.mxu0 0
    %816 = vmatpush.bf16.xpose.msra.mxu0 %v807
    %817 = vmatmul.bf16.gmra.mxu0 %v804
    %v818 = vpop.f32.mrf.mxu0
    %v819 = vadd.f32 0.0, %v818
    %v820 = vpop.f32.mrf.mxu0
    %821 = vdwg.mxu0
    %v823 = vunpack.c.l.b16 %v226
    %v824 = vpack.c.b16 %v823, %v823
    %825 = vrot.lane.b32.xlu0 %v824, 120
    %v826 = vpop.permute.xlu0 %825
    %v828 = vunpack.c.l.b16 %v248
    %v829 = vpack.c.b16 %v828, %v828
    %830 = vrot.lane.b32.xlu0 %v829, 120
    %v831 = vpop.permute.xlu0 %830
    %v833 = vsel %vm274, %v826, 0
    %v836 = vsel %vm274, %v831, 0
    %838 = vmatpush.bf16.xpose.msra.mxu0 0
    %839 = vmatpush.bf16.xpose.msra.mxu0 0
    %840 = vmatpush.bf16.xpose.msra.mxu0 0
    %841 = vmatpush.bf16.xpose.msra.mxu0 0
    %842 = vmatpush.bf16.xpose.msra.mxu0 0
    %843 = vmatpush.bf16.xpose.msra.mxu0 0
    %844 = vmatpush.bf16.xpose.msra.mxu0 0
    %845 = vmatpush.bf16.xpose.msra.mxu0 %v836
    %846 = vmatmul.bf16.gmra.mxu0 %v833
    %v847 = vpop.f32.mrf.mxu0
    %v848 = vadd.f32 0.0, %v847
    %v849 = vpop.f32.mrf.mxu0
    %850 = vdwg.mxu0
    %v852 = vunpack.c.l.b16 %v227
    %v853 = vpack.c.b16 %v852, %v852
    %854 = vrot.lane.b32.xlu0 %v853, 120
    %v855 = vpop.permute.xlu0 %854
    %v857 = vunpack.c.l.b16 %v249
    %v858 = vpack.c.b16 %v857, %v857
    %859 = vrot.lane.b32.xlu0 %v858, 120
    %v860 = vpop.permute.xlu0 %859
    %v862 = vsel %vm274, %v855, 0
    %v865 = vsel %vm274, %v860, 0
    %867 = vmatpush.bf16.xpose.msra.mxu0 0
    %868 = vmatpush.bf16.xpose.msra.mxu0 0
    %869 = vmatpush.bf16.xpose.msra.mxu0 0
    %870 = vmatpush.bf16.xpose.msra.mxu0 0
    %871 = vmatpush.bf16.xpose.msra.mxu0 0
    %872 = vmatpush.bf16.xpose.msra.mxu0 0
    %873 = vmatpush.bf16.xpose.msra.mxu0 0
    %874 = vmatpush.bf16.xpose.msra.mxu0 %v865
    %875 = vmatmul.bf16.gmra.mxu0 %v862
    %v876 = vpop.f32.mrf.mxu0
    %v877 = vadd.f32 0.0, %v876
    %v878 = vpop.f32.mrf.mxu0
    %879 = vdwg.mxu0
    %v881 = vunpack.c.l.b16 %v228
    %v882 = vpack.c.b16 %v881, %v881
    %883 = vrot.lane.b32.xlu0 %v882, 120
    %v884 = vpop.permute.xlu0 %883
    %v886 = vunpack.c.l.b16 %v250
    %v887 = vpack.c.b16 %v886, %v886
    %888 = vrot.lane.b32.xlu0 %v887, 120
    %v889 = vpop.permute.xlu0 %888
    %v891 = vsel %vm274, %v884, 0
    %v894 = vsel %vm274, %v889, 0
    %896 = vmatpush.bf16.xpose.msra.mxu0 0
    %897 = vmatpush.bf16.xpose.msra.mxu0 0
    %898 = vmatpush.bf16.xpose.msra.mxu0 0
    %899 = vmatpush.bf16.xpose.msra.mxu0 0
    %900 = vmatpush.bf16.xpose.msra.mxu0 0
    %901 = vmatpush.bf16.xpose.msra.mxu0 0
    %902 = vmatpush.bf16.xpose.msra.mxu0 0
    %903 = vmatpush.bf16.xpose.msra.mxu0 %v894
    %904 = vmatmul.bf16.gmra.mxu0 %v891
    %v905 = vpop.f32.mrf.mxu0
    %v906 = vadd.f32 0.0, %v905
    %v907 = vpop.f32.mrf.mxu0
    %908 = vdwg.mxu0
    %v910 = vunpack.c.l.b16 %v229
    %v911 = vpack.c.b16 %v910, %v910
    %912 = vrot.lane.b32.xlu0 %v911, 120
    %v913 = vpop.permute.xlu0 %912
    %v915 = vunpack.c.l.b16 %v251
    %v916 = vpack.c.b16 %v915, %v915
    %917 = vrot.lane.b32.xlu0 %v916, 120
    %v918 = vpop.permute.xlu0 %917
    %v920 = vsel %vm274, %v913, 0
    %v923 = vsel %vm274, %v918, 0
    %925 = vmatpush.bf16.xpose.msra.mxu0 0
    %926 = vmatpush.bf16.xpose.msra.mxu0 0
    %927 = vmatpush.bf16.xpose.msra.mxu0 0
    %928 = vmatpush.bf16.xpose.msra.mxu0 0
    %929 = vmatpush.bf16.xpose.msra.mxu0 0
    %930 = vmatpush.bf16.xpose.msra.mxu0 0
    %931 = vmatpush.bf16.xpose.msra.mxu0 0
    %932 = vmatpush.bf16.xpose.msra.mxu0 %v923
    %933 = vmatmul.bf16.gmra.mxu0 %v920
    %v934 = vpop.f32.mrf.mxu0
    %v935 = vadd.f32 0.0, %v934
    %v936 = vpop.f32.mrf.mxu0
    %937 = vdwg.mxu0
    %v938 = vsel %vm427, %v732, -inf
    %939 = vmax.xlane.f32.xlu0 %v938
    %v940 = vpop.xlane.xlu0 %939
    %v941 = vsel %vm427, %v761, -inf
    %942 = vmax.xlane.f32.xlu0 %v941
    %v943 = vpop.xlane.xlu0 %942
    %v944 = vsel %vm427, %v790, -inf
    %945 = vmax.xlane.f32.xlu0 %v944
    %v946 = vpop.xlane.xlu0 %945
    %v947 = vsel %vm427, %v819, -inf
    %948 = vmax.xlane.f32.xlu0 %v947
    %v949 = vpop.xlane.xlu0 %948
    %v950 = vsel %vm427, %v848, -inf
    %951 = vmax.xlane.f32.xlu0 %v950
    %v952 = vpop.xlane.xlu0 %951
    %v953 = vsel %vm427, %v877, -inf
    %954 = vmax.xlane.f32.xlu0 %v953
    %v955 = vpop.xlane.xlu0 %954
    %v956 = vsel %vm427, %v906, -inf
    %957 = vmax.xlane.f32.xlu0 %v956
    %v958 = vpop.xlane.xlu0 %957
    %v959 = vsel %vm427, %v935, -inf
    %960 = vmax.xlane.f32.xlu0 %v959
    %v961 = vpop.xlane.xlu0 %960
    %v962 = vsub.f32 %v732, %v940
    %v963 = vsub.f32 %v761, %v943
    %v964 = vsub.f32 %v790, %v946
    %v965 = vsub.f32 %v819, %v949
    %v966 = vsub.f32 %v848, %v952
    %v967 = vsub.f32 %v877, %v955
    %v968 = vsub.f32 %v906, %v958
    %v969 = vsub.f32 %v935, %v961
    %v970 = vmul.f32 %v962, 1.442695
    %v971 = vpow.pop %v970
    %v972 = vmul.f32 %v963, 1.442695
    %v973 = vpow.pop %v972
    %v974 = vmul.f32 %v964, 1.442695
    %v975 = vpow.pop %v974
    %v976 = vmul.f32 %v965, 1.442695
    %v977 = vpow.pop %v976
    %v978 = vmul.f32 %v966, 1.442695
    %v979 = vpow.pop %v978
    %v980 = vmul.f32 %v967, 1.442695
    %v981 = vpow.pop %v980
    %v982 = vmul.f32 %v968, 1.442695
    %v983 = vpow.pop %v982
    %v984 = vmul.f32 %v969, 1.442695
    %v985 = vpow.pop %v984
    %v986 = vsel %vm427, %v971, 0.0
    %987 = vadd.xlane.f32.xlu0 %v986
    %v988 = vpop.xlane.xlu0 %987
    %v989 = vsel %vm427, %v973, 0.0
    %990 = vadd.xlane.f32.xlu0 %v989
    %v991 = vpop.xlane.xlu0 %990
    %v992 = vsel %vm427, %v975, 0.0
    %993 = vadd.xlane.f32.xlu0 %v992
    %v994 = vpop.xlane.xlu0 %993
    %v995 = vsel %vm427, %v977, 0.0
    %996 = vadd.xlane.f32.xlu0 %v995
    %v997 = vpop.xlane.xlu0 %996
    %v998 = vsel %vm427, %v979, 0.0
    %999 = vadd.xlane.f32.xlu0 %v998
    %v1000 = vpop.xlane.xlu0 %999
    %v1001 = vsel %vm427, %v981, 0.0
    %1002 = vadd.xlane.f32.xlu0 %v1001
    %v1003 = vpop.xlane.xlu0 %1002
    %v1004 = vsel %vm427, %v983, 0.0
    %1005 = vadd.xlane.f32.xlu0 %v1004
    %v1006 = vpop.xlane.xlu0 %1005
    %v1007 = vsel %vm427, %v985, 0.0
    %1008 = vadd.xlane.f32.xlu0 %v1007
    %v1009 = vpop.xlane.xlu0 %1008
    %v1010 = vrcp.pop %v988
    %v1011 = vrcp.pop %v991
    %v1012 = vrcp.pop %v994
    %v1013 = vrcp.pop %v997
    %v1014 = vrcp.pop %v1000
    %v1015 = vrcp.pop %v1003
    %v1016 = vrcp.pop %v1006
    %v1017 = vrcp.pop %v1009
    %v1018 = vmul.f32 %v971, %v1010
    %v1019 = vmul.f32 %v973, %v1011
    %v1020 = vmul.f32 %v975, %v1012
    %v1021 = vmul.f32 %v977, %v1013
    %v1022 = vmul.f32 %v979, %v1014
    %v1023 = vmul.f32 %v981, %v1015
    %v1024 = vmul.f32 %v983, %v1016
    %v1025 = vmul.f32 %v985, %v1017
    %v1026 = vpack.c.bf16 %v1018, %v1018
    %v1027 = vpack.c.bf16 %v1019, %v1019
    %v1028 = vpack.c.bf16 %v1020, %v1020
    %v1029 = vpack.c.bf16 %v1021, %v1021
    %v1030 = vpack.c.bf16 %v1022, %v1022
    %v1031 = vpack.c.bf16 %v1023, %v1023
    %v1032 = vpack.c.bf16 %v1024, %v1024
    %v1033 = vpack.c.bf16 %v1025, %v1025
    %v1035 = vunpack.c.l.b16 %v266
    %v1036 = vpack.c.b16 %v1035, %v1035
    %1037 = vrot.lane.b32.xlu0 %v1036, 120
    %v1038 = vpop.permute.xlu0 %1037
    %v1040 = vsel %vm524, %v1026, 0
    %v1043 = vsel %vm528, %v1038, 0
    %1045 = vmatpush.bf16.msra.mxu0 0
    %1046 = vmatpush.bf16.msra.mxu0 0
    %1047 = vmatpush.bf16.msra.mxu0 0
    %1048 = vmatpush.bf16.msra.mxu0 0
    %1049 = vmatpush.bf16.msra.mxu0 0
    %1050 = vmatpush.bf16.msra.mxu0 0
    %1051 = vmatpush.bf16.msra.mxu0 0
    %1052 = vmatpush.bf16.msra.mxu0 %v1043
    %1053 = vmatmul.bf16.gmra.mxu0 %v1040
    %v1054 = vpop.f32.mrf.mxu0
    %v1055 = vadd.f32 0.0, %v1054
    %v1056 = vpop.f32.mrf.mxu0
    %1057 = vdwg.mxu0
    %v1059 = vunpack.c.l.b16 %v267
    %v1060 = vpack.c.b16 %v1059, %v1059
    %1061 = vrot.lane.b32.xlu0 %v1060, 120
    %v1062 = vpop.permute.xlu0 %1061
    %v1064 = vsel %vm524, %v1027, 0
    %v1067 = vsel %vm528, %v1062, 0
    %1069 = vmatpush.bf16.msra.mxu0 0
    %1070 = vmatpush.bf16.msra.mxu0 0
    %1071 = vmatpush.bf16.msra.mxu0 0
    %1072 = vmatpush.bf16.msra.mxu0 0
    %1073 = vmatpush.bf16.msra.mxu0 0
    %1074 = vmatpush.bf16.msra.mxu0 0
    %1075 = vmatpush.bf16.msra.mxu0 0
    %1076 = vmatpush.bf16.msra.mxu0 %v1067
    %1077 = vmatmul.bf16.gmra.mxu0 %v1064
    %v1078 = vpop.f32.mrf.mxu0
    %v1079 = vadd.f32 0.0, %v1078
    %v1080 = vpop.f32.mrf.mxu0
    %1081 = vdwg.mxu0
    %v1083 = vunpack.c.l.b16 %v268
    %v1084 = vpack.c.b16 %v1083, %v1083
    %1085 = vrot.lane.b32.xlu0 %v1084, 120
    %v1086 = vpop.permute.xlu0 %1085
    %v1088 = vsel %vm524, %v1028, 0
    %v1091 = vsel %vm528, %v1086, 0
    %1093 = vmatpush.bf16.msra.mxu0 0
    %1094 = vmatpush.bf16.msra.mxu0 0
    %1095 = vmatpush.bf16.msra.mxu0 0
    %1096 = vmatpush.bf16.msra.mxu0 0
    %1097 = vmatpush.bf16.msra.mxu0 0
    %1098 = vmatpush.bf16.msra.mxu0 0
    %1099 = vmatpush.bf16.msra.mxu0 0
    %1100 = vmatpush.bf16.msra.mxu0 %v1091
    %1101 = vmatmul.bf16.gmra.mxu0 %v1088
    %v1102 = vpop.f32.mrf.mxu0
    %v1103 = vadd.f32 0.0, %v1102
    %v1104 = vpop.f32.mrf.mxu0
    %1105 = vdwg.mxu0
    %v1107 = vunpack.c.l.b16 %v269
    %v1108 = vpack.c.b16 %v1107, %v1107
    %1109 = vrot.lane.b32.xlu0 %v1108, 120
    %v1110 = vpop.permute.xlu0 %1109
    %v1112 = vsel %vm524, %v1029, 0
    %v1115 = vsel %vm528, %v1110, 0
    %1117 = vmatpush.bf16.msra.mxu0 0
    %1118 = vmatpush.bf16.msra.mxu0 0
    %1119 = vmatpush.bf16.msra.mxu0 0
    %1120 = vmatpush.bf16.msra.mxu0 0
    %1121 = vmatpush.bf16.msra.mxu0 0
    %1122 = vmatpush.bf16.msra.mxu0 0
    %1123 = vmatpush.bf16.msra.mxu0 0
    %1124 = vmatpush.bf16.msra.mxu0 %v1115
    %1125 = vmatmul.bf16.gmra.mxu0 %v1112
    %v1126 = vpop.f32.mrf.mxu0
    %v1127 = vadd.f32 0.0, %v1126
    %v1128 = vpop.f32.mrf.mxu0
    %1129 = vdwg.mxu0
    %v1131 = vunpack.c.l.b16 %v270
    %v1132 = vpack.c.b16 %v1131, %v1131
    %1133 = vrot.lane.b32.xlu0 %v1132, 120
    %v1134 = vpop.permute.xlu0 %1133
    %v1136 = vsel %vm524, %v1030, 0
    %v1139 = vsel %vm528, %v1134, 0
    %1141 = vmatpush.bf16.msra.mxu0 0
    %1142 = vmatpush.bf16.msra.mxu0 0
    %1143 = vmatpush.bf16.msra.mxu0 0
    %1144 = vmatpush.bf16.msra.mxu0 0
    %1145 = vmatpush.bf16.msra.mxu0 0
    %1146 = vmatpush.bf16.msra.mxu0 0
    %1147 = vmatpush.bf16.msra.mxu0 0
    %1148 = vmatpush.bf16.msra.mxu0 %v1139
    %1149 = vmatmul.bf16.gmra.mxu0 %v1136
    %v1150 = vpop.f32.mrf.mxu0
    %v1151 = vadd.f32 0.0, %v1150
    %v1152 = vpop.f32.mrf.mxu0
    %1153 = vdwg.mxu0
    %v1155 = vunpack.c.l.b16 %v271
    %v1156 = vpack.c.b16 %v1155, %v1155
    %1157 = vrot.lane.b32.xlu0 %v1156, 120
    %v1158 = vpop.permute.xlu0 %1157
    %v1160 = vsel %vm524, %v1031, 0
    %v1163 = vsel %vm528, %v1158, 0
    %1165 = vmatpush.bf16.msra.mxu0 0
    %1166 = vmatpush.bf16.msra.mxu0 0
    %1167 = vmatpush.bf16.msra.mxu0 0
    %1168 = vmatpush.bf16.msra.mxu0 0
    %1169 = vmatpush.bf16.msra.mxu0 0
    %1170 = vmatpush.bf16.msra.mxu0 0
    %1171 = vmatpush.bf16.msra.mxu0 0
    %1172 = vmatpush.bf16.msra.mxu0 %v1163
    %1173 = vmatmul.bf16.gmra.mxu0 %v1160
    %v1174 = vpop.f32.mrf.mxu0
    %v1175 = vadd.f32 0.0, %v1174
    %v1176 = vpop.f32.mrf.mxu0
    %1177 = vdwg.mxu0
    %v1179 = vunpack.c.l.b16 %v272
    %v1180 = vpack.c.b16 %v1179, %v1179
    %1181 = vrot.lane.b32.xlu0 %v1180, 120
    %v1182 = vpop.permute.xlu0 %1181
    %v1184 = vsel %vm524, %v1032, 0
    %v1187 = vsel %vm528, %v1182, 0
    %1189 = vmatpush.bf16.msra.mxu0 0
    %1190 = vmatpush.bf16.msra.mxu0 0
    %1191 = vmatpush.bf16.msra.mxu0 0
    %1192 = vmatpush.bf16.msra.mxu0 0
    %1193 = vmatpush.bf16.msra.mxu0 0
    %1194 = vmatpush.bf16.msra.mxu0 0
    %1195 = vmatpush.bf16.msra.mxu0 0
    %1196 = vmatpush.bf16.msra.mxu0 %v1187
    %1197 = vmatmul.bf16.gmra.mxu0 %v1184
    %v1198 = vpop.f32.mrf.mxu0
    %v1199 = vadd.f32 0.0, %v1198
    %v1200 = vpop.f32.mrf.mxu0
    %1201 = vdwg.mxu0
    %v1203 = vunpack.c.l.b16 %v273
    %v1204 = vpack.c.b16 %v1203, %v1203
    %1205 = vrot.lane.b32.xlu0 %v1204, 120
    %v1206 = vpop.permute.xlu0 %1205
    %v1208 = vsel %vm524, %v1033, 0
    %v1211 = vsel %vm528, %v1206, 0
    %1213 = vmatpush.bf16.msra.mxu0 0
    %1214 = vmatpush.bf16.msra.mxu0 0
    %1215 = vmatpush.bf16.msra.mxu0 0
    %1216 = vmatpush.bf16.msra.mxu0 0
    %1217 = vmatpush.bf16.msra.mxu0 0
    %1218 = vmatpush.bf16.msra.mxu0 0
    %1219 = vmatpush.bf16.msra.mxu0 0
    %1220 = vmatpush.bf16.msra.mxu0 %v1211
    %1221 = vmatmul.bf16.gmra.mxu0 %v1208
    %v1222 = vpop.f32.mrf.mxu0
    %v1223 = vadd.f32 0.0, %v1222
    %v1224 = vpop.f32.mrf.mxu0
    %1225 = vdwg.mxu0
    %1234 = vst [vmem:[#allocation1] ss:$4 sm:$0xff] %v1055
    %s1235 = scalar_lea.vmem [#allocation1], 1
    %1236 = vst [vmem:[%s1235] ss:$4 sm:$0xff] %v1079
    %s1237 = scalar_lea.vmem [#allocation1], 2
    %1238 = vst [vmem:[%s1237] ss:$4 sm:$0xff] %v1103
    %s1239 = scalar_lea.vmem [#allocation1], 3
    %1240 = vst [vmem:[%s1239] ss:$4 sm:$0xff] %v1127
    %s1241 = scalar_lea.vmem [#allocation1], 32
    %1242 = vst [vmem:[%s1241] ss:$4 sm:$0xff] %v1151
    %s1243 = scalar_lea.vmem [#allocation1], 33
    %1244 = vst [vmem:[%s1243] ss:$4 sm:$0xff] %v1175
    %s1245 = scalar_lea.vmem [#allocation1], 34
    %1246 = vst [vmem:[%s1245] ss:$4 sm:$0xff] %v1199
    %s1247 = scalar_lea.vmem [#allocation1], 35
    %1248 = vst [vmem:[%s1247] ss:$4 sm:$0xff] %v1223
    %v1249 = vld.sshfl [vmem:[#allocation1] sm:$0xff pattern:$0x73625140]
    %v1250 = vld.sshfl [vmem:[#allocation1 + $0x20] sm:$0xff pattern:$0x73625140]
    %v1253 = vpack.c.bf16 %v1250, %v1249
    %v1255 = vsel %vm274, %v1253, 0
    %vm1257 = vcmask 1043456
    %v1259 = vsel %vm1257, %v203, 0
    %1261 = vmatpush.bf16.msra.mxu0 0
    %1262 = vmatpush.bf16.msra.mxu0 0
    %1263 = vmatpush.bf16.msra.mxu0 0
    %1264 = vmatpush.bf16.msra.mxu0 0
    %1265 = vmatpush.bf16.msra.mxu0 0
    %1266 = vmatpush.bf16.msra.mxu0 0
    %1267 = vmatpush.bf16.msra.mxu0 0
    %1268 = vmatpush.bf16.msra.mxu0 %v1259
    %1269 = vmatmul.bf16.gmra.mxu0 %v1255
    %v1270 = vpop.f32.mrf.mxu0
    %v1271 = vadd.f32 0.0, %v1270
    %v1272 = vpop.f32.mrf.mxu0
    %v1273 = vadd.f32 0.0, %v1272
    %1274 = vdwg.mxu0
    %v1276 = vsel %vm274, %v705, 0
    %v1279 = vsel %vm1257, %v202, 0
    %1281 = vmatpush.bf16.msra.mxu0 0
    %1282 = vmatpush.bf16.msra.mxu0 0
    %1283 = vmatpush.bf16.msra.mxu0 0
    %1284 = vmatpush.bf16.msra.mxu0 0
    %1285 = vmatpush.bf16.msra.mxu0 0
    %1286 = vmatpush.bf16.msra.mxu0 0
    %1287 = vmatpush.bf16.msra.mxu0 0
    %1288 = vmatpush.bf16.msra.mxu0 %v1279
    %1289 = vmatmul.bf16.gmra.mxu0 %v1276
    %v1290 = vpop.f32.mrf.mxu0
    %v1291 = vadd.f32 %v1271, %v1290
    %v1292 = vpop.f32.mrf.mxu0
    %v1293 = vadd.f32 %v1273, %v1292
    %1294 = vdwg.mxu0
    %1295 = vrot.lane.b32.xlu0 %v708, 112
    %v1296 = vpop.permute.xlu0 %1295
    %1297 = vrot.lane.b32.xlu0 %v713, 112
    %v1298 = vpop.permute.xlu0 %1297
    %v1300 = vsel %vm274, %v1296, 0
    %v1303 = vsel %vm274, %v1298, 0
    %1305 = vmatpush.bf16.xpose.msra.mxu0 0
    %1306 = vmatpush.bf16.xpose.msra.mxu0 0
    %1307 = vmatpush.bf16.xpose.msra.mxu0 0
    %1308 = vmatpush.bf16.xpose.msra.mxu0 0
    %1309 = vmatpush.bf16.xpose.msra.mxu0 0
    %1310 = vmatpush.bf16.xpose.msra.mxu0 0
    %1311 = vmatpush.bf16.xpose.msra.mxu0 0
    %1312 = vmatpush.bf16.xpose.msra.mxu0 %v1303
    %1313 = vmatmul.bf16.gmra.mxu0 %v1300
    %v1314 = vpop.f32.mrf.mxu0
    %v1315 = vadd.f32 0.0, %v1314
    %v1316 = vpop.f32.mrf.mxu0
    %1317 = vdwg.mxu0
    %1318 = vrot.lane.b32.xlu0 %v737, 112
    %v1319 = vpop.permute.xlu0 %1318
    %1320 = vrot.lane.b32.xlu0 %v742, 112
    %v1321 = vpop.permute.xlu0 %1320
    %v1323 = vsel %vm274, %v1319, 0
    %v1326 = vsel %vm274, %v1321, 0
    %1328 = vmatpush.bf16.xpose.msra.mxu0 0
    %1329 = vmatpush.bf16.xpose.msra.mxu0 0
    %1330 = vmatpush.bf16.xpose.msra.mxu0 0
    %1331 = vmatpush.bf16.xpose.msra.mxu0 0
    %1332 = vmatpush.bf16.xpose.msra.mxu0 0
    %1333 = vmatpush.bf16.xpose.msra.mxu0 0
    %1334 = vmatpush.bf16.xpose.msra.mxu0 0
    %1335 = vmatpush.bf16.xpose.msra.mxu0 %v1326
    %1336 = vmatmul.bf16.gmra.mxu0 %v1323
    %v1337 = vpop.f32.mrf.mxu0
    %v1338 = vadd.f32 0.0, %v1337
    %v1339 = vpop.f32.mrf.mxu0
    %1340 = vdwg.mxu0
    %1341 = vrot.lane.b32.xlu0 %v766, 112
    %v1342 = vpop.permute.xlu0 %1341
    %1343 = vrot.lane.b32.xlu0 %v771, 112
    %v1344 = vpop.permute.xlu0 %1343
    %v1346 = vsel %vm274, %v1342, 0
    %v1349 = vsel %vm274, %v1344, 0
    %1351 = vmatpush.bf16.xpose.msra.mxu0 0
    %1352 = vmatpush.bf16.xpose.msra.mxu0 0
    %1353 = vmatpush.bf16.xpose.msra.mxu0 0
    %1354 = vmatpush.bf16.xpose.msra.mxu0 0
    %1355 = vmatpush.bf16.xpose.msra.mxu0 0
    %1356 = vmatpush.bf16.xpose.msra.mxu0 0
    %1357 = vmatpush.bf16.xpose.msra.mxu0 0
    %1358 = vmatpush.bf16.xpose.msra.mxu0 %v1349
    %1359 = vmatmul.bf16.gmra.mxu0 %v1346
    %v1360 = vpop.f32.mrf.mxu0
    %v1361 = vadd.f32 0.0, %v1360
    %v1362 = vpop.f32.mrf.mxu0
    %1363 = vdwg.mxu0
    %1364 = vrot.lane.b32.xlu0 %v795, 112
    %v1365 = vpop.permute.xlu0 %1364
    %1366 = vrot.lane.b32.xlu0 %v800, 112
    %v1367 = vpop.permute.xlu0 %1366
    %v1369 = vsel %vm274, %v1365, 0
    %v1372 = vsel %vm274, %v1367, 0
    %1374 = vmatpush.bf16.xpose.msra.mxu0 0
    %1375 = vmatpush.bf16.xpose.msra.mxu0 0
    %1376 = vmatpush.bf16.xpose.msra.mxu0 0
    %1377 = vmatpush.bf16.xpose.msra.mxu0 0
    %1378 = vmatpush.bf16.xpose.msra.mxu0 0
    %1379 = vmatpush.bf16.xpose.msra.mxu0 0
    %1380 = vmatpush.bf16.xpose.msra.mxu0 0
    %1381 = vmatpush.bf16.xpose.msra.mxu0 %v1372
    %1382 = vmatmul.bf16.gmra.mxu0 %v1369
    %v1383 = vpop.f32.mrf.mxu0
    %v1384 = vadd.f32 0.0, %v1383
    %v1385 = vpop.f32.mrf.mxu0
    %1386 = vdwg.mxu0
    %1387 = vrot.lane.b32.xlu0 %v824, 112
    %v1388 = vpop.permute.xlu0 %1387
    %1389 = vrot.lane.b32.xlu0 %v829, 112
    %v1390 = vpop.permute.xlu0 %1389
    %v1392 = vsel %vm274, %v1388, 0
    %v1395 = vsel %vm274, %v1390, 0
    %1397 = vmatpush.bf16.xpose.msra.mxu0 0
    %1398 = vmatpush.bf16.xpose.msra.mxu0 0
    %1399 = vmatpush.bf16.xpose.msra.mxu0 0
    %1400 = vmatpush.bf16.xpose.msra.mxu0 0
    %1401 = vmatpush.bf16.xpose.msra.mxu0 0
    %1402 = vmatpush.bf16.xpose.msra.mxu0 0
    %1403 = vmatpush.bf16.xpose.msra.mxu0 0
    %1404 = vmatpush.bf16.xpose.msra.mxu0 %v1395
    %1405 = vmatmul.bf16.gmra.mxu0 %v1392
    %v1406 = vpop.f32.mrf.mxu0
    %v1407 = vadd.f32 0.0, %v1406
    %v1408 = vpop.f32.mrf.mxu0
    %1409 = vdwg.mxu0
    %1410 = vrot.lane.b32.xlu0 %v853, 112
    %v1411 = vpop.permute.xlu0 %1410
    %1412 = vrot.lane.b32.xlu0 %v858, 112
    %v1413 = vpop.permute.xlu0 %1412
    %v1415 = vsel %vm274, %v1411, 0
    %v1418 = vsel %vm274, %v1413, 0
    %1420 = vmatpush.bf16.xpose.msra.mxu0 0
    %1421 = vmatpush.bf16.xpose.msra.mxu0 0
    %1422 = vmatpush.bf16.xpose.msra.mxu0 0
    %1423 = vmatpush.bf16.xpose.msra.mxu0 0
    %1424 = vmatpush.bf16.xpose.msra.mxu0 0
    %1425 = vmatpush.bf16.xpose.msra.mxu0 0
    %1426 = vmatpush.bf16.xpose.msra.mxu0 0
    %1427 = vmatpush.bf16.xpose.msra.mxu0 %v1418
    %1428 = vmatmul.bf16.gmra.mxu0 %v1415
    %v1429 = vpop.f32.mrf.mxu0
    %v1430 = vadd.f32 0.0, %v1429
    %v1431 = vpop.f32.mrf.mxu0
    %1432 = vdwg.mxu0
    %1433 = vrot.lane.b32.xlu0 %v882, 112
    %v1434 = vpop.permute.xlu0 %1433
    %1435 = vrot.lane.b32.xlu0 %v887, 112
    %v1436 = vpop.permute.xlu0 %1435
    %v1438 = vsel %vm274, %v1434, 0
    %v1441 = vsel %vm274, %v1436, 0
    %1443 = vmatpush.bf16.xpose.msra.mxu0 0
    %1444 = vmatpush.bf16.xpose.msra.mxu0 0
    %1445 = vmatpush.bf16.xpose.msra.mxu0 0
    %1446 = vmatpush.bf16.xpose.msra.mxu0 0
    %1447 = vmatpush.bf16.xpose.msra.mxu0 0
    %1448 = vmatpush.bf16.xpose.msra.mxu0 0
    %1449 = vmatpush.bf16.xpose.msra.mxu0 0
    %1450 = vmatpush.bf16.xpose.msra.mxu0 %v1441
    %1451 = vmatmul.bf16.gmra.mxu0 %v1438
    %v1452 = vpop.f32.mrf.mxu0
    %v1453 = vadd.f32 0.0, %v1452
    %v1454 = vpop.f32.mrf.mxu0
    %1455 = vdwg.mxu0
    %1456 = vrot.lane.b32.xlu0 %v911, 112
    %v1457 = vpop.permute.xlu0 %1456
    %1458 = vrot.lane.b32.xlu0 %v916, 112
    %v1459 = vpop.permute.xlu0 %1458
    %v1461 = vsel %vm274, %v1457, 0
    %v1464 = vsel %vm274, %v1459, 0
    %1466 = vmatpush.bf16.xpose.msra.mxu0 0
    %1467 = vmatpush.bf16.xpose.msra.mxu0 0
    %1468 = vmatpush.bf16.xpose.msra.mxu0 0
    %1469 = vmatpush.bf16.xpose.msra.mxu0 0
    %1470 = vmatpush.bf16.xpose.msra.mxu0 0
    %1471 = vmatpush.bf16.xpose.msra.mxu0 0
    %1472 = vmatpush.bf16.xpose.msra.mxu0 0
    %1473 = vmatpush.bf16.xpose.msra.mxu0 %v1464
    %1474 = vmatmul.bf16.gmra.mxu0 %v1461
    %v1475 = vpop.f32.mrf.mxu0
    %v1476 = vadd.f32 0.0, %v1475
    %v1477 = vpop.f32.mrf.mxu0
    %1478 = vdwg.mxu0
    %v1479 = vsel %vm427, %v1315, -inf
    %1480 = vmax.xlane.f32.xlu0 %v1479
    %v1481 = vpop.xlane.xlu0 %1480
    %v1482 = vsel %vm427, %v1338, -inf
    %1483 = vmax.xlane.f32.xlu0 %v1482
    %v1484 = vpop.xlane.xlu0 %1483
    %v1485 = vsel %vm427, %v1361, -inf
    %1486 = vmax.xlane.f32.xlu0 %v1485
    %v1487 = vpop.xlane.xlu0 %1486
    %v1488 = vsel %vm427, %v1384, -inf
    %1489 = vmax.xlane.f32.xlu0 %v1488
    %v1490 = vpop.xlane.xlu0 %1489
    %v1491 = vsel %vm427, %v1407, -inf
    %1492 = vmax.xlane.f32.xlu0 %v1491
    %v1493 = vpop.xlane.xlu0 %1492
    %v1494 = vsel %vm427, %v1430, -inf
    %1495 = vmax.xlane.f32.xlu0 %v1494
    %v1496 = vpop.xlane.xlu0 %1495
    %v1497 = vsel %vm427, %v1453, -inf
    %1498 = vmax.xlane.f32.xlu0 %v1497
    %v1499 = vpop.xlane.xlu0 %1498
    %v1500 = vsel %vm427, %v1476, -inf
    %1501 = vmax.xlane.f32.xlu0 %v1500
    %v1502 = vpop.xlane.xlu0 %1501
    %v1503 = vsub.f32 %v1315, %v1481
    %v1504 = vsub.f32 %v1338, %v1484
    %v1505 = vsub.f32 %v1361, %v1487
    %v1506 = vsub.f32 %v1384, %v1490
    %v1507 = vsub.f32 %v1407, %v1493
    %v1508 = vsub.f32 %v1430, %v1496
    %v1509 = vsub.f32 %v1453, %v1499
    %v1510 = vsub.f32 %v1476, %v1502
    %v1511 = vmul.f32 %v1503, 1.442695
    %v1512 = vpow.pop %v1511
    %v1513 = vmul.f32 %v1504, 1.442695
    %v1514 = vpow.pop %v1513
    %v1515 = vmul.f32 %v1505, 1.442695
    %v1516 = vpow.pop %v1515
    %v1517 = vmul.f32 %v1506, 1.442695
    %v1518 = vpow.pop %v1517
    %v1519 = vmul.f32 %v1507, 1.442695
    %v1520 = vpow.pop %v1519
    %v1521 = vmul.f32 %v1508, 1.442695
    %v1522 = vpow.pop %v1521
    %v1523 = vmul.f32 %v1509, 1.442695
    %v1524 = vpow.pop %v1523
    %v1525 = vmul.f32 %v1510, 1.442695
    %v1526 = vpow.pop %v1525
    %v1527 = vsel %vm427, %v1512, 0.0
    %1528 = vadd.xlane.f32.xlu0 %v1527
    %v1529 = vpop.xlane.xlu0 %1528
    %v1530 = vsel %vm427, %v1514, 0.0
    %1531 = vadd.xlane.f32.xlu0 %v1530
    %v1532 = vpop.xlane.xlu0 %1531
    %v1533 = vsel %vm427, %v1516, 0.0
    %1534 = vadd.xlane.f32.xlu0 %v1533
    %v1535 = vpop.xlane.xlu0 %1534
    %v1536 = vsel %vm427, %v1518, 0.0
    %1537 = vadd.xlane.f32.xlu0 %v1536
    %v1538 = vpop.xlane.xlu0 %1537
    %v1539 = vsel %vm427, %v1520, 0.0
    %1540 = vadd.xlane.f32.xlu0 %v1539
    %v1541 = vpop.xlane.xlu0 %1540
    %v1542 = vsel %vm427, %v1522, 0.0
    %1543 = vadd.xlane.f32.xlu0 %v1542
    %v1544 = vpop.xlane.xlu0 %1543
    %v1545 = vsel %vm427, %v1524, 0.0
    %1546 = vadd.xlane.f32.xlu0 %v1545
    %v1547 = vpop.xlane.xlu0 %1546
    %v1548 = vsel %vm427, %v1526, 0.0
    %1549 = vadd.xlane.f32.xlu0 %v1548
    %v1550 = vpop.xlane.xlu0 %1549
    %v1551 = vrcp.pop %v1529
    %v1552 = vrcp.pop %v1532
    %v1553 = vrcp.pop %v1535
    %v1554 = vrcp.pop %v1538
    %v1555 = vrcp.pop %v1541
    %v1556 = vrcp.pop %v1544
    %v1557 = vrcp.pop %v1547
    %v1558 = vrcp.pop %v1550
    %v1559 = vmul.f32 %v1512, %v1551
    %v1560 = vmul.f32 %v1514, %v1552
    %v1561 = vmul.f32 %v1516, %v1553
    %v1562 = vmul.f32 %v1518, %v1554
    %v1563 = vmul.f32 %v1520, %v1555
    %v1564 = vmul.f32 %v1522, %v1556
    %v1565 = vmul.f32 %v1524, %v1557
    %v1566 = vmul.f32 %v1526, %v1558
    %v1567 = vpack.c.bf16 %v1559, %v1559
    %v1568 = vpack.c.bf16 %v1560, %v1560
    %v1569 = vpack.c.bf16 %v1561, %v1561
    %v1570 = vpack.c.bf16 %v1562, %v1562
    %v1571 = vpack.c.bf16 %v1563, %v1563
    %v1572 = vpack.c.bf16 %v1564, %v1564
    %v1573 = vpack.c.bf16 %v1565, %v1565
    %v1574 = vpack.c.bf16 %v1566, %v1566
    %1575 = vrot.lane.b32.xlu0 %v1036, 112
    %v1576 = vpop.permute.xlu0 %1575
    %v1578 = vsel %vm524, %v1567, 0
    %v1581 = vsel %vm528, %v1576, 0
    %1583 = vmatpush.bf16.msra.mxu0 0
    %1584 = vmatpush.bf16.msra.mxu0 0
    %1585 = vmatpush.bf16.msra.mxu0 0
    %1586 = vmatpush.bf16.msra.mxu0 0
    %1587 = vmatpush.bf16.msra.mxu0 0
    %1588 = vmatpush.bf16.msra.mxu0 0
    %1589 = vmatpush.bf16.msra.mxu0 0
    %1590 = vmatpush.bf16.msra.mxu0 %v1581
    %1591 = vmatmul.bf16.gmra.mxu0 %v1578
    %v1592 = vpop.f32.mrf.mxu0
    %v1593 = vadd.f32 0.0, %v1592
    %v1594 = vpop.f32.mrf.mxu0
    %1595 = vdwg.mxu0
    %1596 = vrot.lane.b32.xlu0 %v1060, 112
    %v1597 = vpop.permute.xlu0 %1596
    %v1599 = vsel %vm524, %v1568, 0
    %v1602 = vsel %vm528, %v1597, 0
    %1604 = vmatpush.bf16.msra.mxu0 0
    %1605 = vmatpush.bf16.msra.mxu0 0
    %1606 = vmatpush.bf16.msra.mxu0 0
    %1607 = vmatpush.bf16.msra.mxu0 0
    %1608 = vmatpush.bf16.msra.mxu0 0
    %1609 = vmatpush.bf16.msra.mxu0 0
    %1610 = vmatpush.bf16.msra.mxu0 0
    %1611 = vmatpush.bf16.msra.mxu0 %v1602
    %1612 = vmatmul.bf16.gmra.mxu0 %v1599
    %v1613 = vpop.f32.mrf.mxu0
    %v1614 = vadd.f32 0.0, %v1613
    %v1615 = vpop.f32.mrf.mxu0
    %1616 = vdwg.mxu0
    %1617 = vrot.lane.b32.xlu0 %v1084, 112
    %v1618 = vpop.permute.xlu0 %1617
    %v1620 = vsel %vm524, %v1569, 0
    %v1623 = vsel %vm528, %v1618, 0
    %1625 = vmatpush.bf16.msra.mxu0 0
    %1626 = vmatpush.bf16.msra.mxu0 0
    %1627 = vmatpush.bf16.msra.mxu0 0
    %1628 = vmatpush.bf16.msra.mxu0 0
    %1629 = vmatpush.bf16.msra.mxu0 0
    %1630 = vmatpush.bf16.msra.mxu0 0
    %1631 = vmatpush.bf16.msra.mxu0 0
    %1632 = vmatpush.bf16.msra.mxu0 %v1623
    %1633 = vmatmul.bf16.gmra.mxu0 %v1620
    %v1634 = vpop.f32.mrf.mxu0
    %v1635 = vadd.f32 0.0, %v1634
    %v1636 = vpop.f32.mrf.mxu0
    %1637 = vdwg.mxu0
    %1638 = vrot.lane.b32.xlu0 %v1108, 112
    %v1639 = vpop.permute.xlu0 %1638
    %v1641 = vsel %vm524, %v1570, 0
    %v1644 = vsel %vm528, %v1639, 0
    %1646 = vmatpush.bf16.msra.mxu0 0
    %1647 = vmatpush.bf16.msra.mxu0 0
    %1648 = vmatpush.bf16.msra.mxu0 0
    %1649 = vmatpush.bf16.msra.mxu0 0
    %1650 = vmatpush.bf16.msra.mxu0 0
    %1651 = vmatpush.bf16.msra.mxu0 0
    %1652 = vmatpush.bf16.msra.mxu0 0
    %1653 = vmatpush.bf16.msra.mxu0 %v1644
    %1654 = vmatmul.bf16.gmra.mxu0 %v1641
    %v1655 = vpop.f32.mrf.mxu0
    %v1656 = vadd.f32 0.0, %v1655
    %v1657 = vpop.f32.mrf.mxu0
    %1658 = vdwg.mxu0
    %1659 = vrot.lane.b32.xlu0 %v1132, 112
    %v1660 = vpop.permute.xlu0 %1659
    %v1662 = vsel %vm524, %v1571, 0
    %v1665 = vsel %vm528, %v1660, 0
    %1667 = vmatpush.bf16.msra.mxu0 0
    %1668 = vmatpush.bf16.msra.mxu0 0
    %1669 = vmatpush.bf16.msra.mxu0 0
    %1670 = vmatpush.bf16.msra.mxu0 0
    %1671 = vmatpush.bf16.msra.mxu0 0
    %1672 = vmatpush.bf16.msra.mxu0 0
    %1673 = vmatpush.bf16.msra.mxu0 0
    %1674 = vmatpush.bf16.msra.mxu0 %v1665
    %1675 = vmatmul.bf16.gmra.mxu0 %v1662
    %v1676 = vpop.f32.mrf.mxu0
    %v1677 = vadd.f32 0.0, %v1676
    %v1678 = vpop.f32.mrf.mxu0
    %1679 = vdwg.mxu0
    %1680 = vrot.lane.b32.xlu0 %v1156, 112
    %v1681 = vpop.permute.xlu0 %1680
    %v1683 = vsel %vm524, %v1572, 0
    %v1686 = vsel %vm528, %v1681, 0
    %1688 = vmatpush.bf16.msra.mxu0 0
    %1689 = vmatpush.bf16.msra.mxu0 0
    %1690 = vmatpush.bf16.msra.mxu0 0
    %1691 = vmatpush.bf16.msra.mxu0 0
    %1692 = vmatpush.bf16.msra.mxu0 0
    %1693 = vmatpush.bf16.msra.mxu0 0
    %1694 = vmatpush.bf16.msra.mxu0 0
    %1695 = vmatpush.bf16.msra.mxu0 %v1686
    %1696 = vmatmul.bf16.gmra.mxu0 %v1683
    %v1697 = vpop.f32.mrf.mxu0
    %v1698 = vadd.f32 0.0, %v1697
    %v1699 = vpop.f32.mrf.mxu0
    %1700 = vdwg.mxu0
    %1701 = vrot.lane.b32.xlu0 %v1180, 112
    %v1702 = vpop.permute.xlu0 %1701
    %v1704 = vsel %vm524, %v1573, 0
    %v1707 = vsel %vm528, %v1702, 0
    %1709 = vmatpush.bf16.msra.mxu0 0
    %1710 = vmatpush.bf16.msra.mxu0 0
    %1711 = vmatpush.bf16.msra.mxu0 0
    %1712 = vmatpush.bf16.msra.mxu0 0
    %1713 = vmatpush.bf16.msra.mxu0 0
    %1714 = vmatpush.bf16.msra.mxu0 0
    %1715 = vmatpush.bf16.msra.mxu0 0
    %1716 = vmatpush.bf16.msra.mxu0 %v1707
    %1717 = vmatmul.bf16.gmra.mxu0 %v1704
    %v1718 = vpop.f32.mrf.mxu0
    %v1719 = vadd.f32 0.0, %v1718
    %v1720 = vpop.f32.mrf.mxu0
    %1721 = vdwg.mxu0
    %1722 = vrot.lane.b32.xlu0 %v1204, 112
    %v1723 = vpop.permute.xlu0 %1722
    %v1725 = vsel %vm524, %v1574, 0
    %v1728 = vsel %vm528, %v1723, 0
    %1730 = vmatpush.bf16.msra.mxu0 0
    %1731 = vmatpush.bf16.msra.mxu0 0
    %1732 = vmatpush.bf16.msra.mxu0 0
    %1733 = vmatpush.bf16.msra.mxu0 0
    %1734 = vmatpush.bf16.msra.mxu0 0
    %1735 = vmatpush.bf16.msra.mxu0 0
    %1736 = vmatpush.bf16.msra.mxu0 0
    %1737 = vmatpush.bf16.msra.mxu0 %v1728
    %1738 = vmatmul.bf16.gmra.mxu0 %v1725
    %v1739 = vpop.f32.mrf.mxu0
    %v1740 = vadd.f32 0.0, %v1739
    %v1741 = vpop.f32.mrf.mxu0
    %1742 = vdwg.mxu0
    %1751 = vst [vmem:[#allocation1] ss:$4 sm:$0xff] %v1593
    %s1752 = scalar_lea.vmem [#allocation1], 1
    %1753 = vst [vmem:[%s1752] ss:$4 sm:$0xff] %v1614
    %s1754 = scalar_lea.vmem [#allocation1], 2
    %1755 = vst [vmem:[%s1754] ss:$4 sm:$0xff] %v1635
    %s1756 = scalar_lea.vmem [#allocation1], 3
    %1757 = vst [vmem:[%s1756] ss:$4 sm:$0xff] %v1656
    %s1758 = scalar_lea.vmem [#allocation1], 32
    %1759 = vst [vmem:[%s1758] ss:$4 sm:$0xff] %v1677
    %s1760 = scalar_lea.vmem [#allocation1], 33
    %1761 = vst [vmem:[%s1760] ss:$4 sm:$0xff] %v1698
    %s1762 = scalar_lea.vmem [#allocation1], 34
    %1763 = vst [vmem:[%s1762] ss:$4 sm:$0xff] %v1719
    %s1764 = scalar_lea.vmem [#allocation1], 35
    %1765 = vst [vmem:[%s1764] ss:$4 sm:$0xff] %v1740
    %v1766 = vld.sshfl [vmem:[#allocation1] sm:$0xff pattern:$0x73625140]
    %v1767 = vld.sshfl [vmem:[#allocation1 + $0x20] sm:$0xff pattern:$0x73625140]
    %v1770 = vpack.c.bf16 %v1767, %v1766
    %v1772 = vsel %vm274, %v1770, 0
    %v1775 = vsel %vm1257, %v204, 0
    %1777 = vmatpush.bf16.msra.mxu0 0
    %1778 = vmatpush.bf16.msra.mxu0 0
    %1779 = vmatpush.bf16.msra.mxu0 0
    %1780 = vmatpush.bf16.msra.mxu0 0
    %1781 = vmatpush.bf16.msra.mxu0 0
    %1782 = vmatpush.bf16.msra.mxu0 0
    %1783 = vmatpush.bf16.msra.mxu0 0
    %1784 = vmatpush.bf16.msra.mxu0 %v1775
    %1785 = vmatmul.bf16.gmra.mxu0 %v1772
    %v1786 = vpop.f32.mrf.mxu0
    %v1787 = vadd.f32 0.0, %v1786
    %v1788 = vpop.f32.mrf.mxu0
    %v1789 = vadd.f32 0.0, %v1788
    %1790 = vdwg.mxu0
    %v1791 = vadd.f32 %v1291, %v1787
    %v1792 = vadd.f32 %v1293, %v1789
    %1793 = vrot.lane.b32.xlu0 %v708, 104
    %v1794 = vpop.permute.xlu0 %1793
    %1795 = vrot.lane.b32.xlu0 %v713, 104
    %v1796 = vpop.permute.xlu0 %1795
    %v1798 = vsel %vm274, %v1794, 0
    %v1801 = vsel %vm274, %v1796, 0
    %1803 = vmatpush.bf16.xpose.msra.mxu0 0
    %1804 = vmatpush.bf16.xpose.msra.mxu0 0
    %1805 = vmatpush.bf16.xpose.msra.mxu0 0
    %1806 = vmatpush.bf16.xpose.msra.mxu0 0
    %1807 = vmatpush.bf16.xpose.msra.mxu0 0
    %1808 = vmatpush.bf16.xpose.msra.mxu0 0
    %1809 = vmatpush.bf16.xpose.msra.mxu0 0
    %1810 = vmatpush.bf16.xpose.msra.mxu0 %v1801
    %1811 = vmatmul.bf16.gmra.mxu0 %v1798
    %v1812 = vpop.f32.mrf.mxu0
    %v1813 = vadd.f32 0.0, %v1812
    %v1814 = vpop.f32.mrf.mxu0
    %1815 = vdwg.mxu0
    %1816 = vrot.lane.b32.xlu0 %v737, 104
    %v1817 = vpop.permute.xlu0 %1816
    %1818 = vrot.lane.b32.xlu0 %v742, 104
    %v1819 = vpop.permute.xlu0 %1818
    %v1821 = vsel %vm274, %v1817, 0
    %v1824 = vsel %vm274, %v1819, 0
    %1826 = vmatpush.bf16.xpose.msra.mxu0 0
    %1827 = vmatpush.bf16.xpose.msra.mxu0 0
    %1828 = vmatpush.bf16.xpose.msra.mxu0 0
    %1829 = vmatpush.bf16.xpose.msra.mxu0 0
    %1830 = vmatpush.bf16.xpose.msra.mxu0 0
    %1831 = vmatpush.bf16.xpose.msra.mxu0 0
    %1832 = vmatpush.bf16.xpose.msra.mxu0 0
    %1833 = vmatpush.bf16.xpose.msra.mxu0 %v1824
    %1834 = vmatmul.bf16.gmra.mxu0 %v1821
    %v1835 = vpop.f32.mrf.mxu0
    %v1836 = vadd.f32 0.0, %v1835
    %v1837 = vpop.f32.mrf.mxu0
    %1838 = vdwg.mxu0
    %1839 = vrot.lane.b32.xlu0 %v766, 104
    %v1840 = vpop.permute.xlu0 %1839
    %1841 = vrot.lane.b32.xlu0 %v771, 104
    %v1842 = vpop.permute.xlu0 %1841
    %v1844 = vsel %vm274, %v1840, 0
    %v1847 = vsel %vm274, %v1842, 0
    %1849 = vmatpush.bf16.xpose.msra.mxu0 0
    %1850 = vmatpush.bf16.xpose.msra.mxu0 0
    %1851 = vmatpush.bf16.xpose.msra.mxu0 0
    %1852 = vmatpush.bf16.xpose.msra.mxu0 0
    %1853 = vmatpush.bf16.xpose.msra.mxu0 0
    %1854 = vmatpush.bf16.xpose.msra.mxu0 0
    %1855 = vmatpush.bf16.xpose.msra.mxu0 0
    %1856 = vmatpush.bf16.xpose.msra.mxu0 %v1847
    %1857 = vmatmul.bf16.gmra.mxu0 %v1844
    %v1858 = vpop.f32.mrf.mxu0
    %v1859 = vadd.f32 0.0, %v1858
    %v1860 = vpop.f32.mrf.mxu0
    %1861 = vdwg.mxu0
    %1862 = vrot.lane.b32.xlu0 %v795, 104
    %v1863 = vpop.permute.xlu0 %1862
    %1864 = vrot.lane.b32.xlu0 %v800, 104
    %v1865 = vpop.permute.xlu0 %1864
    %v1867 = vsel %vm274, %v1863, 0
    %v1870 = vsel %vm274, %v1865, 0
    %1872 = vmatpush.bf16.xpose.msra.mxu0 0
    %1873 = vmatpush.bf16.xpose.msra.mxu0 0
    %1874 = vmatpush.bf16.xpose.msra.mxu0 0
    %1875 = vmatpush.bf16.xpose.msra.mxu0 0
    %1876 = vmatpush.bf16.xpose.msra.mxu0 0
    %1877 = vmatpush.bf16.xpose.msra.mxu0 0
    %1878 = vmatpush.bf16.xpose.msra.mxu0 0
    %1879 = vmatpush.bf16.xpose.msra.mxu0 %v1870
    %1880 = vmatmul.bf16.gmra.mxu0 %v1867
    %v1881 = vpop.f32.mrf.mxu0
    %v1882 = vadd.f32 0.0, %v1881
    %v1883 = vpop.f32.mrf.mxu0
    %1884 = vdwg.mxu0
    %1885 = vrot.lane.b32.xlu0 %v824, 104
    %v1886 = vpop.permute.xlu0 %1885
    %1887 = vrot.lane.b32.xlu0 %v829, 104
    %v1888 = vpop.permute.xlu0 %1887
    %v1890 = vsel %vm274, %v1886, 0
    %v1893 = vsel %vm274, %v1888, 0
    %1895 = vmatpush.bf16.xpose.msra.mxu0 0
    %1896 = vmatpush.bf16.xpose.msra.mxu0 0
    %1897 = vmatpush.bf16.xpose.msra.mxu0 0
    %1898 = vmatpush.bf16.xpose.msra.mxu0 0
    %1899 = vmatpush.bf16.xpose.msra.mxu0 0
    %1900 = vmatpush.bf16.xpose.msra.mxu0 0
    %1901 = vmatpush.bf16.xpose.msra.mxu0 0
    %1902 = vmatpush.bf16.xpose.msra.mxu0 %v1893
    %1903 = vmatmul.bf16.gmra.mxu0 %v1890
    %v1904 = vpop.f32.mrf.mxu0
    %v1905 = vadd.f32 0.0, %v1904
    %v1906 = vpop.f32.mrf.mxu0
    %1907 = vdwg.mxu0
    %1908 = vrot.lane.b32.xlu0 %v853, 104
    %v1909 = vpop.permute.xlu0 %1908
    %1910 = vrot.lane.b32.xlu0 %v858, 104
    %v1911 = vpop.permute.xlu0 %1910
    %v1913 = vsel %vm274, %v1909, 0
    %v1916 = vsel %vm274, %v1911, 0
    %1918 = vmatpush.bf16.xpose.msra.mxu0 0
    %1919 = vmatpush.bf16.xpose.msra.mxu0 0
    %1920 = vmatpush.bf16.xpose.msra.mxu0 0
    %1921 = vmatpush.bf16.xpose.msra.mxu0 0
    %1922 = vmatpush.bf16.xpose.msra.mxu0 0
    %1923 = vmatpush.bf16.xpose.msra.mxu0 0
    %1924 = vmatpush.bf16.xpose.msra.mxu0 0
    %1925 = vmatpush.bf16.xpose.msra.mxu0 %v1916
    %1926 = vmatmul.bf16.gmra.mxu0 %v1913
    %v1927 = vpop.f32.mrf.mxu0
    %v1928 = vadd.f32 0.0, %v1927
    %v1929 = vpop.f32.mrf.mxu0
    %1930 = vdwg.mxu0
    %1931 = vrot.lane.b32.xlu0 %v882, 104
    %v1932 = vpop.permute.xlu0 %1931
    %1933 = vrot.lane.b32.xlu0 %v887, 104
    %v1934 = vpop.permute.xlu0 %1933
    %v1936 = vsel %vm274, %v1932, 0
    %v1939 = vsel %vm274, %v1934, 0
    %1941 = vmatpush.bf16.xpose.msra.mxu0 0
    %1942 = vmatpush.bf16.xpose.msra.mxu0 0
    %1943 = vmatpush.bf16.xpose.msra.mxu0 0
    %1944 = vmatpush.bf16.xpose.msra.mxu0 0
    %1945 = vmatpush.bf16.xpose.msra.mxu0 0
    %1946 = vmatpush.bf16.xpose.msra.mxu0 0
    %1947 = vmatpush.bf16.xpose.msra.mxu0 0
    %1948 = vmatpush.bf16.xpose.msra.mxu0 %v1939
    %1949 = vmatmul.bf16.gmra.mxu0 %v1936
    %v1950 = vpop.f32.mrf.mxu0
    %v1951 = vadd.f32 0.0, %v1950
    %v1952 = vpop.f32.mrf.mxu0
    %1953 = vdwg.mxu0
    %1954 = vrot.lane.b32.xlu0 %v911, 104
    %v1955 = vpop.permute.xlu0 %1954
    %1956 = vrot.lane.b32.xlu0 %v916, 104
    %v1957 = vpop.permute.xlu0 %1956
    %v1959 = vsel %vm274, %v1955, 0
    %v1962 = vsel %vm274, %v1957, 0
    %1964 = vmatpush.bf16.xpose.msra.mxu0 0
    %1965 = vmatpush.bf16.xpose.msra.mxu0 0
    %1966 = vmatpush.bf16.xpose.msra.mxu0 0
    %1967 = vmatpush.bf16.xpose.msra.mxu0 0
    %1968 = vmatpush.bf16.xpose.msra.mxu0 0
    %1969 = vmatpush.bf16.xpose.msra.mxu0 0
    %1970 = vmatpush.bf16.xpose.msra.mxu0 0
    %1971 = vmatpush.bf16.xpose.msra.mxu0 %v1962
    %1972 = vmatmul.bf16.gmra.mxu0 %v1959
    %v1973 = vpop.f32.mrf.mxu0
    %v1974 = vadd.f32 0.0, %v1973
    %v1975 = vpop.f32.mrf.mxu0
    %1976 = vdwg.mxu0
    %v1977 = vsel %vm427, %v1813, -inf
    %1978 = vmax.xlane.f32.xlu0 %v1977
    %v1979 = vpop.xlane.xlu0 %1978
    %v1980 = vsel %vm427, %v1836, -inf
    %1981 = vmax.xlane.f32.xlu0 %v1980
    %v1982 = vpop.xlane.xlu0 %1981
    %v1983 = vsel %vm427, %v1859, -inf
    %1984 = vmax.xlane.f32.xlu0 %v1983
    %v1985 = vpop.xlane.xlu0 %1984
    %v1986 = vsel %vm427, %v1882, -inf
    %1987 = vmax.xlane.f32.xlu0 %v1986
    %v1988 = vpop.xlane.xlu0 %1987
    %v1989 = vsel %vm427, %v1905, -inf
    %1990 = vmax.xlane.f32.xlu0 %v1989
    %v1991 = vpop.xlane.xlu0 %1990
    %v1992 = vsel %vm427, %v1928, -inf
    %1993 = vmax.xlane.f32.xlu0 %v1992
    %v1994 = vpop.xlane.xlu0 %1993
    %v1995 = vsel %vm427, %v1951, -inf
    %1996 = vmax.xlane.f32.xlu0 %v1995
    %v1997 = vpop.xlane.xlu0 %1996
    %v1998 = vsel %vm427, %v1974, -inf
    %1999 = vmax.xlane.f32.xlu0 %v1998
    %v2000 = vpop.xlane.xlu0 %1999
    %v2001 = vsub.f32 %v1813, %v1979
    %v2002 = vsub.f32 %v1836, %v1982
    %v2003 = vsub.f32 %v1859, %v1985
    %v2004 = vsub.f32 %v1882, %v1988
    %v2005 = vsub.f32 %v1905, %v1991
    %v2006 = vsub.f32 %v1928, %v1994
    %v2007 = vsub.f32 %v1951, %v1997
    %v2008 = vsub.f32 %v1974, %v2000
    %v2009 = vmul.f32 %v2001, 1.442695
    %v2010 = vpow.pop %v2009
    %v2011 = vmul.f32 %v2002, 1.442695
    %v2012 = vpow.pop %v2011
    %v2013 = vmul.f32 %v2003, 1.442695
    %v2014 = vpow.pop %v2013
    %v2015 = vmul.f32 %v2004, 1.442695
    %v2016 = vpow.pop %v2015
    %v2017 = vmul.f32 %v2005, 1.442695
    %v2018 = vpow.pop %v2017
    %v2019 = vmul.f32 %v2006, 1.442695
    %v2020 = vpow.pop %v2019
    %v2021 = vmul.f32 %v2007, 1.442695
    %v2022 = vpow.pop %v2021
    %v2023 = vmul.f32 %v2008, 1.442695
    %v2024 = vpow.pop %v2023
    %v2025 = vsel %vm427, %v2010, 0.0
    %2026 = vadd.xlane.f32.xlu0 %v2025
    %v2027 = vpop.xlane.xlu0 %2026
    %v2028 = vsel %vm427, %v2012, 0.0
    %2029 = vadd.xlane.f32.xlu0 %v2028
    %v2030 = vpop.xlane.xlu0 %2029
    %v2031 = vsel %vm427, %v2014, 0.0
    %2032 = vadd.xlane.f32.xlu0 %v2031
    %v2033 = vpop.xlane.xlu0 %2032
    %v2034 = vsel %vm427, %v2016, 0.0
    %2035 = vadd.xlane.f32.xlu0 %v2034
    %v2036 = vpop.xlane.xlu0 %2035
    %v2037 = vsel %vm427, %v2018, 0.0
    %2038 = vadd.xlane.f32.xlu0 %v2037
    %v2039 = vpop.xlane.xlu0 %2038
    %v2040 = vsel %vm427, %v2020, 0.0
    %2041 = vadd.xlane.f32.xlu0 %v2040
    %v2042 = vpop.xlane.xlu0 %2041
    %v2043 = vsel %vm427, %v2022, 0.0
    %2044 = vadd.xlane.f32.xlu0 %v2043
    %v2045 = vpop.xlane.xlu0 %2044
    %v2046 = vsel %vm427, %v2024, 0.0
    %2047 = vadd.xlane.f32.xlu0 %v2046
    %v2048 = vpop.xlane.xlu0 %2047
    %v2049 = vrcp.pop %v2027
    %v2050 = vrcp.pop %v2030
    %v2051 = vrcp.pop %v2033
    %v2052 = vrcp.pop %v2036
    %v2053 = vrcp.pop %v2039
    %v2054 = vrcp.pop %v2042
    %v2055 = vrcp.pop %v2045
    %v2056 = vrcp.pop %v2048
    %v2057 = vmul.f32 %v2010, %v2049
    %v2058 = vmul.f32 %v2012, %v2050
    %v2059 = vmul.f32 %v2014, %v2051
    %v2060 = vmul.f32 %v2016, %v2052
    %v2061 = vmul.f32 %v2018, %v2053
    %v2062 = vmul.f32 %v2020, %v2054
    %v2063 = vmul.f32 %v2022, %v2055
    %v2064 = vmul.f32 %v2024, %v2056
    %v2065 = vpack.c.bf16 %v2057, %v2057
    %v2066 = vpack.c.bf16 %v2058, %v2058
    %v2067 = vpack.c.bf16 %v2059, %v2059
    %v2068 = vpack.c.bf16 %v2060, %v2060
    %v2069 = vpack.c.bf16 %v2061, %v2061
    %v2070 = vpack.c.bf16 %v2062, %v2062
    %v2071 = vpack.c.bf16 %v2063, %v2063
    %v2072 = vpack.c.bf16 %v2064, %v2064
    %2073 = vrot.lane.b32.xlu0 %v1036, 104
    %v2074 = vpop.permute.xlu0 %2073
    %v2076 = vsel %vm524, %v2065, 0
    %v2079 = vsel %vm528, %v2074, 0
    %2081 = vmatpush.bf16.msra.mxu0 0
    %2082 = vmatpush.bf16.msra.mxu0 0
    %2083 = vmatpush.bf16.msra.mxu0 0
    %2084 = vmatpush.bf16.msra.mxu0 0
    %2085 = vmatpush.bf16.msra.mxu0 0
    %2086 = vmatpush.bf16.msra.mxu0 0
    %2087 = vmatpush.bf16.msra.mxu0 0
    %2088 = vmatpush.bf16.msra.mxu0 %v2079
    %2089 = vmatmul.bf16.gmra.mxu0 %v2076
    %v2090 = vpop.f32.mrf.mxu0
    %v2091 = vadd.f32 0.0, %v2090
    %v2092 = vpop.f32.mrf.mxu0
    %2093 = vdwg.mxu0
    %2094 = vrot.lane.b32.xlu0 %v1060, 104
    %v2095 = vpop.permute.xlu0 %2094
    %v2097 = vsel %vm524, %v2066, 0
    %v2100 = vsel %vm528, %v2095, 0
    %2102 = vmatpush.bf16.msra.mxu0 0
    %2103 = vmatpush.bf16.msra.mxu0 0
    %2104 = vmatpush.bf16.msra.mxu0 0
    %2105 = vmatpush.bf16.msra.mxu0 0
    %2106 = vmatpush.bf16.msra.mxu0 0
    %2107 = vmatpush.bf16.msra.mxu0 0
    %2108 = vmatpush.bf16.msra.mxu0 0
    %2109 = vmatpush.bf16.msra.mxu0 %v2100
    %2110 = vmatmul.bf16.gmra.mxu0 %v2097
    %v2111 = vpop.f32.mrf.mxu0
    %v2112 = vadd.f32 0.0, %v2111
    %v2113 = vpop.f32.mrf.mxu0
    %2114 = vdwg.mxu0
    %2115 = vrot.lane.b32.xlu0 %v1084, 104
    %v2116 = vpop.permute.xlu0 %2115
    %v2118 = vsel %vm524, %v2067, 0
    %v2121 = vsel %vm528, %v2116, 0
    %2123 = vmatpush.bf16.msra.mxu0 0
    %2124 = vmatpush.bf16.msra.mxu0 0
    %2125 = vmatpush.bf16.msra.mxu0 0
    %2126 = vmatpush.bf16.msra.mxu0 0
    %2127 = vmatpush.bf16.msra.mxu0 0
    %2128 = vmatpush.bf16.msra.mxu0 0
    %2129 = vmatpush.bf16.msra.mxu0 0
    %2130 = vmatpush.bf16.msra.mxu0 %v2121
    %2131 = vmatmul.bf16.gmra.mxu0 %v2118
    %v2132 = vpop.f32.mrf.mxu0
    %v2133 = vadd.f32 0.0, %v2132
    %v2134 = vpop.f32.mrf.mxu0
    %2135 = vdwg.mxu0
    %2136 = vrot.lane.b32.xlu0 %v1108, 104
    %v2137 = vpop.permute.xlu0 %2136
    %v2139 = vsel %vm524, %v2068, 0
    %v2142 = vsel %vm528, %v2137, 0
    %2144 = vmatpush.bf16.msra.mxu0 0
    %2145 = vmatpush.bf16.msra.mxu0 0
    %2146 = vmatpush.bf16.msra.mxu0 0
    %2147 = vmatpush.bf16.msra.mxu0 0
    %2148 = vmatpush.bf16.msra.mxu0 0
    %2149 = vmatpush.bf16.msra.mxu0 0
    %2150 = vmatpush.bf16.msra.mxu0 0
    %2151 = vmatpush.bf16.msra.mxu0 %v2142
    %2152 = vmatmul.bf16.gmra.mxu0 %v2139
    %v2153 = vpop.f32.mrf.mxu0
    %v2154 = vadd.f32 0.0, %v2153
    %v2155 = vpop.f32.mrf.mxu0
    %2156 = vdwg.mxu0
    %2157 = vrot.lane.b32.xlu0 %v1132, 104
    %v2158 = vpop.permute.xlu0 %2157
    %v2160 = vsel %vm524, %v2069, 0
    %v2163 = vsel %vm528, %v2158, 0
    %2165 = vmatpush.bf16.msra.mxu0 0
    %2166 = vmatpush.bf16.msra.mxu0 0
    %2167 = vmatpush.bf16.msra.mxu0 0
    %2168 = vmatpush.bf16.msra.mxu0 0
    %2169 = vmatpush.bf16.msra.mxu0 0
    %2170 = vmatpush.bf16.msra.mxu0 0
    %2171 = vmatpush.bf16.msra.mxu0 0
    %2172 = vmatpush.bf16.msra.mxu0 %v2163
    %2173 = vmatmul.bf16.gmra.mxu0 %v2160
    %v2174 = vpop.f32.mrf.mxu0
    %v2175 = vadd.f32 0.0, %v2174
    %v2176 = vpop.f32.mrf.mxu0
    %2177 = vdwg.mxu0
    %2178 = vrot.lane.b32.xlu0 %v1156, 104
    %v2179 = vpop.permute.xlu0 %2178
    %v2181 = vsel %vm524, %v2070, 0
    %v2184 = vsel %vm528, %v2179, 0
    %2186 = vmatpush.bf16.msra.mxu0 0
    %2187 = vmatpush.bf16.msra.mxu0 0
    %2188 = vmatpush.bf16.msra.mxu0 0
    %2189 = vmatpush.bf16.msra.mxu0 0
    %2190 = vmatpush.bf16.msra.mxu0 0
    %2191 = vmatpush.bf16.msra.mxu0 0
    %2192 = vmatpush.bf16.msra.mxu0 0
    %2193 = vmatpush.bf16.msra.mxu0 %v2184
    %2194 = vmatmul.bf16.gmra.mxu0 %v2181
    %v2195 = vpop.f32.mrf.mxu0
    %v2196 = vadd.f32 0.0, %v2195
    %v2197 = vpop.f32.mrf.mxu0
    %2198 = vdwg.mxu0
    %2199 = vrot.lane.b32.xlu0 %v1180, 104
    %v2200 = vpop.permute.xlu0 %2199
    %v2202 = vsel %vm524, %v2071, 0
    %v2205 = vsel %vm528, %v2200, 0
    %2207 = vmatpush.bf16.msra.mxu0 0
    %2208 = vmatpush.bf16.msra.mxu0 0
    %2209 = vmatpush.bf16.msra.mxu0 0
    %2210 = vmatpush.bf16.msra.mxu0 0
    %2211 = vmatpush.bf16.msra.mxu0 0
    %2212 = vmatpush.bf16.msra.mxu0 0
    %2213 = vmatpush.bf16.msra.mxu0 0
    %2214 = vmatpush.bf16.msra.mxu0 %v2205
    %2215 = vmatmul.bf16.gmra.mxu0 %v2202
    %v2216 = vpop.f32.mrf.mxu0
    %v2217 = vadd.f32 0.0, %v2216
    %v2218 = vpop.f32.mrf.mxu0
    %2219 = vdwg.mxu0
    %2220 = vrot.lane.b32.xlu0 %v1204, 104
    %v2221 = vpop.permute.xlu0 %2220
    %v2223 = vsel %vm524, %v2072, 0
    %v2226 = vsel %vm528, %v2221, 0
    %2228 = vmatpush.bf16.msra.mxu0 0
    %2229 = vmatpush.bf16.msra.mxu0 0
    %2230 = vmatpush.bf16.msra.mxu0 0
    %2231 = vmatpush.bf16.msra.mxu0 0
    %2232 = vmatpush.bf16.msra.mxu0 0
    %2233 = vmatpush.bf16.msra.mxu0 0
    %2234 = vmatpush.bf16.msra.mxu0 0
    %2235 = vmatpush.bf16.msra.mxu0 %v2226
    %2236 = vmatmul.bf16.gmra.mxu0 %v2223
    %v2237 = vpop.f32.mrf.mxu0
    %v2238 = vadd.f32 0.0, %v2237
    %v2239 = vpop.f32.mrf.mxu0
    %2240 = vdwg.mxu0
    %2249 = vst [vmem:[#allocation1] ss:$4 sm:$0xff] %v2091
    %s2250 = scalar_lea.vmem [#allocation1], 1
    %2251 = vst [vmem:[%s2250] ss:$4 sm:$0xff] %v2112
    %s2252 = scalar_lea.vmem [#allocation1], 2
    %2253 = vst [vmem:[%s2252] ss:$4 sm:$0xff] %v2133
    %s2254 = scalar_lea.vmem [#allocation1], 3
    %2255 = vst [vmem:[%s2254] ss:$4 sm:$0xff] %v2154
    %s2256 = scalar_lea.vmem [#allocation1], 32
    %2257 = vst [vmem:[%s2256] ss:$4 sm:$0xff] %v2175
    %s2258 = scalar_lea.vmem [#allocation1], 33
    %2259 = vst [vmem:[%s2258] ss:$4 sm:$0xff] %v2196
    %s2260 = scalar_lea.vmem [#allocation1], 34
    %2261 = vst [vmem:[%s2260] ss:$4 sm:$0xff] %v2217
    %s2262 = scalar_lea.vmem [#allocation1], 35
    %2263 = vst [vmem:[%s2262] ss:$4 sm:$0xff] %v2238
    %v2264 = vld.sshfl [vmem:[#allocation1] sm:$0xff pattern:$0x73625140]
    %v2265 = vld.sshfl [vmem:[#allocation1 + $0x20] sm:$0xff pattern:$0x73625140]
    %v2268 = vpack.c.bf16 %v2265, %v2264
    %v2270 = vsel %vm274, %v2268, 0
    %v2273 = vsel %vm1257, %v205, 0
    %2275 = vmatpush.bf16.msra.mxu0 0
    %2276 = vmatpush.bf16.msra.mxu0 0
    %2277 = vmatpush.bf16.msra.mxu0 0
    %2278 = vmatpush.bf16.msra.mxu0 0
    %2279 = vmatpush.bf16.msra.mxu0 0
    %2280 = vmatpush.bf16.msra.mxu0 0
    %2281 = vmatpush.bf16.msra.mxu0 0
    %2282 = vmatpush.bf16.msra.mxu0 %v2273
    %2283 = vmatmul.bf16.gmra.mxu0 %v2270
    %v2284 = vpop.f32.mrf.mxu0
    %v2285 = vadd.f32 0.0, %v2284
    %v2286 = vpop.f32.mrf.mxu0
    %v2287 = vadd.f32 0.0, %v2286
    %2288 = vdwg.mxu0
    %v2289 = vadd.f32 %v1791, %v2285
    %v2290 = vadd.f32 %v1792, %v2287
    %v2291 = vperm.slane %v102, 3
    %v2292 = vadd.f32 %v2289, %v2291
    %v2293 = vadd.f32 %v2290, %v2291
    %v2294 = vadd.f32 %v100, %v2292
    %v2295 = vadd.f32 %v101, %v2293
    %v2296 = vsel %vm122, %v2294, 0.0
    %2297 = vadd.xlane.f32.xlu0 %v2296
    %v2298 = vpop.xlane.xlu0 %2297
    %v2299 = vsel %vm122, %v2295, 0.0
    %2300 = vadd.xlane.f32.xlu0 %v2299
    %v2301 = vpop.xlane.xlu0 %2300
    %v2302 = vrcp.pop 32.0
    %v2303 = vmul.f32 32.0, %v2302
    %v2304 = vsub.f32 1.0, %v2303
    %v2305 = vmul.f32 %v2302, %v2304
    %v2306 = vadd.f32 %v2302, %v2305
    %vm2307 = vweird.f32 %v2302
    %v2308 = vsel %vm2307, %v2302, %v2306
    %v2309 = vmul.f32 %v2298, %v2308
    %v2310 = vmul.f32 %v2301, %v2308
    %v2311 = vsub.f32 %v2294, %v2309
    %v2312 = vsub.f32 %v2295, %v2310
    %v2313 = vmul.f32 %v2311, %v2311
    %v2314 = vmul.f32 %v2312, %v2312
    %v2315 = vsel %vm122, %v2313, 0.0
    %2316 = vadd.xlane.f32.xlu0 %v2315
    %v2317 = vpop.xlane.xlu0 %2316
    %v2318 = vsel %vm122, %v2314, 0.0
    %2319 = vadd.xlane.f32.xlu0 %v2318
    %v2320 = vpop.xlane.xlu0 %2319
    %v2321 = vmul.f32 %v2317, %v2308
    %v2322 = vmul.f32 %v2320, %v2308
    %v2323 = vadd.f32 %v2321, 1e-05
    %v2324 = vadd.f32 %v2322, 1e-05
    %v2325 = vrsqrt.pop %v2323
    %v2326 = vmul.f32 %v2325, %v2323
    %v2327 = vmul.f32 %v2326, %v2325
    %v2328 = vmul.f32 0.5, %v2327
    %v2329 = vsub.f32 1.5, %v2328
    %v2330 = vmul.f32 %v2325, %v2329
    %vm2331 = vweird.f32 %v2323
    %vm2332 = vweird.f32 %v2325
    %vm2333 = vmor %vm2331, %vm2332
    %v2334 = vsel %vm2333, %v2325, %v2330
    %v2335 = vrsqrt.pop %v2324
    %v2336 = vmul.f32 %v2335, %v2324
    %v2337 = vmul.f32 %v2336, %v2335
    %v2338 = vmul.f32 0.5, %v2337
    %v2339 = vsub.f32 1.5, %v2338
    %v2340 = vmul.f32 %v2335, %v2339
    %vm2341 = vweird.f32 %v2324
    %vm2342 = vweird.f32 %v2335
    %vm2343 = vmor %vm2341, %vm2342
    %v2344 = vsel %vm2343, %v2335, %v2340
    %v2345 = vmul.f32 %v2311, %v2334
    %v2346 = vmul.f32 %v2312, %v2344
    %v2347 = vperm.slane %v102, 4
    %v2348 = vmul.f32 %v2345, %v2347
    %v2349 = vmul.f32 %v2346, %v2347
    %v2350 = vperm.slane %v102, 5
    %v2351 = vadd.f32 %v2348, %v2350
    %v2352 = vadd.f32 %v2349, %v2350
    %v2353 = vpack.c.bf16 %v2352, %v2351
    %v2354 = vld [vmem:[#allocation7] sm:$0xf]
    %v2355 = vld [vmem:[#allocation7 + $0x4] sm:$0xf]
    %v2356 = vld [vmem:[#allocation7 + $0x8] sm:$0xf]
    %v2357 = vld [vmem:[#allocation7 + $0xc] sm:$0xf]
    %v2358 = vperm.slane %v102, 6
    %v2363 = vunpack.c.l.b16 %v2354
    %v2364 = vunpack.c.l.b16 %v2355
    %v2365 = vunpack.c.l.b16 %v2356
    %v2366 = vunpack.c.l.b16 %v2357
    %v2367 = vpack.c.b16 %v2364, %v2363
    %v2368 = vpack.c.b16 %v2366, %v2365
    %v2372 = vsel %vm122, %v2353, 0
    %2374 = vmatpush.bf16.msra.mxu0 0
    %2375 = vmatpush.bf16.msra.mxu0 0
    %2376 = vmatpush.bf16.msra.mxu0 0
    %2377 = vmatpush.bf16.msra.mxu0 0
    %2378 = vmatpush.bf16.msra.mxu0 0
    %2379 = vmatpush.bf16.msra.mxu0 0
    %2380 = vmatpush.bf16.msra.mxu0 %v2368
    %2381 = vmatpush.bf16.msra.mxu0 %v2367
    %2382 = vmatmul.bf16.gmra.mxu0 %v2372
    %v2383 = vpop.f32.mrf.mxu0
    %v2384 = vadd.f32 %v2358, %v2383
    %v2385 = vpop.f32.mrf.mxu0
    %v2386 = vadd.f32 %v2358, %v2385
    %2387 = vdwg.mxu0
    %v2388 = vmax.f32 %v2384, 0.0
    %v2389 = vmax.f32 %v2386, 0.0
    %v2390 = vpack.c.bf16 %v2389, %v2388
    %v2391 = vld [vmem:[#allocation8] sm:$0xf]
    %v2392 = vld [vmem:[#allocation8 + $0x4] sm:$0xf]
    %v2393 = vld [vmem:[#allocation8 + $0x8] sm:$0xf]
    %v2394 = vld [vmem:[#allocation8 + $0xc] sm:$0xf]
    %v2395 = vperm.slane %v102, 7
    %v2400 = vunpack.c.l.b16 %v2391
    %v2401 = vunpack.c.l.b16 %v2392
    %v2402 = vunpack.c.l.b16 %v2393
    %v2403 = vunpack.c.l.b16 %v2394
    %v2404 = vpack.c.b16 %v2401, %v2400
    %v2405 = vpack.c.b16 %v2403, %v2402
    %v2409 = vsel %vm122, %v2390, 0
    %2411 = vmatpush.bf16.msra.mxu0 0
    %2412 = vmatpush.bf16.msra.mxu0 0
    %2413 = vmatpush.bf16.msra.mxu0 0
    %2414 = vmatpush.bf16.msra.mxu0 0
    %2415 = vmatpush.bf16.msra.mxu0 0
    %2416 = vmatpush.bf16.msra.mxu0 0
    %2417 = vmatpush.bf16.msra.mxu0 %v2405
    %2418 = vmatpush.bf16.msra.mxu0 %v2404
    %2419 = vmatmul.bf16.gmra.mxu0 %v2409
    %v2420 = vpop.f32.mrf.mxu0
    %v2421 = vadd.f32 %v2395, %v2420
    %v2422 = vpop.f32.mrf.mxu0
    %v2423 = vadd.f32 %v2395, %v2422
    %2424 = vdwg.mxu0
    %v2425 = vadd.f32 %v2351, %v2421
    %v2426 = vadd.f32 %v2352, %v2423
    %v2427 = vsel %vm122, %v2425, 0.0
    %2428 = vadd.xlane.f32.xlu0 %v2427
    %v2429 = vpop.xlane.xlu0 %2428
    %v2430 = vsel %vm122, %v2426, 0.0
    %2431 = vadd.xlane.f32.xlu0 %v2430
    %v2432 = vpop.xlane.xlu0 %2431
    %v2433 = vmul.f32 %v2429, %v2308
    %v2434 = vmul.f32 %v2432, %v2308
    %v2435 = vsub.f32 %v2425, %v2433
    %v2436 = vsub.f32 %v2426, %v2434
    %v2437 = vmul.f32 %v2435, %v2435
    %v2438 = vmul.f32 %v2436, %v2436
    %v2439 = vsel %vm122, %v2437, 0.0
    %2440 = vadd.xlane.f32.xlu0 %v2439
    %v2441 = vpop.xlane.xlu0 %2440
    %v2442 = vsel %vm122, %v2438, 0.0
    %2443 = vadd.xlane.f32.xlu0 %v2442
    %v2444 = vpop.xlane.xlu0 %2443
    %v2445 = vmul.f32 %v2441, %v2308
    %v2446 = vmul.f32 %v2444, %v2308
    %v2447 = vadd.f32 %v2445, 1e-05
    %v2448 = vadd.f32 %v2446, 1e-05
    %v2449 = vrsqrt.pop %v2447
    %v2450 = vmul.f32 %v2449, %v2447
    %v2451 = vmul.f32 %v2450, %v2449
    %v2452 = vmul.f32 0.5, %v2451
    %v2453 = vsub.f32 1.5, %v2452
    %v2454 = vmul.f32 %v2449, %v2453
    %vm2455 = vweird.f32 %v2447
    %vm2456 = vweird.f32 %v2449
    %vm2457 = vmor %vm2455, %vm2456
    %v2458 = vsel %vm2457, %v2449, %v2454
    %v2459 = vrsqrt.pop %v2448
    %v2460 = vmul.f32 %v2459, %v2448
    %v2461 = vmul.f32 %v2460, %v2459
    %v2462 = vmul.f32 0.5, %v2461
    %v2463 = vsub.f32 1.5, %v2462
    %v2464 = vmul.f32 %v2459, %v2463
    %vm2465 = vweird.f32 %v2448
    %vm2466 = vweird.f32 %v2459
    %vm2467 = vmor %vm2465, %vm2466
    %v2468 = vsel %vm2467, %v2459, %v2464
    %v2469 = vmul.f32 %v2435, %v2458
    %v2470 = vmul.f32 %v2436, %v2468
    %v2471 = vperm.slane %v103, 0
    %v2472 = vmul.f32 %v2469, %v2471
    %v2473 = vmul.f32 %v2470, %v2471
    %v2474 = vperm.slane %v103, 1
    %v2475 = vadd.f32 %v2472, %v2474
    %v2476 = vadd.f32 %v2473, %v2474
    %s2477 = scalar_lea.vmem %s7, 16
    %v2478 = vld [vmem:[%s2477] sm:$0xff]
    %v2479 = vld [vmem:[%s2477 + $0x8] sm:$0x3]
    %v2480 = vpack.c.bf16 %v2476, %v2475
    %s2481 = scalar_lea.vmem %s1, 16
    %v2482 = vld [vmem:[%s2481] sm:$0xf]
    %v2483 = vld [vmem:[%s2481 + $0x4] sm:$0xf]
    %v2484 = vld [vmem:[%s2481 + $0x8] sm:$0xf]
    %v2485 = vld [vmem:[%s2481 + $0xc] sm:$0xf]
    %v2486 = vperm.slane %v2478, 0
    %v2491 = vunpack.c.l.b16 %v2482
    %v2492 = vunpack.c.l.b16 %v2483
    %v2493 = vunpack.c.l.b16 %v2484
    %v2494 = vunpack.c.l.b16 %v2485
    %v2495 = vpack.c.b16 %v2492, %v2491
    %v2496 = vpack.c.b16 %v2494, %v2493
    %v2500 = vsel %vm122, %v2480, 0
    %2502 = vmatpush.bf16.msra.mxu0 0
    %2503 = vmatpush.bf16.msra.mxu0 0
    %2504 = vmatpush.bf16.msra.mxu0 0
    %2505 = vmatpush.bf16.msra.mxu0 0
    %2506 = vmatpush.bf16.msra.mxu0 0
    %2507 = vmatpush.bf16.msra.mxu0 0
    %2508 = vmatpush.bf16.msra.mxu0 %v2496
    %2509 = vmatpush.bf16.msra.mxu0 %v2495
    %2510 = vmatmul.bf16.gmra.mxu0 %v2500
    %v2511 = vpop.f32.mrf.mxu0
    %v2512 = vadd.f32 %v2486, %v2511
    %v2513 = vpop.f32.mrf.mxu0
    %v2514 = vadd.f32 %v2486, %v2513
    %2515 = vdwg.mxu0
    %s2516 = scalar_lea.vmem %s2, 16
    %v2517 = vld [vmem:[%s2516] sm:$0xf]
    %v2518 = vld [vmem:[%s2516 + $0x4] sm:$0xf]
    %v2519 = vld [vmem:[%s2516 + $0x8] sm:$0xf]
    %v2520 = vld [vmem:[%s2516 + $0xc] sm:$0xf]
    %v2521 = vperm.slane %v2478, 1
    %v2526 = vunpack.c.l.b16 %v2517
    %v2527 = vunpack.c.l.b16 %v2518
    %v2528 = vunpack.c.l.b16 %v2519
    %v2529 = vunpack.c.l.b16 %v2520
    %v2530 = vpack.c.b16 %v2527, %v2526
    %v2531 = vpack.c.b16 %v2529, %v2528
    %2534 = vmatpush.bf16.msra.mxu0 0
    %2535 = vmatpush.bf16.msra.mxu0 0
    %2536 = vmatpush.bf16.msra.mxu0 0
    %2537 = vmatpush.bf16.msra.mxu0 0
    %2538 = vmatpush.bf16.msra.mxu0 0
    %2539 = vmatpush.bf16.msra.mxu0 0
    %2540 = vmatpush.bf16.msra.mxu0 %v2531
    %2541 = vmatpush.bf16.msra.mxu0 %v2530
    %2542 = vmatmul.bf16.gmra.mxu0 %v2500
    %v2543 = vpop.f32.mrf.mxu0
    %v2544 = vadd.f32 %v2521, %v2543
    %v2545 = vpop.f32.mrf.mxu0
    %v2546 = vadd.f32 %v2521, %v2545
    %2547 = vdwg.mxu0
    %s2548 = scalar_lea.vmem [#allocation2], 16
    %v2549 = vld [vmem:[%s2548] sm:$0xf]
    %v2550 = vld [vmem:[%s2548 + $0x4] sm:$0xf]
    %v2551 = vld [vmem:[%s2548 + $0x8] sm:$0xf]
    %v2552 = vld [vmem:[%s2548 + $0xc] sm:$0xf]
    %v2553 = vperm.slane %v2478, 2
    %v2558 = vunpack.c.l.b16 %v2549
    %v2559 = vunpack.c.l.b16 %v2550
    %v2560 = vunpack.c.l.b16 %v2551
    %v2561 = vunpack.c.l.b16 %v2552
    %v2562 = vpack.c.b16 %v2559, %v2558
    %v2563 = vpack.c.b16 %v2561, %v2560
    %2566 = vmatpush.bf16.msra.mxu0 0
    %2567 = vmatpush.bf16.msra.mxu0 0
    %2568 = vmatpush.bf16.msra.mxu0 0
    %2569 = vmatpush.bf16.msra.mxu0 0
    %2570 = vmatpush.bf16.msra.mxu0 0
    %2571 = vmatpush.bf16.msra.mxu0 0
    %2572 = vmatpush.bf16.msra.mxu0 %v2563
    %2573 = vmatpush.bf16.msra.mxu0 %v2562
    %2574 = vmatmul.bf16.gmra.mxu0 %v2500
    %v2575 = vpop.f32.mrf.mxu0
    %v2576 = vadd.f32 %v2553, %v2575
    %v2577 = vpop.f32.mrf.mxu0
    %v2578 = vadd.f32 %v2553, %v2577
    %2579 = vdwg.mxu0
    %s2580 = scalar_lea.vmem [#allocation5], 16
    %v2581 = vld [vmem:[%s2580] sm:$0xf]
    %v2582 = vld [vmem:[%s2580 + $0x4] sm:$0xf]
    %v2583 = vld [vmem:[%s2580 + $0x8] sm:$0xf]
    %v2584 = vld [vmem:[%s2580 + $0xc] sm:$0xf]
    %v2585 = vmul.f32 %v2512, 0.35355338
    %v2586 = vmul.f32 %v2514, 0.35355338
    %v2589 = vrot.slane %v2585, 2
    %v2590 = vrot.slane %v2585, 4
    %v2591 = vrot.slane %v2585, 6
    %v2592 = vrot.slane %v2586, 2
    %v2593 = vrot.slane %v2586, 4
    %v2594 = vrot.slane %v2586, 6
    %v2601 = vpack.c.bf16 %v2585, %v2585
    %v2602 = vpack.c.bf16 %v2589, %v2589
    %v2603 = vpack.c.bf16 %v2590, %v2590
    %v2604 = vpack.c.bf16 %v2591, %v2591
    %v2605 = vpack.c.bf16 %v2586, %v2586
    %v2606 = vpack.c.bf16 %v2592, %v2592
    %v2607 = vpack.c.bf16 %v2593, %v2593
    %v2608 = vpack.c.bf16 %v2594, %v2594
    %v2611 = vrot.slane %v2544, 2
    %v2612 = vrot.slane %v2544, 4
    %v2613 = vrot.slane %v2544, 6
    %v2614 = vrot.slane %v2546, 2
    %v2615 = vrot.slane %v2546, 4
    %v2616 = vrot.slane %v2546, 6
    %v2623 = vpack.c.bf16 %v2544, %v2544
    %v2624 = vpack.c.bf16 %v2611, %v2611
    %v2625 = vpack.c.bf16 %v2612, %v2612
    %v2626 = vpack.c.bf16 %v2613, %v2613
    %v2627 = vpack.c.bf16 %v2546, %v2546
    %v2628 = vpack.c.bf16 %v2614, %v2614
    %v2629 = vpack.c.bf16 %v2615, %v2615
    %v2630 = vpack.c.bf16 %v2616, %v2616
    %v2633 = vrot.slane %v2576, 2
    %v2634 = vrot.slane %v2576, 4
    %v2635 = vrot.slane %v2576, 6
    %v2636 = vrot.slane %v2578, 2
    %v2637 = vrot.slane %v2578, 4
    %v2638 = vrot.slane %v2578, 6
    %v2645 = vpack.c.bf16 %v2576, %v2576
    %v2646 = vpack.c.bf16 %v2633, %v2633
    %v2647 = vpack.c.bf16 %v2634, %v2634
    %v2648 = vpack.c.bf16 %v2635, %v2635
    %v2649 = vpack.c.bf16 %v2578, %v2578
    %v2650 = vpack.c.bf16 %v2636, %v2636
    %v2651 = vpack.c.bf16 %v2637, %v2637
    %v2652 = vpack.c.bf16 %v2638, %v2638
    %v2654 = vsel %vm274, %v2601, 0
    %v2657 = vsel %vm274, %v2623, 0
    %2659 = vmatpush.bf16.xpose.msra.mxu0 0
    %2660 = vmatpush.bf16.xpose.msra.mxu0 0
    %2661 = vmatpush.bf16.xpose.msra.mxu0 0
    %2662 = vmatpush.bf16.xpose.msra.mxu0 0
    %2663 = vmatpush.bf16.xpose.msra.mxu0 0
    %2664 = vmatpush.bf16.xpose.msra.mxu0 0
    %2665 = vmatpush.bf16.xpose.msra.mxu0 0
    %2666 = vmatpush.bf16.xpose.msra.mxu0 %v2657
    %2667 = vmatmul.bf16.gmra.mxu0 %v2654
    %v2668 = vpop.f32.mrf.mxu0
    %v2669 = vadd.f32 0.0, %v2668
    %v2670 = vpop.f32.mrf.mxu0
    %2671 = vdwg.mxu0
    %v2673 = vsel %vm274, %v2602, 0
    %v2676 = vsel %vm274, %v2624, 0
    %2678 = vmatpush.bf16.xpose.msra.mxu0 0
    %2679 = vmatpush.bf16.xpose.msra.mxu0 0
    %2680 = vmatpush.bf16.xpose.msra.mxu0 0
    %2681 = vmatpush.bf16.xpose.msra.mxu0 0
    %2682 = vmatpush.bf16.xpose.msra.mxu0 0
    %2683 = vmatpush.bf16.xpose.msra.mxu0 0
    %2684 = vmatpush.bf16.xpose.msra.mxu0 0
    %2685 = vmatpush.bf16.xpose.msra.mxu0 %v2676
    %2686 = vmatmul.bf16.gmra.mxu0 %v2673
    %v2687 = vpop.f32.mrf.mxu0
    %v2688 = vadd.f32 0.0, %v2687
    %v2689 = vpop.f32.mrf.mxu0
    %2690 = vdwg.mxu0
    %v2692 = vsel %vm274, %v2603, 0
    %v2695 = vsel %vm274, %v2625, 0
    %2697 = vmatpush.bf16.xpose.msra.mxu0 0
    %2698 = vmatpush.bf16.xpose.msra.mxu0 0
    %2699 = vmatpush.bf16.xpose.msra.mxu0 0
    %2700 = vmatpush.bf16.xpose.msra.mxu0 0
    %2701 = vmatpush.bf16.xpose.msra.mxu0 0
    %2702 = vmatpush.bf16.xpose.msra.mxu0 0
    %2703 = vmatpush.bf16.xpose.msra.mxu0 0
    %2704 = vmatpush.bf16.xpose.msra.mxu0 %v2695
    %2705 = vmatmul.bf16.gmra.mxu0 %v2692
    %v2706 = vpop.f32.mrf.mxu0
    %v2707 = vadd.f32 0.0, %v2706
    %v2708 = vpop.f32.mrf.mxu0
    %2709 = vdwg.mxu0
    %v2711 = vsel %vm274, %v2604, 0
    %v2714 = vsel %vm274, %v2626, 0
    %2716 = vmatpush.bf16.xpose.msra.mxu0 0
    %2717 = vmatpush.bf16.xpose.msra.mxu0 0
    %2718 = vmatpush.bf16.xpose.msra.mxu0 0
    %2719 = vmatpush.bf16.xpose.msra.mxu0 0
    %2720 = vmatpush.bf16.xpose.msra.mxu0 0
    %2721 = vmatpush.bf16.xpose.msra.mxu0 0
    %2722 = vmatpush.bf16.xpose.msra.mxu0 0
    %2723 = vmatpush.bf16.xpose.msra.mxu0 %v2714
    %2724 = vmatmul.bf16.gmra.mxu0 %v2711
    %v2725 = vpop.f32.mrf.mxu0
    %v2726 = vadd.f32 0.0, %v2725
    %v2727 = vpop.f32.mrf.mxu0
    %2728 = vdwg.mxu0
    %v2730 = vsel %vm274, %v2605, 0
    %v2733 = vsel %vm274, %v2627, 0
    %2735 = vmatpush.bf16.xpose.msra.mxu0 0
    %2736 = vmatpush.bf16.xpose.msra.mxu0 0
    %2737 = vmatpush.bf16.xpose.msra.mxu0 0
    %2738 = vmatpush.bf16.xpose.msra.mxu0 0
    %2739 = vmatpush.bf16.xpose.msra.mxu0 0
    %2740 = vmatpush.bf16.xpose.msra.mxu0 0
    %2741 = vmatpush.bf16.xpose.msra.mxu0 0
    %2742 = vmatpush.bf16.xpose.msra.mxu0 %v2733
    %2743 = vmatmul.bf16.gmra.mxu0 %v2730
    %v2744 = vpop.f32.mrf.mxu0
    %v2745 = vadd.f32 0.0, %v2744
    %v2746 = vpop.f32.mrf.mxu0
    %2747 = vdwg.mxu0
    %v2749 = vsel %vm274, %v2606, 0
    %v2752 = vsel %vm274, %v2628, 0
    %2754 = vmatpush.bf16.xpose.msra.mxu0 0
    %2755 = vmatpush.bf16.xpose.msra.mxu0 0
    %2756 = vmatpush.bf16.xpose.msra.mxu0 0
    %2757 = vmatpush.bf16.xpose.msra.mxu0 0
    %2758 = vmatpush.bf16.xpose.msra.mxu0 0
    %2759 = vmatpush.bf16.xpose.msra.mxu0 0
    %2760 = vmatpush.bf16.xpose.msra.mxu0 0
    %2761 = vmatpush.bf16.xpose.msra.mxu0 %v2752
    %2762 = vmatmul.bf16.gmra.mxu0 %v2749
    %v2763 = vpop.f32.mrf.mxu0
    %v2764 = vadd.f32 0.0, %v2763
    %v2765 = vpop.f32.mrf.mxu0
    %2766 = vdwg.mxu0
    %v2768 = vsel %vm274, %v2607, 0
    %v2771 = vsel %vm274, %v2629, 0
    %2773 = vmatpush.bf16.xpose.msra.mxu0 0
    %2774 = vmatpush.bf16.xpose.msra.mxu0 0
    %2775 = vmatpush.bf16.xpose.msra.mxu0 0
    %2776 = vmatpush.bf16.xpose.msra.mxu0 0
    %2777 = vmatpush.bf16.xpose.msra.mxu0 0
    %2778 = vmatpush.bf16.xpose.msra.mxu0 0
    %2779 = vmatpush.bf16.xpose.msra.mxu0 0
    %2780 = vmatpush.bf16.xpose.msra.mxu0 %v2771
    %2781 = vmatmul.bf16.gmra.mxu0 %v2768
    %v2782 = vpop.f32.mrf.mxu0
    %v2783 = vadd.f32 0.0, %v2782
    %v2784 = vpop.f32.mrf.mxu0
    %2785 = vdwg.mxu0
    %v2787 = vsel %vm274, %v2608, 0
    %v2790 = vsel %vm274, %v2630, 0
    %2792 = vmatpush.bf16.xpose.msra.mxu0 0
    %2793 = vmatpush.bf16.xpose.msra.mxu0 0
    %2794 = vmatpush.bf16.xpose.msra.mxu0 0
    %2795 = vmatpush.bf16.xpose.msra.mxu0 0
    %2796 = vmatpush.bf16.xpose.msra.mxu0 0
    %2797 = vmatpush.bf16.xpose.msra.mxu0 0
    %2798 = vmatpush.bf16.xpose.msra.mxu0 0
    %2799 = vmatpush.bf16.xpose.msra.mxu0 %v2790
    %2800 = vmatmul.bf16.gmra.mxu0 %v2787
    %v2801 = vpop.f32.mrf.mxu0
    %v2802 = vadd.f32 0.0, %v2801
    %v2803 = vpop.f32.mrf.mxu0
    %2804 = vdwg.mxu0
    %v2805 = vsel %vm427, %v2669, -inf
    %2806 = vmax.xlane.f32.xlu0 %v2805
    %v2807 = vpop.xlane.xlu0 %2806
    %v2808 = vsel %vm427, %v2688, -inf
    %2809 = vmax.xlane.f32.xlu0 %v2808
    %v2810 = vpop.xlane.xlu0 %2809
    %v2811 = vsel %vm427, %v2707, -inf
    %2812 = vmax.xlane.f32.xlu0 %v2811
    %v2813 = vpop.xlane.xlu0 %2812
    %v2814 = vsel %vm427, %v2726, -inf
    %2815 = vmax.xlane.f32.xlu0 %v2814
    %v2816 = vpop.xlane.xlu0 %2815
    %v2817 = vsel %vm427, %v2745, -inf
    %2818 = vmax.xlane.f32.xlu0 %v2817
    %v2819 = vpop.xlane.xlu0 %2818
    %v2820 = vsel %vm427, %v2764, -inf
    %2821 = vmax.xlane.f32.xlu0 %v2820
    %v2822 = vpop.xlane.xlu0 %2821
    %v2823 = vsel %vm427, %v2783, -inf
    %2824 = vmax.xlane.f32.xlu0 %v2823
    %v2825 = vpop.xlane.xlu0 %2824
    %v2826 = vsel %vm427, %v2802, -inf
    %2827 = vmax.xlane.f32.xlu0 %v2826
    %v2828 = vpop.xlane.xlu0 %2827
    %v2829 = vsub.f32 %v2669, %v2807
    %v2830 = vsub.f32 %v2688, %v2810
    %v2831 = vsub.f32 %v2707, %v2813
    %v2832 = vsub.f32 %v2726, %v2816
    %v2833 = vsub.f32 %v2745, %v2819
    %v2834 = vsub.f32 %v2764, %v2822
    %v2835 = vsub.f32 %v2783, %v2825
    %v2836 = vsub.f32 %v2802, %v2828
    %v2837 = vmul.f32 %v2829, 1.442695
    %v2838 = vpow.pop %v2837
    %v2839 = vmul.f32 %v2830, 1.442695
    %v2840 = vpow.pop %v2839
    %v2841 = vmul.f32 %v2831, 1.442695
    %v2842 = vpow.pop %v2841
    %v2843 = vmul.f32 %v2832, 1.442695
    %v2844 = vpow.pop %v2843
    %v2845 = vmul.f32 %v2833, 1.442695
    %v2846 = vpow.pop %v2845
    %v2847 = vmul.f32 %v2834, 1.442695
    %v2848 = vpow.pop %v2847
    %v2849 = vmul.f32 %v2835, 1.442695
    %v2850 = vpow.pop %v2849
    %v2851 = vmul.f32 %v2836, 1.442695
    %v2852 = vpow.pop %v2851
    %v2853 = vsel %vm427, %v2838, 0.0
    %2854 = vadd.xlane.f32.xlu0 %v2853
    %v2855 = vpop.xlane.xlu0 %2854
    %v2856 = vsel %vm427, %v2840, 0.0
    %2857 = vadd.xlane.f32.xlu0 %v2856
    %v2858 = vpop.xlane.xlu0 %2857
    %v2859 = vsel %vm427, %v2842, 0.0
    %2860 = vadd.xlane.f32.xlu0 %v2859
    %v2861 = vpop.xlane.xlu0 %2860
    %v2862 = vsel %vm427, %v2844, 0.0
    %2863 = vadd.xlane.f32.xlu0 %v2862
    %v2864 = vpop.xlane.xlu0 %2863
    %v2865 = vsel %vm427, %v2846, 0.0
    %2866 = vadd.xlane.f32.xlu0 %v2865
    %v2867 = vpop.xlane.xlu0 %2866
    %v2868 = vsel %vm427, %v2848, 0.0
    %2869 = vadd.xlane.f32.xlu0 %v2868
    %v2870 = vpop.xlane.xlu0 %2869
    %v2871 = vsel %vm427, %v2850, 0.0
    %2872 = vadd.xlane.f32.xlu0 %v2871
    %v2873 = vpop.xlane.xlu0 %2872
    %v2874 = vsel %vm427, %v2852, 0.0
    %2875 = vadd.xlane.f32.xlu0 %v2874
    %v2876 = vpop.xlane.xlu0 %2875
    %v2877 = vrcp.pop %v2855
    %v2878 = vrcp.pop %v2858
    %v2879 = vrcp.pop %v2861
    %v2880 = vrcp.pop %v2864
    %v2881 = vrcp.pop %v2867
    %v2882 = vrcp.pop %v2870
    %v2883 = vrcp.pop %v2873
    %v2884 = vrcp.pop %v2876
    %v2885 = vmul.f32 %v2838, %v2877
    %v2886 = vmul.f32 %v2840, %v2878
    %v2887 = vmul.f32 %v2842, %v2879
    %v2888 = vmul.f32 %v2844, %v2880
    %v2889 = vmul.f32 %v2846, %v2881
    %v2890 = vmul.f32 %v2848, %v2882
    %v2891 = vmul.f32 %v2850, %v2883
    %v2892 = vmul.f32 %v2852, %v2884
    %v2893 = vpack.c.bf16 %v2885, %v2885
    %v2894 = vpack.c.bf16 %v2886, %v2886
    %v2895 = vpack.c.bf16 %v2887, %v2887
    %v2896 = vpack.c.bf16 %v2888, %v2888
    %v2897 = vpack.c.bf16 %v2889, %v2889
    %v2898 = vpack.c.bf16 %v2890, %v2890
    %v2899 = vpack.c.bf16 %v2891, %v2891
    %v2900 = vpack.c.bf16 %v2892, %v2892
    %v2902 = vsel %vm524, %v2893, 0
    %v2905 = vsel %vm528, %v2645, 0
    %2907 = vmatpush.bf16.msra.mxu0 0
    %2908 = vmatpush.bf16.msra.mxu0 0
    %2909 = vmatpush.bf16.msra.mxu0 0
    %2910 = vmatpush.bf16.msra.mxu0 0
    %2911 = vmatpush.bf16.msra.mxu0 0
    %2912 = vmatpush.bf16.msra.mxu0 0
    %2913 = vmatpush.bf16.msra.mxu0 0
    %2914 = vmatpush.bf16.msra.mxu0 %v2905
    %2915 = vmatmul.bf16.gmra.mxu0 %v2902
    %v2916 = vpop.f32.mrf.mxu0
    %v2917 = vadd.f32 0.0, %v2916
    %v2918 = vpop.f32.mrf.mxu0
    %2919 = vdwg.mxu0
    %v2921 = vsel %vm524, %v2894, 0
    %v2924 = vsel %vm528, %v2646, 0
    %2926 = vmatpush.bf16.msra.mxu0 0
    %2927 = vmatpush.bf16.msra.mxu0 0
    %2928 = vmatpush.bf16.msra.mxu0 0
    %2929 = vmatpush.bf16.msra.mxu0 0
    %2930 = vmatpush.bf16.msra.mxu0 0
    %2931 = vmatpush.bf16.msra.mxu0 0
    %2932 = vmatpush.bf16.msra.mxu0 0
    %2933 = vmatpush.bf16.msra.mxu0 %v2924
    %2934 = vmatmul.bf16.gmra.mxu0 %v2921
    %v2935 = vpop.f32.mrf.mxu0
    %v2936 = vadd.f32 0.0, %v2935
    %v2937 = vpop.f32.mrf.mxu0
    %2938 = vdwg.mxu0
    %v2940 = vsel %vm524, %v2895, 0
    %v2943 = vsel %vm528, %v2647, 0
    %2945 = vmatpush.bf16.msra.mxu0 0
    %2946 = vmatpush.bf16.msra.mxu0 0
    %2947 = vmatpush.bf16.msra.mxu0 0
    %2948 = vmatpush.bf16.msra.mxu0 0
    %2949 = vmatpush.bf16.msra.mxu0 0
    %2950 = vmatpush.bf16.msra.mxu0 0
    %2951 = vmatpush.bf16.msra.mxu0 0
    %2952 = vmatpush.bf16.msra.mxu0 %v2943
    %2953 = vmatmul.bf16.gmra.mxu0 %v2940
    %v2954 = vpop.f32.mrf.mxu0
    %v2955 = vadd.f32 0.0, %v2954
    %v2956 = vpop.f32.mrf.mxu0
    %2957 = vdwg.mxu0
    %v2959 = vsel %vm524, %v2896, 0
    %v2962 = vsel %vm528, %v2648, 0
    %2964 = vmatpush.bf16.msra.mxu0 0
    %2965 = vmatpush.bf16.msra.mxu0 0
    %2966 = vmatpush.bf16.msra.mxu0 0
    %2967 = vmatpush.bf16.msra.mxu0 0
    %2968 = vmatpush.bf16.msra.mxu0 0
    %2969 = vmatpush.bf16.msra.mxu0 0
    %2970 = vmatpush.bf16.msra.mxu0 0
    %2971 = vmatpush.bf16.msra.mxu0 %v2962
    %2972 = vmatmul.bf16.gmra.mxu0 %v2959
    %v2973 = vpop.f32.mrf.mxu0
    %v2974 = vadd.f32 0.0, %v2973
    %v2975 = vpop.f32.mrf.mxu0
    %2976 = vdwg.mxu0
    %v2978 = vsel %vm524, %v2897, 0
    %v2981 = vsel %vm528, %v2649, 0
    %2983 = vmatpush.bf16.msra.mxu0 0
    %2984 = vmatpush.bf16.msra.mxu0 0
    %2985 = vmatpush.bf16.msra.mxu0 0
    %2986 = vmatpush.bf16.msra.mxu0 0
    %2987 = vmatpush.bf16.msra.mxu0 0
    %2988 = vmatpush.bf16.msra.mxu0 0
    %2989 = vmatpush.bf16.msra.mxu0 0
    %2990 = vmatpush.bf16.msra.mxu0 %v2981
    %2991 = vmatmul.bf16.gmra.mxu0 %v2978
    %v2992 = vpop.f32.mrf.mxu0
    %v2993 = vadd.f32 0.0, %v2992
    %v2994 = vpop.f32.mrf.mxu0
    %2995 = vdwg.mxu0
    %v2997 = vsel %vm524, %v2898, 0
    %v3000 = vsel %vm528, %v2650, 0
    %3002 = vmatpush.bf16.msra.mxu0 0
    %3003 = vmatpush.bf16.msra.mxu0 0
    %3004 = vmatpush.bf16.msra.mxu0 0
    %3005 = vmatpush.bf16.msra.mxu0 0
    %3006 = vmatpush.bf16.msra.mxu0 0
    %3007 = vmatpush.bf16.msra.mxu0 0
    %3008 = vmatpush.bf16.msra.mxu0 0
    %3009 = vmatpush.bf16.msra.mxu0 %v3000
    %3010 = vmatmul.bf16.gmra.mxu0 %v2997
    %v3011 = vpop.f32.mrf.mxu0
    %v3012 = vadd.f32 0.0, %v3011
    %v3013 = vpop.f32.mrf.mxu0
    %3014 = vdwg.mxu0
    %v3016 = vsel %vm524, %v2899, 0
    %v3019 = vsel %vm528, %v2651, 0
    %3021 = vmatpush.bf16.msra.mxu0 0
    %3022 = vmatpush.bf16.msra.mxu0 0
    %3023 = vmatpush.bf16.msra.mxu0 0
    %3024 = vmatpush.bf16.msra.mxu0 0
    %3025 = vmatpush.bf16.msra.mxu0 0
    %3026 = vmatpush.bf16.msra.mxu0 0
    %3027 = vmatpush.bf16.msra.mxu0 0
    %3028 = vmatpush.bf16.msra.mxu0 %v3019
    %3029 = vmatmul.bf16.gmra.mxu0 %v3016
    %v3030 = vpop.f32.mrf.mxu0
    %v3031 = vadd.f32 0.0, %v3030
    %v3032 = vpop.f32.mrf.mxu0
    %3033 = vdwg.mxu0
    %v3035 = vsel %vm524, %v2900, 0
    %v3038 = vsel %vm528, %v2652, 0
    %3040 = vmatpush.bf16.msra.mxu0 0
    %3041 = vmatpush.bf16.msra.mxu0 0
    %3042 = vmatpush.bf16.msra.mxu0 0
    %3043 = vmatpush.bf16.msra.mxu0 0
    %3044 = vmatpush.bf16.msra.mxu0 0
    %3045 = vmatpush.bf16.msra.mxu0 0
    %3046 = vmatpush.bf16.msra.mxu0 0
    %3047 = vmatpush.bf16.msra.mxu0 %v3038
    %3048 = vmatmul.bf16.gmra.mxu0 %v3035
    %v3049 = vpop.f32.mrf.mxu0
    %v3050 = vadd.f32 0.0, %v3049
    %v3051 = vpop.f32.mrf.mxu0
    %3052 = vdwg.mxu0
    %3061 = vst [vmem:[#allocation1] ss:$4 sm:$0xff] %v2917
    %s3062 = scalar_lea.vmem [#allocation1], 1
    %3063 = vst [vmem:[%s3062] ss:$4 sm:$0xff] %v2936
    %s3064 = scalar_lea.vmem [#allocation1], 2
    %3065 = vst [vmem:[%s3064] ss:$4 sm:$0xff] %v2955
    %s3066 = scalar_lea.vmem [#allocation1], 3
    %3067 = vst [vmem:[%s3066] ss:$4 sm:$0xff] %v2974
    %s3068 = scalar_lea.vmem [#allocation1], 32
    %3069 = vst [vmem:[%s3068] ss:$4 sm:$0xff] %v2993
    %s3070 = scalar_lea.vmem [#allocation1], 33
    %3071 = vst [vmem:[%s3070] ss:$4 sm:$0xff] %v3012
    %s3072 = scalar_lea.vmem [#allocation1], 34
    %3073 = vst [vmem:[%s3072] ss:$4 sm:$0xff] %v3031
    %s3074 = scalar_lea.vmem [#allocation1], 35
    %3075 = vst [vmem:[%s3074] ss:$4 sm:$0xff] %v3050
    %v3076 = vld.sshfl [vmem:[#allocation1] sm:$0xff pattern:$0x73625140]
    %v3077 = vld.sshfl [vmem:[#allocation1 + $0x20] sm:$0xff pattern:$0x73625140]
    %v3080 = vpack.c.bf16 %v3077, %v3076
    %v3082 = vunpack.c.l.b16 %v2601
    %v3083 = vpack.c.b16 %v3082, %v3082
    %3084 = vrot.lane.b32.xlu0 %v3083, 120
    %v3085 = vpop.permute.xlu0 %3084
    %v3087 = vunpack.c.l.b16 %v2623
    %v3088 = vpack.c.b16 %v3087, %v3087
    %3089 = vrot.lane.b32.xlu0 %v3088, 120
    %v3090 = vpop.permute.xlu0 %3089
    %v3092 = vsel %vm274, %v3085, 0
    %v3095 = vsel %vm274, %v3090, 0
    %3097 = vmatpush.bf16.xpose.msra.mxu0 0
    %3098 = vmatpush.bf16.xpose.msra.mxu0 0
    %3099 = vmatpush.bf16.xpose.msra.mxu0 0
    %3100 = vmatpush.bf16.xpose.msra.mxu0 0
    %3101 = vmatpush.bf16.xpose.msra.mxu0 0
    %3102 = vmatpush.bf16.xpose.msra.mxu0 0
    %3103 = vmatpush.bf16.xpose.msra.mxu0 0
    %3104 = vmatpush.bf16.xpose.msra.mxu0 %v3095
    %3105 = vmatmul.bf16.gmra.mxu0 %v3092
    %v3106 = vpop.f32.mrf.mxu0
    %v3107 = vadd.f32 0.0, %v3106
    %v3108 = vpop.f32.mrf.mxu0
    %3109 = vdwg.mxu0
    %v3111 = vunpack.c.l.b16 %v2602
    %v3112 = vpack.c.b16 %v3111, %v3111
    %3113 = vrot.lane.b32.xlu0 %v3112, 120
    %v3114 = vpop.permute.xlu0 %3113
    %v3116 = vunpack.c.l.b16 %v2624
    %v3117 = vpack.c.b16 %v3116, %v3116
    %3118 = vrot.lane.b32.xlu0 %v3117, 120
    %v3119 = vpop.permute.xlu0 %3118
    %v3121 = vsel %vm274, %v3114, 0
    %v3124 = vsel %vm274, %v3119, 0
    %3126 = vmatpush.bf16.xpose.msra.mxu0 0
    %3127 = vmatpush.bf16.xpose.msra.mxu0 0
    %3128 = vmatpush.bf16.xpose.msra.mxu0 0
    %3129 = vmatpush.bf16.xpose.msra.mxu0 0
    %3130 = vmatpush.bf16.xpose.msra.mxu0 0
    %3131 = vmatpush.bf16.xpose.msra.mxu0 0
    %3132 = vmatpush.bf16.xpose.msra.mxu0 0
    %3133 = vmatpush.bf16.xpose.msra.mxu0 %v3124
    %3134 = vmatmul.bf16.gmra.mxu0 %v3121
    %v3135 = vpop.f32.mrf.mxu0
    %v3136 = vadd.f32 0.0, %v3135
    %v3137 = vpop.f32.mrf.mxu0
    %3138 = vdwg.mxu0
    %v3140 = vunpack.c.l.b16 %v2603
    %v3141 = vpack.c.b16 %v3140, %v3140
    %3142 = vrot.lane.b32.xlu0 %v3141, 120
    %v3143 = vpop.permute.xlu0 %3142
    %v3145 = vunpack.c.l.b16 %v2625
    %v3146 = vpack.c.b16 %v3145, %v3145
    %3147 = vrot.lane.b32.xlu0 %v3146, 120
    %v3148 = vpop.permute.xlu0 %3147
    %v3150 = vsel %vm274, %v3143, 0
    %v3153 = vsel %vm274, %v3148, 0
    %3155 = vmatpush.bf16.xpose.msra.mxu0 0
    %3156 = vmatpush.bf16.xpose.msra.mxu0 0
    %3157 = vmatpush.bf16.xpose.msra.mxu0 0
    %3158 = vmatpush.bf16.xpose.msra.mxu0 0
    %3159 = vmatpush.bf16.xpose.msra.mxu0 0
    %3160 = vmatpush.bf16.xpose.msra.mxu0 0
    %3161 = vmatpush.bf16.xpose.msra.mxu0 0
    %3162 = vmatpush.bf16.xpose.msra.mxu0 %v3153
    %3163 = vmatmul.bf16.gmra.mxu0 %v3150
    %v3164 = vpop.f32.mrf.mxu0
    %v3165 = vadd.f32 0.0, %v3164
    %v3166 = vpop.f32.mrf.mxu0
    %3167 = vdwg.mxu0
    %v3169 = vunpack.c.l.b16 %v2604
    %v3170 = vpack.c.b16 %v3169, %v3169
    %3171 = vrot.lane.b32.xlu0 %v3170, 120
    %v3172 = vpop.permute.xlu0 %3171
    %v3174 = vunpack.c.l.b16 %v2626
    %v3175 = vpack.c.b16 %v3174, %v3174
    %3176 = vrot.lane.b32.xlu0 %v3175, 120
    %v3177 = vpop.permute.xlu0 %3176
    %v3179 = vsel %vm274, %v3172, 0
    %v3182 = vsel %vm274, %v3177, 0
    %3184 = vmatpush.bf16.xpose.msra.mxu0 0
    %3185 = vmatpush.bf16.xpose.msra.mxu0 0
    %3186 = vmatpush.bf16.xpose.msra.mxu0 0
    %3187 = vmatpush.bf16.xpose.msra.mxu0 0
    %3188 = vmatpush.bf16.xpose.msra.mxu0 0
    %3189 = vmatpush.bf16.xpose.msra.mxu0 0
    %3190 = vmatpush.bf16.xpose.msra.mxu0 0
    %3191 = vmatpush.bf16.xpose.msra.mxu0 %v3182
    %3192 = vmatmul.bf16.gmra.mxu0 %v3179
    %v3193 = vpop.f32.mrf.mxu0
    %v3194 = vadd.f32 0.0, %v3193
    %v3195 = vpop.f32.mrf.mxu0
    %3196 = vdwg.mxu0
    %v3198 = vunpack.c.l.b16 %v2605
    %v3199 = vpack.c.b16 %v3198, %v3198
    %3200 = vrot.lane.b32.xlu0 %v3199, 120
    %v3201 = vpop.permute.xlu0 %3200
    %v3203 = vunpack.c.l.b16 %v2627
    %v3204 = vpack.c.b16 %v3203, %v3203
    %3205 = vrot.lane.b32.xlu0 %v3204, 120
    %v3206 = vpop.permute.xlu0 %3205
    %v3208 = vsel %vm274, %v3201, 0
    %v3211 = vsel %vm274, %v3206, 0
    %3213 = vmatpush.bf16.xpose.msra.mxu0 0
    %3214 = vmatpush.bf16.xpose.msra.mxu0 0
    %3215 = vmatpush.bf16.xpose.msra.mxu0 0
    %3216 = vmatpush.bf16.xpose.msra.mxu0 0
    %3217 = vmatpush.bf16.xpose.msra.mxu0 0
    %3218 = vmatpush.bf16.xpose.msra.mxu0 0
    %3219 = vmatpush.bf16.xpose.msra.mxu0 0
    %3220 = vmatpush.bf16.xpose.msra.mxu0 %v3211
    %3221 = vmatmul.bf16.gmra.mxu0 %v3208
    %v3222 = vpop.f32.mrf.mxu0
    %v3223 = vadd.f32 0.0, %v3222
    %v3224 = vpop.f32.mrf.mxu0
    %3225 = vdwg.mxu0
    %v3227 = vunpack.c.l.b16 %v2606
    %v3228 = vpack.c.b16 %v3227, %v3227
    %3229 = vrot.lane.b32.xlu0 %v3228, 120
    %v3230 = vpop.permute.xlu0 %3229
    %v3232 = vunpack.c.l.b16 %v2628
    %v3233 = vpack.c.b16 %v3232, %v3232
    %3234 = vrot.lane.b32.xlu0 %v3233, 120
    %v3235 = vpop.permute.xlu0 %3234
    %v3237 = vsel %vm274, %v3230, 0
    %v3240 = vsel %vm274, %v3235, 0
    %3242 = vmatpush.bf16.xpose.msra.mxu0 0
    %3243 = vmatpush.bf16.xpose.msra.mxu0 0
    %3244 = vmatpush.bf16.xpose.msra.mxu0 0
    %3245 = vmatpush.bf16.xpose.msra.mxu0 0
    %3246 = vmatpush.bf16.xpose.msra.mxu0 0
    %3247 = vmatpush.bf16.xpose.msra.mxu0 0
    %3248 = vmatpush.bf16.xpose.msra.mxu0 0
    %3249 = vmatpush.bf16.xpose.msra.mxu0 %v3240
    %3250 = vmatmul.bf16.gmra.mxu0 %v3237
    %v3251 = vpop.f32.mrf.mxu0
    %v3252 = vadd.f32 0.0, %v3251
    %v3253 = vpop.f32.mrf.mxu0
    %3254 = vdwg.mxu0
    %v3256 = vunpack.c.l.b16 %v2607
    %v3257 = vpack.c.b16 %v3256, %v3256
    %3258 = vrot.lane.b32.xlu0 %v3257, 120
    %v3259 = vpop.permute.xlu0 %3258
    %v3261 = vunpack.c.l.b16 %v2629
    %v3262 = vpack.c.b16 %v3261, %v3261
    %3263 = vrot.lane.b32.xlu0 %v3262, 120
    %v3264 = vpop.permute.xlu0 %3263
    %v3266 = vsel %vm274, %v3259, 0
    %v3269 = vsel %vm274, %v3264, 0
    %3271 = vmatpush.bf16.xpose.msra.mxu0 0
    %3272 = vmatpush.bf16.xpose.msra.mxu0 0
    %3273 = vmatpush.bf16.xpose.msra.mxu0 0
    %3274 = vmatpush.bf16.xpose.msra.mxu0 0
    %3275 = vmatpush.bf16.xpose.msra.mxu0 0
    %3276 = vmatpush.bf16.xpose.msra.mxu0 0
    %3277 = vmatpush.bf16.xpose.msra.mxu0 0
    %3278 = vmatpush.bf16.xpose.msra.mxu0 %v3269
    %3279 = vmatmul.bf16.gmra.mxu0 %v3266
    %v3280 = vpop.f32.mrf.mxu0
    %v3281 = vadd.f32 0.0, %v3280
    %v3282 = vpop.f32.mrf.mxu0
    %3283 = vdwg.mxu0
    %v3285 = vunpack.c.l.b16 %v2608
    %v3286 = vpack.c.b16 %v3285, %v3285
    %3287 = vrot.lane.b32.xlu0 %v3286, 120
    %v3288 = vpop.permute.xlu0 %3287
    %v3290 = vunpack.c.l.b16 %v2630
    %v3291 = vpack.c.b16 %v3290, %v3290
    %3292 = vrot.lane.b32.xlu0 %v3291, 120
    %v3293 = vpop.permute.xlu0 %3292
    %v3295 = vsel %vm274, %v3288, 0
    %v3298 = vsel %vm274, %v3293, 0
    %3300 = vmatpush.bf16.xpose.msra.mxu0 0
    %3301 = vmatpush.bf16.xpose.msra.mxu0 0
    %3302 = vmatpush.bf16.xpose.msra.mxu0 0
    %3303 = vmatpush.bf16.xpose.msra.mxu0 0
    %3304 = vmatpush.bf16.xpose.msra.mxu0 0
    %3305 = vmatpush.bf16.xpose.msra.mxu0 0
    %3306 = vmatpush.bf16.xpose.msra.mxu0 0
    %3307 = vmatpush.bf16.xpose.msra.mxu0 %v3298
    %3308 = vmatmul.bf16.gmra.mxu0 %v3295
    %v3309 = vpop.f32.mrf.mxu0
    %v3310 = vadd.f32 0.0, %v3309
    %v3311 = vpop.f32.mrf.mxu0
    %3312 = vdwg.mxu0
    %v3313 = vsel %vm427, %v3107, -inf
    %3314 = vmax.xlane.f32.xlu0 %v3313
    %v3315 = vpop.xlane.xlu0 %3314
    %v3316 = vsel %vm427, %v3136, -inf
    %3317 = vmax.xlane.f32.xlu0 %v3316
    %v3318 = vpop.xlane.xlu0 %3317
    %v3319 = vsel %vm427, %v3165, -inf
    %3320 = vmax.xlane.f32.xlu0 %v3319
    %v3321 = vpop.xlane.xlu0 %3320
    %v3322 = vsel %vm427, %v3194, -inf
    %3323 = vmax.xlane.f32.xlu0 %v3322
    %v3324 = vpop.xlane.xlu0 %3323
    %v3325 = vsel %vm427, %v3223, -inf
    %3326 = vmax.xlane.f32.xlu0 %v3325
    %v3327 = vpop.xlane.xlu0 %3326
    %v3328 = vsel %vm427, %v3252, -inf
    %3329 = vmax.xlane.f32.xlu0 %v3328
    %v3330 = vpop.xlane.xlu0 %3329
    %v3331 = vsel %vm427, %v3281, -inf
    %3332 = vmax.xlane.f32.xlu0 %v3331
    %v3333 = vpop.xlane.xlu0 %3332
    %v3334 = vsel %vm427, %v3310, -inf
    %3335 = vmax.xlane.f32.xlu0 %v3334
    %v3336 = vpop.xlane.xlu0 %3335
    %v3337 = vsub.f32 %v3107, %v3315
    %v3338 = vsub.f32 %v3136, %v3318
    %v3339 = vsub.f32 %v3165, %v3321
    %v3340 = vsub.f32 %v3194, %v3324
    %v3341 = vsub.f32 %v3223, %v3327
    %v3342 = vsub.f32 %v3252, %v3330
    %v3343 = vsub.f32 %v3281, %v3333
    %v3344 = vsub.f32 %v3310, %v3336
    %v3345 = vmul.f32 %v3337, 1.442695
    %v3346 = vpow.pop %v3345
    %v3347 = vmul.f32 %v3338, 1.442695
    %v3348 = vpow.pop %v3347
    %v3349 = vmul.f32 %v3339, 1.442695
    %v3350 = vpow.pop %v3349
    %v3351 = vmul.f32 %v3340, 1.442695
    %v3352 = vpow.pop %v3351
    %v3353 = vmul.f32 %v3341, 1.442695
    %v3354 = vpow.pop %v3353
    %v3355 = vmul.f32 %v3342, 1.442695
    %v3356 = vpow.pop %v3355
    %v3357 = vmul.f32 %v3343, 1.442695
    %v3358 = vpow.pop %v3357
    %v3359 = vmul.f32 %v3344, 1.442695
    %v3360 = vpow.pop %v3359
    %v3361 = vsel %vm427, %v3346, 0.0
    %3362 = vadd.xlane.f32.xlu0 %v3361
    %v3363 = vpop.xlane.xlu0 %3362
    %v3364 = vsel %vm427, %v3348, 0.0
    %3365 = vadd.xlane.f32.xlu0 %v3364
    %v3366 = vpop.xlane.xlu0 %3365
    %v3367 = vsel %vm427, %v3350, 0.0
    %3368 = vadd.xlane.f32.xlu0 %v3367
    %v3369 = vpop.xlane.xlu0 %3368
    %v3370 = vsel %vm427, %v3352, 0.0
    %3371 = vadd.xlane.f32.xlu0 %v3370
    %v3372 = vpop.xlane.xlu0 %3371
    %v3373 = vsel %vm427, %v3354, 0.0
    %3374 = vadd.xlane.f32.xlu0 %v3373
    %v3375 = vpop.xlane.xlu0 %3374
    %v3376 = vsel %vm427, %v3356, 0.0
    %3377 = vadd.xlane.f32.xlu0 %v3376
    %v3378 = vpop.xlane.xlu0 %3377
    %v3379 = vsel %vm427, %v3358, 0.0
    %3380 = vadd.xlane.f32.xlu0 %v3379
    %v3381 = vpop.xlane.xlu0 %3380
    %v3382 = vsel %vm427, %v3360, 0.0
    %3383 = vadd.xlane.f32.xlu0 %v3382
    %v3384 = vpop.xlane.xlu0 %3383
    %v3385 = vrcp.pop %v3363
    %v3386 = vrcp.pop %v3366
    %v3387 = vrcp.pop %v3369
    %v3388 = vrcp.pop %v3372
    %v3389 = vrcp.pop %v3375
    %v3390 = vrcp.pop %v3378
    %v3391 = vrcp.pop %v3381
    %v3392 = vrcp.pop %v3384
    %v3393 = vmul.f32 %v3346, %v3385
    %v3394 = vmul.f32 %v3348, %v3386
    %v3395 = vmul.f32 %v3350, %v3387
    %v3396 = vmul.f32 %v3352, %v3388
    %v3397 = vmul.f32 %v3354, %v3389
    %v3398 = vmul.f32 %v3356, %v3390
    %v3399 = vmul.f32 %v3358, %v3391
    %v3400 = vmul.f32 %v3360, %v3392
    %v3401 = vpack.c.bf16 %v3393, %v3393
    %v3402 = vpack.c.bf16 %v3394, %v3394
    %v3403 = vpack.c.bf16 %v3395, %v3395
    %v3404 = vpack.c.bf16 %v3396, %v3396
    %v3405 = vpack.c.bf16 %v3397, %v3397
    %v3406 = vpack.c.bf16 %v3398, %v3398
    %v3407 = vpack.c.bf16 %v3399, %v3399
    %v3408 = vpack.c.bf16 %v3400, %v3400
    %v3410 = vunpack.c.l.b16 %v2645
    %v3411 = vpack.c.b16 %v3410, %v3410
    %3412 = vrot.lane.b32.xlu0 %v3411, 120
    %v3413 = vpop.permute.xlu0 %3412
    %v3415 = vsel %vm524, %v3401, 0
    %v3418 = vsel %vm528, %v3413, 0
    %3420 = vmatpush.bf16.msra.mxu0 0
    %3421 = vmatpush.bf16.msra.mxu0 0
    %3422 = vmatpush.bf16.msra.mxu0 0
    %3423 = vmatpush.bf16.msra.mxu0 0
    %3424 = vmatpush.bf16.msra.mxu0 0
    %3425 = vmatpush.bf16.msra.mxu0 0
    %3426 = vmatpush.bf16.msra.mxu0 0
    %3427 = vmatpush.bf16.msra.mxu0 %v3418
    %3428 = vmatmul.bf16.gmra.mxu0 %v3415
    %v3429 = vpop.f32.mrf.mxu0
    %v3430 = vadd.f32 0.0, %v3429
    %v3431 = vpop.f32.mrf.mxu0
    %3432 = vdwg.mxu0
    %v3434 = vunpack.c.l.b16 %v2646
    %v3435 = vpack.c.b16 %v3434, %v3434
    %3436 = vrot.lane.b32.xlu0 %v3435, 120
    %v3437 = vpop.permute.xlu0 %3436
    %v3439 = vsel %vm524, %v3402, 0
    %v3442 = vsel %vm528, %v3437, 0
    %3444 = vmatpush.bf16.msra.mxu0 0
    %3445 = vmatpush.bf16.msra.mxu0 0
    %3446 = vmatpush.bf16.msra.mxu0 0
    %3447 = vmatpush.bf16.msra.mxu0 0
    %3448 = vmatpush.bf16.msra.mxu0 0
    %3449 = vmatpush.bf16.msra.mxu0 0
    %3450 = vmatpush.bf16.msra.mxu0 0
    %3451 = vmatpush.bf16.msra.mxu0 %v3442
    %3452 = vmatmul.bf16.gmra.mxu0 %v3439
    %v3453 = vpop.f32.mrf.mxu0
    %v3454 = vadd.f32 0.0, %v3453
    %v3455 = vpop.f32.mrf.mxu0
    %3456 = vdwg.mxu0
    %v3458 = vunpack.c.l.b16 %v2647
    %v3459 = vpack.c.b16 %v3458, %v3458
    %3460 = vrot.lane.b32.xlu0 %v3459, 120
    %v3461 = vpop.permute.xlu0 %3460
    %v3463 = vsel %vm524, %v3403, 0
    %v3466 = vsel %vm528, %v3461, 0
    %3468 = vmatpush.bf16.msra.mxu0 0
    %3469 = vmatpush.bf16.msra.mxu0 0
    %3470 = vmatpush.bf16.msra.mxu0 0
    %3471 = vmatpush.bf16.msra.mxu0 0
    %3472 = vmatpush.bf16.msra.mxu0 0
    %3473 = vmatpush.bf16.msra.mxu0 0
    %3474 = vmatpush.bf16.msra.mxu0 0
    %3475 = vmatpush.bf16.msra.mxu0 %v3466
    %3476 = vmatmul.bf16.gmra.mxu0 %v3463
    %v3477 = vpop.f32.mrf.mxu0
    %v3478 = vadd.f32 0.0, %v3477
    %v3479 = vpop.f32.mrf.mxu0
    %3480 = vdwg.mxu0
    %v3482 = vunpack.c.l.b16 %v2648
    %v3483 = vpack.c.b16 %v3482, %v3482
    %3484 = vrot.lane.b32.xlu0 %v3483, 120
    %v3485 = vpop.permute.xlu0 %3484
    %v3487 = vsel %vm524, %v3404, 0
    %v3490 = vsel %vm528, %v3485, 0
    %3492 = vmatpush.bf16.msra.mxu0 0
    %3493 = vmatpush.bf16.msra.mxu0 0
    %3494 = vmatpush.bf16.msra.mxu0 0
    %3495 = vmatpush.bf16.msra.mxu0 0
    %3496 = vmatpush.bf16.msra.mxu0 0
    %3497 = vmatpush.bf16.msra.mxu0 0
    %3498 = vmatpush.bf16.msra.mxu0 0
    %3499 = vmatpush.bf16.msra.mxu0 %v3490
    %3500 = vmatmul.bf16.gmra.mxu0 %v3487
    %v3501 = vpop.f32.mrf.mxu0
    %v3502 = vadd.f32 0.0, %v3501
    %v3503 = vpop.f32.mrf.mxu0
    %3504 = vdwg.mxu0
    %v3506 = vunpack.c.l.b16 %v2649
    %v3507 = vpack.c.b16 %v3506, %v3506
    %3508 = vrot.lane.b32.xlu0 %v3507, 120
    %v3509 = vpop.permute.xlu0 %3508
    %v3511 = vsel %vm524, %v3405, 0
    %v3514 = vsel %vm528, %v3509, 0
    %3516 = vmatpush.bf16.msra.mxu0 0
    %3517 = vmatpush.bf16.msra.mxu0 0
    %3518 = vmatpush.bf16.msra.mxu0 0
    %3519 = vmatpush.bf16.msra.mxu0 0
    %3520 = vmatpush.bf16.msra.mxu0 0
    %3521 = vmatpush.bf16.msra.mxu0 0
    %3522 = vmatpush.bf16.msra.mxu0 0
    %3523 = vmatpush.bf16.msra.mxu0 %v3514
    %3524 = vmatmul.bf16.gmra.mxu0 %v3511
    %v3525 = vpop.f32.mrf.mxu0
    %v3526 = vadd.f32 0.0, %v3525
    %v3527 = vpop.f32.mrf.mxu0
    %3528 = vdwg.mxu0
    %v3530 = vunpack.c.l.b16 %v2650
    %v3531 = vpack.c.b16 %v3530, %v3530
    %3532 = vrot.lane.b32.xlu0 %v3531, 120
    %v3533 = vpop.permute.xlu0 %3532
    %v3535 = vsel %vm524, %v3406, 0
    %v3538 = vsel %vm528, %v3533, 0
    %3540 = vmatpush.bf16.msra.mxu0 0
    %3541 = vmatpush.bf16.msra.mxu0 0
    %3542 = vmatpush.bf16.msra.mxu0 0
    %3543 = vmatpush.bf16.msra.mxu0 0
    %3544 = vmatpush.bf16.msra.mxu0 0
    %3545 = vmatpush.bf16.msra.mxu0 0
    %3546 = vmatpush.bf16.msra.mxu0 0
    %3547 = vmatpush.bf16.msra.mxu0 %v3538
    %3548 = vmatmul.bf16.gmra.mxu0 %v3535
    %v3549 = vpop.f32.mrf.mxu0
    %v3550 = vadd.f32 0.0, %v3549
    %v3551 = vpop.f32.mrf.mxu0
    %3552 = vdwg.mxu0
    %v3554 = vunpack.c.l.b16 %v2651
    %v3555 = vpack.c.b16 %v3554, %v3554
    %3556 = vrot.lane.b32.xlu0 %v3555, 120
    %v3557 = vpop.permute.xlu0 %3556
    %v3559 = vsel %vm524, %v3407, 0
    %v3562 = vsel %vm528, %v3557, 0
    %3564 = vmatpush.bf16.msra.mxu0 0
    %3565 = vmatpush.bf16.msra.mxu0 0
    %3566 = vmatpush.bf16.msra.mxu0 0
    %3567 = vmatpush.bf16.msra.mxu0 0
    %3568 = vmatpush.bf16.msra.mxu0 0
    %3569 = vmatpush.bf16.msra.mxu0 0
    %3570 = vmatpush.bf16.msra.mxu0 0
    %3571 = vmatpush.bf16.msra.mxu0 %v3562
    %3572 = vmatmul.bf16.gmra.mxu0 %v3559
    %v3573 = vpop.f32.mrf.mxu0
    %v3574 = vadd.f32 0.0, %v3573
    %v3575 = vpop.f32.mrf.mxu0
    %3576 = vdwg.mxu0
    %v3578 = vunpack.c.l.b16 %v2652
    %v3579 = vpack.c.b16 %v3578, %v3578
    %3580 = vrot.lane.b32.xlu0 %v3579, 120
    %v3581 = vpop.permute.xlu0 %3580
    %v3583 = vsel %vm524, %v3408, 0
    %v3586 = vsel %vm528, %v3581, 0
    %3588 = vmatpush.bf16.msra.mxu0 0
    %3589 = vmatpush.bf16.msra.mxu0 0
    %3590 = vmatpush.bf16.msra.mxu0 0
    %3591 = vmatpush.bf16.msra.mxu0 0
    %3592 = vmatpush.bf16.msra.mxu0 0
    %3593 = vmatpush.bf16.msra.mxu0 0
    %3594 = vmatpush.bf16.msra.mxu0 0
    %3595 = vmatpush.bf16.msra.mxu0 %v3586
    %3596 = vmatmul.bf16.gmra.mxu0 %v3583
    %v3597 = vpop.f32.mrf.mxu0
    %v3598 = vadd.f32 0.0, %v3597
    %v3599 = vpop.f32.mrf.mxu0
    %3600 = vdwg.mxu0
    %3609 = vst [vmem:[#allocation1] ss:$4 sm:$0xff] %v3430
    %s3610 = scalar_lea.vmem [#allocation1], 1
    %3611 = vst [vmem:[%s3610] ss:$4 sm:$0xff] %v3454
    %s3612 = scalar_lea.vmem [#allocation1], 2
    %3613 = vst [vmem:[%s3612] ss:$4 sm:$0xff] %v3478
    %s3614 = scalar_lea.vmem [#allocation1], 3
    %3615 = vst [vmem:[%s3614] ss:$4 sm:$0xff] %v3502
    %s3616 = scalar_lea.vmem [#allocation1], 32
    %3617 = vst [vmem:[%s3616] ss:$4 sm:$0xff] %v3526
    %s3618 = scalar_lea.vmem [#allocation1], 33
    %3619 = vst [vmem:[%s3618] ss:$4 sm:$0xff] %v3550
    %s3620 = scalar_lea.vmem [#allocation1], 34
    %3621 = vst [vmem:[%s3620] ss:$4 sm:$0xff] %v3574
    %s3622 = scalar_lea.vmem [#allocation1], 35
    %3623 = vst [vmem:[%s3622] ss:$4 sm:$0xff] %v3598
    %v3624 = vld.sshfl [vmem:[#allocation1] sm:$0xff pattern:$0x73625140]
    %v3625 = vld.sshfl [vmem:[#allocation1 + $0x20] sm:$0xff pattern:$0x73625140]
    %v3628 = vpack.c.bf16 %v3625, %v3624
    %v3630 = vsel %vm274, %v3628, 0
    %v3633 = vsel %vm1257, %v2582, 0
    %3635 = vmatpush.bf16.msra.mxu0 0
    %3636 = vmatpush.bf16.msra.mxu0 0
    %3637 = vmatpush.bf16.msra.mxu0 0
    %3638 = vmatpush.bf16.msra.mxu0 0
    %3639 = vmatpush.bf16.msra.mxu0 0
    %3640 = vmatpush.bf16.msra.mxu0 0
    %3641 = vmatpush.bf16.msra.mxu0 0
    %3642 = vmatpush.bf16.msra.mxu0 %v3633
    %3643 = vmatmul.bf16.gmra.mxu0 %v3630
    %v3644 = vpop.f32.mrf.mxu0
    %v3645 = vadd.f32 0.0, %v3644
    %v3646 = vpop.f32.mrf.mxu0
    %v3647 = vadd.f32 0.0, %v3646
    %3648 = vdwg.mxu0
    %v3650 = vsel %vm274, %v3080, 0
    %v3653 = vsel %vm1257, %v2581, 0
    %3655 = vmatpush.bf16.msra.mxu0 0
    %3656 = vmatpush.bf16.msra.mxu0 0
    %3657 = vmatpush.bf16.msra.mxu0 0
    %3658 = vmatpush.bf16.msra.mxu0 0
    %3659 = vmatpush.bf16.msra.mxu0 0
    %3660 = vmatpush.bf16.msra.mxu0 0
    %3661 = vmatpush.bf16.msra.mxu0 0
    %3662 = vmatpush.bf16.msra.mxu0 %v3653
    %3663 = vmatmul.bf16.gmra.mxu0 %v3650
    %v3664 = vpop.f32.mrf.mxu0
    %v3665 = vadd.f32 %v3645, %v3664
    %v3666 = vpop.f32.mrf.mxu0
    %v3667 = vadd.f32 %v3647, %v3666
    %3668 = vdwg.mxu0
    %3669 = vrot.lane.b32.xlu0 %v3083, 112
    %v3670 = vpop.permute.xlu0 %3669
    %3671 = vrot.lane.b32.xlu0 %v3088, 112
    %v3672 = vpop.permute.xlu0 %3671
    %v3674 = vsel %vm274, %v3670, 0
    %v3677 = vsel %vm274, %v3672, 0
    %3679 = vmatpush.bf16.xpose.msra.mxu0 0
    %3680 = vmatpush.bf16.xpose.msra.mxu0 0
    %3681 = vmatpush.bf16.xpose.msra.mxu0 0
    %3682 = vmatpush.bf16.xpose.msra.mxu0 0
    %3683 = vmatpush.bf16.xpose.msra.mxu0 0
    %3684 = vmatpush.bf16.xpose.msra.mxu0 0
    %3685 = vmatpush.bf16.xpose.msra.mxu0 0
    %3686 = vmatpush.bf16.xpose.msra.mxu0 %v3677
    %3687 = vmatmul.bf16.gmra.mxu0 %v3674
    %v3688 = vpop.f32.mrf.mxu0
    %v3689 = vadd.f32 0.0, %v3688
    %v3690 = vpop.f32.mrf.mxu0
    %3691 = vdwg.mxu0
    %3692 = vrot.lane.b32.xlu0 %v3112, 112
    %v3693 = vpop.permute.xlu0 %3692
    %3694 = vrot.lane.b32.xlu0 %v3117, 112
    %v3695 = vpop.permute.xlu0 %3694
    %v3697 = vsel %vm274, %v3693, 0
    %v3700 = vsel %vm274, %v3695, 0
    %3702 = vmatpush.bf16.xpose.msra.mxu0 0
    %3703 = vmatpush.bf16.xpose.msra.mxu0 0
    %3704 = vmatpush.bf16.xpose.msra.mxu0 0
    %3705 = vmatpush.bf16.xpose.msra.mxu0 0
    %3706 = vmatpush.bf16.xpose.msra.mxu0 0
    %3707 = vmatpush.bf16.xpose.msra.mxu0 0
    %3708 = vmatpush.bf16.xpose.msra.mxu0 0
    %3709 = vmatpush.bf16.xpose.msra.mxu0 %v3700
    %3710 = vmatmul.bf16.gmra.mxu0 %v3697
    %v3711 = vpop.f32.mrf.mxu0
    %v3712 = vadd.f32 0.0, %v3711
    %v3713 = vpop.f32.mrf.mxu0
    %3714 = vdwg.mxu0
    %3715 = vrot.lane.b32.xlu0 %v3141, 112
    %v3716 = vpop.permute.xlu0 %3715
    %3717 = vrot.lane.b32.xlu0 %v3146, 112
    %v3718 = vpop.permute.xlu0 %3717
    %v3720 = vsel %vm274, %v3716, 0
    %v3723 = vsel %vm274, %v3718, 0
    %3725 = vmatpush.bf16.xpose.msra.mxu0 0
    %3726 = vmatpush.bf16.xpose.msra.mxu0 0
    %3727 = vmatpush.bf16.xpose.msra.mxu0 0
    %3728 = vmatpush.bf16.xpose.msra.mxu0 0
    %3729 = vmatpush.bf16.xpose.msra.mxu0 0
    %3730 = vmatpush.bf16.xpose.msra.mxu0 0
    %3731 = vmatpush.bf16.xpose.msra.mxu0 0
    %3732 = vmatpush.bf16.xpose.msra.mxu0 %v3723
    %3733 = vmatmul.bf16.gmra.mxu0 %v3720
    %v3734 = vpop.f32.mrf.mxu0
    %v3735 = vadd.f32 0.0, %v3734
    %v3736 = vpop.f32.mrf.mxu0
    %3737 = vdwg.mxu0
    %3738 = vrot.lane.b32.xlu0 %v3170, 112
    %v3739 = vpop.permute.xlu0 %3738
    %3740 = vrot.lane.b32.xlu0 %v3175, 112
    %v3741 = vpop.permute.xlu0 %3740
    %v3743 = vsel %vm274, %v3739, 0
    %v3746 = vsel %vm274, %v3741, 0
    %3748 = vmatpush.bf16.xpose.msra.mxu0 0
    %3749 = vmatpush.bf16.xpose.msra.mxu0 0
    %3750 = vmatpush.bf16.xpose.msra.mxu0 0
    %3751 = vmatpush.bf16.xpose.msra.mxu0 0
    %3752 = vmatpush.bf16.xpose.msra.mxu0 0
    %3753 = vmatpush.bf16.xpose.msra.mxu0 0
    %3754 = vmatpush.bf16.xpose.msra.mxu0 0
    %3755 = vmatpush.bf16.xpose.msra.mxu0 %v3746
    %3756 = vmatmul.bf16.gmra.mxu0 %v3743
    %v3757 = vpop.f32.mrf.mxu0
    %v3758 = vadd.f32 0.0, %v3757
    %v3759 = vpop.f32.mrf.mxu0
    %3760 = vdwg.mxu0
    %3761 = vrot.lane.b32.xlu0 %v3199, 112
    %v3762 = vpop.permute.xlu0 %3761
    %3763 = vrot.lane.b32.xlu0 %v3204, 112
    %v3764 = vpop.permute.xlu0 %3763
    %v3766 = vsel %vm274, %v3762, 0
    %v3769 = vsel %vm274, %v3764, 0
    %3771 = vmatpush.bf16.xpose.msra.mxu0 0
    %3772 = vmatpush.bf16.xpose.msra.mxu0 0
    %3773 = vmatpush.bf16.xpose.msra.mxu0 0
    %3774 = vmatpush.bf16.xpose.msra.mxu0 0
    %3775 = vmatpush.bf16.xpose.msra.mxu0 0
    %3776 = vmatpush.bf16.xpose.msra.mxu0 0
    %3777 = vmatpush.bf16.xpose.msra.mxu0 0
    %3778 = vmatpush.bf16.xpose.msra.mxu0 %v3769
    %3779 = vmatmul.bf16.gmra.mxu0 %v3766
    %v3780 = vpop.f32.mrf.mxu0
    %v3781 = vadd.f32 0.0, %v3780
    %v3782 = vpop.f32.mrf.mxu0
    %3783 = vdwg.mxu0
    %3784 = vrot.lane.b32.xlu0 %v3228, 112
    %v3785 = vpop.permute.xlu0 %3784
    %3786 = vrot.lane.b32.xlu0 %v3233, 112
    %v3787 = vpop.permute.xlu0 %3786
    %v3789 = vsel %vm274, %v3785, 0
    %v3792 = vsel %vm274, %v3787, 0
    %3794 = vmatpush.bf16.xpose.msra.mxu0 0
    %3795 = vmatpush.bf16.xpose.msra.mxu0 0
    %3796 = vmatpush.bf16.xpose.msra.mxu0 0
    %3797 = vmatpush.bf16.xpose.msra.mxu0 0
    %3798 = vmatpush.bf16.xpose.msra.mxu0 0
    %3799 = vmatpush.bf16.xpose.msra.mxu0 0
    %3800 = vmatpush.bf16.xpose.msra.mxu0 0
    %3801 = vmatpush.bf16.xpose.msra.mxu0 %v3792
    %3802 = vmatmul.bf16.gmra.mxu0 %v3789
    %v3803 = vpop.f32.mrf.mxu0
    %v3804 = vadd.f32 0.0, %v3803
    %v3805 = vpop.f32.mrf.mxu0
    %3806 = vdwg.mxu0
    %3807 = vrot.lane.b32.xlu0 %v3257, 112
    %v3808 = vpop.permute.xlu0 %3807
    %3809 = vrot.lane.b32.xlu0 %v3262, 112
    %v3810 = vpop.permute.xlu0 %3809
    %v3812 = vsel %vm274, %v3808, 0
    %v3815 = vsel %vm274, %v3810, 0
    %3817 = vmatpush.bf16.xpose.msra.mxu0 0
    %3818 = vmatpush.bf16.xpose.msra.mxu0 0
    %3819 = vmatpush.bf16.xpose.msra.mxu0 0
    %3820 = vmatpush.bf16.xpose.msra.mxu0 0
    %3821 = vmatpush.bf16.xpose.msra.mxu0 0
    %3822 = vmatpush.bf16.xpose.msra.mxu0 0
    %3823 = vmatpush.bf16.xpose.msra.mxu0 0
    %3824 = vmatpush.bf16.xpose.msra.mxu0 %v3815
    %3825 = vmatmul.bf16.gmra.mxu0 %v3812
    %v3826 = vpop.f32.mrf.mxu0
    %v3827 = vadd.f32 0.0, %v3826
    %v3828 = vpop.f32.mrf.mxu0
    %3829 = vdwg.mxu0
    %3830 = vrot.lane.b32.xlu0 %v3286, 112
    %v3831 = vpop.permute.xlu0 %3830
    %3832 = vrot.lane.b32.xlu0 %v3291, 112
    %v3833 = vpop.permute.xlu0 %3832
    %v3835 = vsel %vm274, %v3831, 0
    %v3838 = vsel %vm274, %v3833, 0
    %3840 = vmatpush.bf16.xpose.msra.mxu0 0
    %3841 = vmatpush.bf16.xpose.msra.mxu0 0
    %3842 = vmatpush.bf16.xpose.msra.mxu0 0
    %3843 = vmatpush.bf16.xpose.msra.mxu0 0
    %3844 = vmatpush.bf16.xpose.msra.mxu0 0
    %3845 = vmatpush.bf16.xpose.msra.mxu0 0
    %3846 = vmatpush.bf16.xpose.msra.mxu0 0
    %3847 = vmatpush.bf16.xpose.msra.mxu0 %v3838
    %3848 = vmatmul.bf16.gmra.mxu0 %v3835
    %v3849 = vpop.f32.mrf.mxu0
    %v3850 = vadd.f32 0.0, %v3849
    %v3851 = vpop.f32.mrf.mxu0
    %3852 = vdwg.mxu0
    %v3853 = vsel %vm427, %v3689, -inf
    %3854 = vmax.xlane.f32.xlu0 %v3853
    %v3855 = vpop.xlane.xlu0 %3854
    %v3856 = vsel %vm427, %v3712, -inf
    %3857 = vmax.xlane.f32.xlu0 %v3856
    %v3858 = vpop.xlane.xlu0 %3857
    %v3859 = vsel %vm427, %v3735, -inf
    %3860 = vmax.xlane.f32.xlu0 %v3859
    %v3861 = vpop.xlane.xlu0 %3860
    %v3862 = vsel %vm427, %v3758, -inf
    %3863 = vmax.xlane.f32.xlu0 %v3862
    %v3864 = vpop.xlane.xlu0 %3863
    %v3865 = vsel %vm427, %v3781, -inf
    %3866 = vmax.xlane.f32.xlu0 %v3865
    %v3867 = vpop.xlane.xlu0 %3866
    %v3868 = vsel %vm427, %v3804, -inf
    %3869 = vmax.xlane.f32.xlu0 %v3868
    %v3870 = vpop.xlane.xlu0 %3869
    %v3871 = vsel %vm427, %v3827, -inf
    %3872 = vmax.xlane.f32.xlu0 %v3871
    %v3873 = vpop.xlane.xlu0 %3872
    %v3874 = vsel %vm427, %v3850, -inf
    %3875 = vmax.xlane.f32.xlu0 %v3874
    %v3876 = vpop.xlane.xlu0 %3875
    %v3877 = vsub.f32 %v3689, %v3855
    %v3878 = vsub.f32 %v3712, %v3858
    %v3879 = vsub.f32 %v3735, %v3861
    %v3880 = vsub.f32 %v3758, %v3864
    %v3881 = vsub.f32 %v3781, %v3867
    %v3882 = vsub.f32 %v3804, %v3870
    %v3883 = vsub.f32 %v3827, %v3873
    %v3884 = vsub.f32 %v3850, %v3876
    %v3885 = vmul.f32 %v3877, 1.442695
    %v3886 = vpow.pop %v3885
    %v3887 = vmul.f32 %v3878, 1.442695
    %v3888 = vpow.pop %v3887
    %v3889 = vmul.f32 %v3879, 1.442695
    %v3890 = vpow.pop %v3889
    %v3891 = vmul.f32 %v3880, 1.442695
    %v3892 = vpow.pop %v3891
    %v3893 = vmul.f32 %v3881, 1.442695
    %v3894 = vpow.pop %v3893
    %v3895 = vmul.f32 %v3882, 1.442695
    %v3896 = vpow.pop %v3895
    %v3897 = vmul.f32 %v3883, 1.442695
    %v3898 = vpow.pop %v3897
    %v3899 = vmul.f32 %v3884, 1.442695
    %v3900 = vpow.pop %v3899
    %v3901 = vsel %vm427, %v3886, 0.0
    %3902 = vadd.xlane.f32.xlu0 %v3901
    %v3903 = vpop.xlane.xlu0 %3902
    %v3904 = vsel %vm427, %v3888, 0.0
    %3905 = vadd.xlane.f32.xlu0 %v3904
    %v3906 = vpop.xlane.xlu0 %3905
    %v3907 = vsel %vm427, %v3890, 0.0
    %3908 = vadd.xlane.f32.xlu0 %v3907
    %v3909 = vpop.xlane.xlu0 %3908
    %v3910 = vsel %vm427, %v3892, 0.0
    %3911 = vadd.xlane.f32.xlu0 %v3910
    %v3912 = vpop.xlane.xlu0 %3911
    %v3913 = vsel %vm427, %v3894, 0.0
    %3914 = vadd.xlane.f32.xlu0 %v3913
    %v3915 = vpop.xlane.xlu0 %3914
    %v3916 = vsel %vm427, %v3896, 0.0
    %3917 = vadd.xlane.f32.xlu0 %v3916
    %v3918 = vpop.xlane.xlu0 %3917
    %v3919 = vsel %vm427, %v3898, 0.0
    %3920 = vadd.xlane.f32.xlu0 %v3919
    %v3921 = vpop.xlane.xlu0 %3920
    %v3922 = vsel %vm427, %v3900, 0.0
    %3923 = vadd.xlane.f32.xlu0 %v3922
    %v3924 = vpop.xlane.xlu0 %3923
    %v3925 = vrcp.pop %v3903
    %v3926 = vrcp.pop %v3906
    %v3927 = vrcp.pop %v3909
    %v3928 = vrcp.pop %v3912
    %v3929 = vrcp.pop %v3915
    %v3930 = vrcp.pop %v3918
    %v3931 = vrcp.pop %v3921
    %v3932 = vrcp.pop %v3924
    %v3933 = vmul.f32 %v3886, %v3925
    %v3934 = vmul.f32 %v3888, %v3926
    %v3935 = vmul.f32 %v3890, %v3927
    %v3936 = vmul.f32 %v3892, %v3928
    %v3937 = vmul.f32 %v3894, %v3929
    %v3938 = vmul.f32 %v3896, %v3930
    %v3939 = vmul.f32 %v3898, %v3931
    %v3940 = vmul.f32 %v3900, %v3932
    %v3941 = vpack.c.bf16 %v3933, %v3933
    %v3942 = vpack.c.bf16 %v3934, %v3934
    %v3943 = vpack.c.bf16 %v3935, %v3935
    %v3944 = vpack.c.bf16 %v3936, %v3936
    %v3945 = vpack.c.bf16 %v3937, %v3937
    %v3946 = vpack.c.bf16 %v3938, %v3938
    %v3947 = vpack.c.bf16 %v3939, %v3939
    %v3948 = vpack.c.bf16 %v3940, %v3940
    %3949 = vrot.lane.b32.xlu0 %v3411, 112
    %v3950 = vpop.permute.xlu0 %3949
    %v3952 = vsel %vm524, %v3941, 0
    %v3955 = vsel %vm528, %v3950, 0
    %3957 = vmatpush.bf16.msra.mxu0 0
    %3958 = vmatpush.bf16.msra.mxu0 0
    %3959 = vmatpush.bf16.msra.mxu0 0
    %3960 = vmatpush.bf16.msra.mxu0 0
    %3961 = vmatpush.bf16.msra.mxu0 0
    %3962 = vmatpush.bf16.msra.mxu0 0
    %3963 = vmatpush.bf16.msra.mxu0 0
    %3964 = vmatpush.bf16.msra.mxu0 %v3955
    %3965 = vmatmul.bf16.gmra.mxu0 %v3952
    %v3966 = vpop.f32.mrf.mxu0
    %v3967 = vadd.f32 0.0, %v3966
    %v3968 = vpop.f32.mrf.mxu0
    %3969 = vdwg.mxu0
    %3970 = vrot.lane.b32.xlu0 %v3435, 112
    %v3971 = vpop.permute.xlu0 %3970
    %v3973 = vsel %vm524, %v3942, 0
    %v3976 = vsel %vm528, %v3971, 0
    %3978 = vmatpush.bf16.msra.mxu0 0
    %3979 = vmatpush.bf16.msra.mxu0 0
    %3980 = vmatpush.bf16.msra.mxu0 0
    %3981 = vmatpush.bf16.msra.mxu0 0
    %3982 = vmatpush.bf16.msra.mxu0 0
    %3983 = vmatpush.bf16.msra.mxu0 0
    %3984 = vmatpush.bf16.msra.mxu0 0
    %3985 = vmatpush.bf16.msra.mxu0 %v3976
    %3986 = vmatmul.bf16.gmra.mxu0 %v3973
    %v3987 = vpop.f32.mrf.mxu0
    %v3988 = vadd.f32 0.0, %v3987
    %v3989 = vpop.f32.mrf.mxu0
    %3990 = vdwg.mxu0
    %3991 = vrot.lane.b32.xlu0 %v3459, 112
    %v3992 = vpop.permute.xlu0 %3991
    %v3994 = vsel %vm524, %v3943, 0
    %v3997 = vsel %vm528, %v3992, 0
    %3999 = vmatpush.bf16.msra.mxu0 0
    %4000 = vmatpush.bf16.msra.mxu0 0
    %4001 = vmatpush.bf16.msra.mxu0 0
    %4002 = vmatpush.bf16.msra.mxu0 0
    %4003 = vmatpush.bf16.msra.mxu0 0
    %4004 = vmatpush.bf16.msra.mxu0 0
    %4005 = vmatpush.bf16.msra.mxu0 0
    %4006 = vmatpush.bf16.msra.mxu0 %v3997
    %4007 = vmatmul.bf16.gmra.mxu0 %v3994
    %v4008 = vpop.f32.mrf.mxu0
    %v4009 = vadd.f32 0.0, %v4008
    %v4010 = vpop.f32.mrf.mxu0
    %4011 = vdwg.mxu0
    %4012 = vrot.lane.b32.xlu0 %v3483, 112
    %v4013 = vpop.permute.xlu0 %4012
    %v4015 = vsel %vm524, %v3944, 0
    %v4018 = vsel %vm528, %v4013, 0
    %4020 = vmatpush.bf16.msra.mxu0 0
    %4021 = vmatpush.bf16.msra.mxu0 0
    %4022 = vmatpush.bf16.msra.mxu0 0
    %4023 = vmatpush.bf16.msra.mxu0 0
    %4024 = vmatpush.bf16.msra.mxu0 0
    %4025 = vmatpush.bf16.msra.mxu0 0
    %4026 = vmatpush.bf16.msra.mxu0 0
    %4027 = vmatpush.bf16.msra.mxu0 %v4018
    %4028 = vmatmul.bf16.gmra.mxu0 %v4015
    %v4029 = vpop.f32.mrf.mxu0
    %v4030 = vadd.f32 0.0, %v4029
    %v4031 = vpop.f32.mrf.mxu0
    %4032 = vdwg.mxu0
    %4033 = vrot.lane.b32.xlu0 %v3507, 112
    %v4034 = vpop.permute.xlu0 %4033
    %v4036 = vsel %vm524, %v3945, 0
    %v4039 = vsel %vm528, %v4034, 0
    %4041 = vmatpush.bf16.msra.mxu0 0
    %4042 = vmatpush.bf16.msra.mxu0 0
    %4043 = vmatpush.bf16.msra.mxu0 0
    %4044 = vmatpush.bf16.msra.mxu0 0
    %4045 = vmatpush.bf16.msra.mxu0 0
    %4046 = vmatpush.bf16.msra.mxu0 0
    %4047 = vmatpush.bf16.msra.mxu0 0
    %4048 = vmatpush.bf16.msra.mxu0 %v4039
    %4049 = vmatmul.bf16.gmra.mxu0 %v4036
    %v4050 = vpop.f32.mrf.mxu0
    %v4051 = vadd.f32 0.0, %v4050
    %v4052 = vpop.f32.mrf.mxu0
    %4053 = vdwg.mxu0
    %4054 = vrot.lane.b32.xlu0 %v3531, 112
    %v4055 = vpop.permute.xlu0 %4054
    %v4057 = vsel %vm524, %v3946, 0
    %v4060 = vsel %vm528, %v4055, 0
    %4062 = vmatpush.bf16.msra.mxu0 0
    %4063 = vmatpush.bf16.msra.mxu0 0
    %4064 = vmatpush.bf16.msra.mxu0 0
    %4065 = vmatpush.bf16.msra.mxu0 0
    %4066 = vmatpush.bf16.msra.mxu0 0
    %4067 = vmatpush.bf16.msra.mxu0 0
    %4068 = vmatpush.bf16.msra.mxu0 0
    %4069 = vmatpush.bf16.msra.mxu0 %v4060
    %4070 = vmatmul.bf16.gmra.mxu0 %v4057
    %v4071 = vpop.f32.mrf.mxu0
    %v4072 = vadd.f32 0.0, %v4071
    %v4073 = vpop.f32.mrf.mxu0
    %4074 = vdwg.mxu0
    %4075 = vrot.lane.b32.xlu0 %v3555, 112
    %v4076 = vpop.permute.xlu0 %4075
    %v4078 = vsel %vm524, %v3947, 0
    %v4081 = vsel %vm528, %v4076, 0
    %4083 = vmatpush.bf16.msra.mxu0 0
    %4084 = vmatpush.bf16.msra.mxu0 0
    %4085 = vmatpush.bf16.msra.mxu0 0
    %4086 = vmatpush.bf16.msra.mxu0 0
    %4087 = vmatpush.bf16.msra.mxu0 0
    %4088 = vmatpush.bf16.msra.mxu0 0
    %4089 = vmatpush.bf16.msra.mxu0 0
    %4090 = vmatpush.bf16.msra.mxu0 %v4081
    %4091 = vmatmul.bf16.gmra.mxu0 %v4078
    %v4092 = vpop.f32.mrf.mxu0
    %v4093 = vadd.f32 0.0, %v4092
    %v4094 = vpop.f32.mrf.mxu0
    %4095 = vdwg.mxu0
    %4096 = vrot.lane.b32.xlu0 %v3579, 112
    %v4097 = vpop.permute.xlu0 %4096
    %v4099 = vsel %vm524, %v3948, 0
    %v4102 = vsel %vm528, %v4097, 0
    %4104 = vmatpush.bf16.msra.mxu0 0
    %4105 = vmatpush.bf16.msra.mxu0 0
    %4106 = vmatpush.bf16.msra.mxu0 0
    %4107 = vmatpush.bf16.msra.mxu0 0
    %4108 = vmatpush.bf16.msra.mxu0 0
    %4109 = vmatpush.bf16.msra.mxu0 0
    %4110 = vmatpush.bf16.msra.mxu0 0
    %4111 = vmatpush.bf16.msra.mxu0 %v4102
    %4112 = vmatmul.bf16.gmra.mxu0 %v4099
    %v4113 = vpop.f32.mrf.mxu0
    %v4114 = vadd.f32 0.0, %v4113
    %v4115 = vpop.f32.mrf.mxu0
    %4116 = vdwg.mxu0
    %4125 = vst [vmem:[#allocation1] ss:$4 sm:$0xff] %v3967
    %s4126 = scalar_lea.vmem [#allocation1], 1
    %4127 = vst [vmem:[%s4126] ss:$4 sm:$0xff] %v3988
    %s4128 = scalar_lea.vmem [#allocation1], 2
    %4129 = vst [vmem:[%s4128] ss:$4 sm:$0xff] %v4009
    %s4130 = scalar_lea.vmem [#allocation1], 3
    %4131 = vst [vmem:[%s4130] ss:$4 sm:$0xff] %v4030
    %s4132 = scalar_lea.vmem [#allocation1], 32
    %4133 = vst [vmem:[%s4132] ss:$4 sm:$0xff] %v4051
    %s4134 = scalar_lea.vmem [#allocation1], 33
    %4135 = vst [vmem:[%s4134] ss:$4 sm:$0xff] %v4072
    %s4136 = scalar_lea.vmem [#allocation1], 34
    %4137 = vst [vmem:[%s4136] ss:$4 sm:$0xff] %v4093
    %s4138 = scalar_lea.vmem [#allocation1], 35
    %4139 = vst [vmem:[%s4138] ss:$4 sm:$0xff] %v4114
    %v4140 = vld.sshfl [vmem:[#allocation1] sm:$0xff pattern:$0x73625140]
    %v4141 = vld.sshfl [vmem:[#allocation1 + $0x20] sm:$0xff pattern:$0x73625140]
    %v4144 = vpack.c.bf16 %v4141, %v4140
    %v4146 = vsel %vm274, %v4144, 0
    %v4149 = vsel %vm1257, %v2583, 0
    %4151 = vmatpush.bf16.msra.mxu0 0
    %4152 = vmatpush.bf16.msra.mxu0 0
    %4153 = vmatpush.bf16.msra.mxu0 0
    %4154 = vmatpush.bf16.msra.mxu0 0
    %4155 = vmatpush.bf16.msra.mxu0 0
    %4156 = vmatpush.bf16.msra.mxu0 0
    %4157 = vmatpush.bf16.msra.mxu0 0
    %4158 = vmatpush.bf16.msra.mxu0 %v4149
    %4159 = vmatmul.bf16.gmra.mxu0 %v4146
    %v4160 = vpop.f32.mrf.mxu0
    %v4161 = vadd.f32 0.0, %v4160
    %v4162 = vpop.f32.mrf.mxu0
    %v4163 = vadd.f32 0.0, %v4162
    %4164 = vdwg.mxu0
    %v4165 = vadd.f32 %v3665, %v4161
    %v4166 = vadd.f32 %v3667, %v4163
    %4167 = vrot.lane.b32.xlu0 %v3083, 104
    %v4168 = vpop.permute.xlu0 %4167
    %4169 = vrot.lane.b32.xlu0 %v3088, 104
    %v4170 = vpop.permute.xlu0 %4169
    %v4172 = vsel %vm274, %v4168, 0
    %v4175 = vsel %vm274, %v4170, 0
    %4177 = vmatpush.bf16.xpose.msra.mxu0 0
    %4178 = vmatpush.bf16.xpose.msra.mxu0 0
    %4179 = vmatpush.bf16.xpose.msra.mxu0 0
    %4180 = vmatpush.bf16.xpose.msra.mxu0 0
    %4181 = vmatpush.bf16.xpose.msra.mxu0 0
    %4182 = vmatpush.bf16.xpose.msra.mxu0 0
    %4183 = vmatpush.bf16.xpose.msra.mxu0 0
    %4184 = vmatpush.bf16.xpose.msra.mxu0 %v4175
    %4185 = vmatmul.bf16.gmra.mxu0 %v4172
    %v4186 = vpop.f32.mrf.mxu0
    %v4187 = vadd.f32 0.0, %v4186
    %v4188 = vpop.f32.mrf.mxu0
    %4189 = vdwg.mxu0
    %4190 = vrot.lane.b32.xlu0 %v3112, 104
    %v4191 = vpop.permute.xlu0 %4190
    %4192 = vrot.lane.b32.xlu0 %v3117, 104
    %v4193 = vpop.permute.xlu0 %4192
    %v4195 = vsel %vm274, %v4191, 0
    %v4198 = vsel %vm274, %v4193, 0
    %4200 = vmatpush.bf16.xpose.msra.mxu0 0
    %4201 = vmatpush.bf16.xpose.msra.mxu0 0
    %4202 = vmatpush.bf16.xpose.msra.mxu0 0
    %4203 = vmatpush.bf16.xpose.msra.mxu0 0
    %4204 = vmatpush.bf16.xpose.msra.mxu0 0
    %4205 = vmatpush.bf16.xpose.msra.mxu0 0
    %4206 = vmatpush.bf16.xpose.msra.mxu0 0
    %4207 = vmatpush.bf16.xpose.msra.mxu0 %v4198
    %4208 = vmatmul.bf16.gmra.mxu0 %v4195
    %v4209 = vpop.f32.mrf.mxu0
    %v4210 = vadd.f32 0.0, %v4209
    %v4211 = vpop.f32.mrf.mxu0
    %4212 = vdwg.mxu0
    %4213 = vrot.lane.b32.xlu0 %v3141, 104
    %v4214 = vpop.permute.xlu0 %4213
    %4215 = vrot.lane.b32.xlu0 %v3146, 104
    %v4216 = vpop.permute.xlu0 %4215
    %v4218 = vsel %vm274, %v4214, 0
    %v4221 = vsel %vm274, %v4216, 0
    %4223 = vmatpush.bf16.xpose.msra.mxu0 0
    %4224 = vmatpush.bf16.xpose.msra.mxu0 0
    %4225 = vmatpush.bf16.xpose.msra.mxu0 0
    %4226 = vmatpush.bf16.xpose.msra.mxu0 0
    %4227 = vmatpush.bf16.xpose.msra.mxu0 0
    %4228 = vmatpush.bf16.xpose.msra.mxu0 0
    %4229 = vmatpush.bf16.xpose.msra.mxu0 0
    %4230 = vmatpush.bf16.xpose.msra.mxu0 %v4221
    %4231 = vmatmul.bf16.gmra.mxu0 %v4218
    %v4232 = vpop.f32.mrf.mxu0
    %v4233 = vadd.f32 0.0, %v4232
    %v4234 = vpop.f32.mrf.mxu0
    %4235 = vdwg.mxu0
    %4236 = vrot.lane.b32.xlu0 %v3170, 104
    %v4237 = vpop.permute.xlu0 %4236
    %4238 = vrot.lane.b32.xlu0 %v3175, 104
    %v4239 = vpop.permute.xlu0 %4238
    %v4241 = vsel %vm274, %v4237, 0
    %v4244 = vsel %vm274, %v4239, 0
    %4246 = vmatpush.bf16.xpose.msra.mxu0 0
    %4247 = vmatpush.bf16.xpose.msra.mxu0 0
    %4248 = vmatpush.bf16.xpose.msra.mxu0 0
    %4249 = vmatpush.bf16.xpose.msra.mxu0 0
    %4250 = vmatpush.bf16.xpose.msra.mxu0 0
    %4251 = vmatpush.bf16.xpose.msra.mxu0 0
    %4252 = vmatpush.bf16.xpose.msra.mxu0 0
    %4253 = vmatpush.bf16.xpose.msra.mxu0 %v4244
    %4254 = vmatmul.bf16.gmra.mxu0 %v4241
    %v4255 = vpop.f32.mrf.mxu0
    %v4256 = vadd.f32 0.0, %v4255
    %v4257 = vpop.f32.mrf.mxu0
    %4258 = vdwg.mxu0
    %4259 = vrot.lane.b32.xlu0 %v3199, 104
    %v4260 = vpop.permute.xlu0 %4259
    %4261 = vrot.lane.b32.xlu0 %v3204, 104
    %v4262 = vpop.permute.xlu0 %4261
    %v4264 = vsel %vm274, %v4260, 0
    %v4267 = vsel %vm274, %v4262, 0
    %4269 = vmatpush.bf16.xpose.msra.mxu0 0
    %4270 = vmatpush.bf16.xpose.msra.mxu0 0
    %4271 = vmatpush.bf16.xpose.msra.mxu0 0
    %4272 = vmatpush.bf16.xpose.msra.mxu0 0
    %4273 = vmatpush.bf16.xpose.msra.mxu0 0
    %4274 = vmatpush.bf16.xpose.msra.mxu0 0
    %4275 = vmatpush.bf16.xpose.msra.mxu0 0
    %4276 = vmatpush.bf16.xpose.msra.mxu0 %v4267
    %4277 = vmatmul.bf16.gmra.mxu0 %v4264
    %v4278 = vpop.f32.mrf.mxu0
    %v4279 = vadd.f32 0.0, %v4278
    %v4280 = vpop.f32.mrf.mxu0
    %4281 = vdwg.mxu0
    %4282 = vrot.lane.b32.xlu0 %v3228, 104
    %v4283 = vpop.permute.xlu0 %4282
    %4284 = vrot.lane.b32.xlu0 %v3233, 104
    %v4285 = vpop.permute.xlu0 %4284
    %v4287 = vsel %vm274, %v4283, 0
    %v4290 = vsel %vm274, %v4285, 0
    %4292 = vmatpush.bf16.xpose.msra.mxu0 0
    %4293 = vmatpush.bf16.xpose.msra.mxu0 0
    %4294 = vmatpush.bf16.xpose.msra.mxu0 0
    %4295 = vmatpush.bf16.xpose.msra.mxu0 0
    %4296 = vmatpush.bf16.xpose.msra.mxu0 0
    %4297 = vmatpush.bf16.xpose.msra.mxu0 0
    %4298 = vmatpush.bf16.xpose.msra.mxu0 0
    %4299 = vmatpush.bf16.xpose.msra.mxu0 %v4290
    %4300 = vmatmul.bf16.gmra.mxu0 %v4287
    %v4301 = vpop.f32.mrf.mxu0
    %v4302 = vadd.f32 0.0, %v4301
    %v4303 = vpop.f32.mrf.mxu0
    %4304 = vdwg.mxu0
    %4305 = vrot.lane.b32.xlu0 %v3257, 104
    %v4306 = vpop.permute.xlu0 %4305
    %4307 = vrot.lane.b32.xlu0 %v3262, 104
    %v4308 = vpop.permute.xlu0 %4307
    %v4310 = vsel %vm274, %v4306, 0
    %v4313 = vsel %vm274, %v4308, 0
    %4315 = vmatpush.bf16.xpose.msra.mxu0 0
    %4316 = vmatpush.bf16.xpose.msra.mxu0 0
    %4317 = vmatpush.bf16.xpose.msra.mxu0 0
    %4318 = vmatpush.bf16.xpose.msra.mxu0 0
    %4319 = vmatpush.bf16.xpose.msra.mxu0 0
    %4320 = vmatpush.bf16.xpose.msra.mxu0 0
    %4321 = vmatpush.bf16.xpose.msra.mxu0 0
    %4322 = vmatpush.bf16.xpose.msra.mxu0 %v4313
    %4323 = vmatmul.bf16.gmra.mxu0 %v4310
    %v4324 = vpop.f32.mrf.mxu0
    %v4325 = vadd.f32 0.0, %v4324
    %v4326 = vpop.f32.mrf.mxu0
    %4327 = vdwg.mxu0
    %4328 = vrot.lane.b32.xlu0 %v3286, 104
    %v4329 = vpop.permute.xlu0 %4328
    %4330 = vrot.lane.b32.xlu0 %v3291, 104
    %v4331 = vpop.permute.xlu0 %4330
    %v4333 = vsel %vm274, %v4329, 0
    %v4336 = vsel %vm274, %v4331, 0
    %4338 = vmatpush.bf16.xpose.msra.mxu0 0
    %4339 = vmatpush.bf16.xpose.msra.mxu0 0
    %4340 = vmatpush.bf16.xpose.msra.mxu0 0
    %4341 = vmatpush.bf16.xpose.msra.mxu0 0
    %4342 = vmatpush.bf16.xpose.msra.mxu0 0
    %4343 = vmatpush.bf16.xpose.msra.mxu0 0
    %4344 = vmatpush.bf16.xpose.msra.mxu0 0
    %4345 = vmatpush.bf16.xpose.msra.mxu0 %v4336
    %4346 = vmatmul.bf16.gmra.mxu0 %v4333
    %v4347 = vpop.f32.mrf.mxu0
    %v4348 = vadd.f32 0.0, %v4347
    %v4349 = vpop.f32.mrf.mxu0
    %4350 = vdwg.mxu0
    %v4351 = vsel %vm427, %v4187, -inf
    %4352 = vmax.xlane.f32.xlu0 %v4351
    %v4353 = vpop.xlane.xlu0 %4352
    %v4354 = vsel %vm427, %v4210, -inf
    %4355 = vmax.xlane.f32.xlu0 %v4354
    %v4356 = vpop.xlane.xlu0 %4355
    %v4357 = vsel %vm427, %v4233, -inf
    %4358 = vmax.xlane.f32.xlu0 %v4357
    %v4359 = vpop.xlane.xlu0 %4358
    %v4360 = vsel %vm427, %v4256, -inf
    %4361 = vmax.xlane.f32.xlu0 %v4360
    %v4362 = vpop.xlane.xlu0 %4361
    %v4363 = vsel %vm427, %v4279, -inf
    %4364 = vmax.xlane.f32.xlu0 %v4363
    %v4365 = vpop.xlane.xlu0 %4364
    %v4366 = vsel %vm427, %v4302, -inf
    %4367 = vmax.xlane.f32.xlu0 %v4366
    %v4368 = vpop.xlane.xlu0 %4367
    %v4369 = vsel %vm427, %v4325, -inf
    %4370 = vmax.xlane.f32.xlu0 %v4369
    %v4371 = vpop.xlane.xlu0 %4370
    %v4372 = vsel %vm427, %v4348, -inf
    %4373 = vmax.xlane.f32.xlu0 %v4372
    %v4374 = vpop.xlane.xlu0 %4373
    %v4375 = vsub.f32 %v4187, %v4353
    %v4376 = vsub.f32 %v4210, %v4356
    %v4377 = vsub.f32 %v4233, %v4359
    %v4378 = vsub.f32 %v4256, %v4362
    %v4379 = vsub.f32 %v4279, %v4365
    %v4380 = vsub.f32 %v4302, %v4368
    %v4381 = vsub.f32 %v4325, %v4371
    %v4382 = vsub.f32 %v4348, %v4374
    %v4383 = vmul.f32 %v4375, 1.442695
    %v4384 = vpow.pop %v4383
    %v4385 = vmul.f32 %v4376, 1.442695
    %v4386 = vpow.pop %v4385
    %v4387 = vmul.f32 %v4377, 1.442695
    %v4388 = vpow.pop %v4387
    %v4389 = vmul.f32 %v4378, 1.442695
    %v4390 = vpow.pop %v4389
    %v4391 = vmul.f32 %v4379, 1.442695
    %v4392 = vpow.pop %v4391
    %v4393 = vmul.f32 %v4380, 1.442695
    %v4394 = vpow.pop %v4393
    %v4395 = vmul.f32 %v4381, 1.442695
    %v4396 = vpow.pop %v4395
    %v4397 = vmul.f32 %v4382, 1.442695
    %v4398 = vpow.pop %v4397
    %v4399 = vsel %vm427, %v4384, 0.0
    %4400 = vadd.xlane.f32.xlu0 %v4399
    %v4401 = vpop.xlane.xlu0 %4400
    %v4402 = vsel %vm427, %v4386, 0.0
    %4403 = vadd.xlane.f32.xlu0 %v4402
    %v4404 = vpop.xlane.xlu0 %4403
    %v4405 = vsel %vm427, %v4388, 0.0
    %4406 = vadd.xlane.f32.xlu0 %v4405
    %v4407 = vpop.xlane.xlu0 %4406
    %v4408 = vsel %vm427, %v4390, 0.0
    %4409 = vadd.xlane.f32.xlu0 %v4408
    %v4410 = vpop.xlane.xlu0 %4409
    %v4411 = vsel %vm427, %v4392, 0.0
    %4412 = vadd.xlane.f32.xlu0 %v4411
    %v4413 = vpop.xlane.xlu0 %4412
    %v4414 = vsel %vm427, %v4394, 0.0
    %4415 = vadd.xlane.f32.xlu0 %v4414
    %v4416 = vpop.xlane.xlu0 %4415
    %v4417 = vsel %vm427, %v4396, 0.0
    %4418 = vadd.xlane.f32.xlu0 %v4417
    %v4419 = vpop.xlane.xlu0 %4418
    %v4420 = vsel %vm427, %v4398, 0.0
    %4421 = vadd.xlane.f32.xlu0 %v4420
    %v4422 = vpop.xlane.xlu0 %4421
    %v4423 = vrcp.pop %v4401
    %v4424 = vrcp.pop %v4404
    %v4425 = vrcp.pop %v4407
    %v4426 = vrcp.pop %v4410
    %v4427 = vrcp.pop %v4413
    %v4428 = vrcp.pop %v4416
    %v4429 = vrcp.pop %v4419
    %v4430 = vrcp.pop %v4422
    %v4431 = vmul.f32 %v4384, %v4423
    %v4432 = vmul.f32 %v4386, %v4424
    %v4433 = vmul.f32 %v4388, %v4425
    %v4434 = vmul.f32 %v4390, %v4426
    %v4435 = vmul.f32 %v4392, %v4427
    %v4436 = vmul.f32 %v4394, %v4428
    %v4437 = vmul.f32 %v4396, %v4429
    %v4438 = vmul.f32 %v4398, %v4430
    %v4439 = vpack.c.bf16 %v4431, %v4431
    %v4440 = vpack.c.bf16 %v4432, %v4432
    %v4441 = vpack.c.bf16 %v4433, %v4433
    %v4442 = vpack.c.bf16 %v4434, %v4434
    %v4443 = vpack.c.bf16 %v4435, %v4435
    %v4444 = vpack.c.bf16 %v4436, %v4436
    %v4445 = vpack.c.bf16 %v4437, %v4437
    %v4446 = vpack.c.bf16 %v4438, %v4438
    %4447 = vrot.lane.b32.xlu0 %v3411, 104
    %v4448 = vpop.permute.xlu0 %4447
    %v4450 = vsel %vm524, %v4439, 0
    %v4453 = vsel %vm528, %v4448, 0
    %4455 = vmatpush.bf16.msra.mxu0 0
    %4456 = vmatpush.bf16.msra.mxu0 0
    %4457 = vmatpush.bf16.msra.mxu0 0
    %4458 = vmatpush.bf16.msra.mxu0 0
    %4459 = vmatpush.bf16.msra.mxu0 0
    %4460 = vmatpush.bf16.msra.mxu0 0
    %4461 = vmatpush.bf16.msra.mxu0 0
    %4462 = vmatpush.bf16.msra.mxu0 %v4453
    %4463 = vmatmul.bf16.gmra.mxu0 %v4450
    %v4464 = vpop.f32.mrf.mxu0
    %v4465 = vadd.f32 0.0, %v4464
    %v4466 = vpop.f32.mrf.mxu0
    %4467 = vdwg.mxu0
    %4468 = vrot.lane.b32.xlu0 %v3435, 104
    %v4469 = vpop.permute.xlu0 %4468
    %v4471 = vsel %vm524, %v4440, 0
    %v4474 = vsel %vm528, %v4469, 0
    %4476 = vmatpush.bf16.msra.mxu0 0
    %4477 = vmatpush.bf16.msra.mxu0 0
    %4478 = vmatpush.bf16.msra.mxu0 0
    %4479 = vmatpush.bf16.msra.mxu0 0
    %4480 = vmatpush.bf16.msra.mxu0 0
    %4481 = vmatpush.bf16.msra.mxu0 0
    %4482 = vmatpush.bf16.msra.mxu0 0
    %4483 = vmatpush.bf16.msra.mxu0 %v4474
    %4484 = vmatmul.bf16.gmra.mxu0 %v4471
    %v4485 = vpop.f32.mrf.mxu0
    %v4486 = vadd.f32 0.0, %v4485
    %v4487 = vpop.f32.mrf.mxu0
    %4488 = vdwg.mxu0
    %4489 = vrot.lane.b32.xlu0 %v3459, 104
    %v4490 = vpop.permute.xlu0 %4489
    %v4492 = vsel %vm524, %v4441, 0
    %v4495 = vsel %vm528, %v4490, 0
    %4497 = vmatpush.bf16.msra.mxu0 0
    %4498 = vmatpush.bf16.msra.mxu0 0
    %4499 = vmatpush.bf16.msra.mxu0 0
    %4500 = vmatpush.bf16.msra.mxu0 0
    %4501 = vmatpush.bf16.msra.mxu0 0
    %4502 = vmatpush.bf16.msra.mxu0 0
    %4503 = vmatpush.bf16.msra.mxu0 0
    %4504 = vmatpush.bf16.msra.mxu0 %v4495
    %4505 = vmatmul.bf16.gmra.mxu0 %v4492
    %v4506 = vpop.f32.mrf.mxu0
    %v4507 = vadd.f32 0.0, %v4506
    %v4508 = vpop.f32.mrf.mxu0
    %4509 = vdwg.mxu0
    %4510 = vrot.lane.b32.xlu0 %v3483, 104
    %v4511 = vpop.permute.xlu0 %4510
    %v4513 = vsel %vm524, %v4442, 0
    %v4516 = vsel %vm528, %v4511, 0
    %4518 = vmatpush.bf16.msra.mxu0 0
    %4519 = vmatpush.bf16.msra.mxu0 0
    %4520 = vmatpush.bf16.msra.mxu0 0
    %4521 = vmatpush.bf16.msra.mxu0 0
    %4522 = vmatpush.bf16.msra.mxu0 0
    %4523 = vmatpush.bf16.msra.mxu0 0
    %4524 = vmatpush.bf16.msra.mxu0 0
    %4525 = vmatpush.bf16.msra.mxu0 %v4516
    %4526 = vmatmul.bf16.gmra.mxu0 %v4513
    %v4527 = vpop.f32.mrf.mxu0
    %v4528 = vadd.f32 0.0, %v4527
    %v4529 = vpop.f32.mrf.mxu0
    %4530 = vdwg.mxu0
    %4531 = vrot.lane.b32.xlu0 %v3507, 104
    %v4532 = vpop.permute.xlu0 %4531
    %v4534 = vsel %vm524, %v4443, 0
    %v4537 = vsel %vm528, %v4532, 0
    %4539 = vmatpush.bf16.msra.mxu0 0
    %4540 = vmatpush.bf16.msra.mxu0 0
    %4541 = vmatpush.bf16.msra.mxu0 0
    %4542 = vmatpush.bf16.msra.mxu0 0
    %4543 = vmatpush.bf16.msra.mxu0 0
    %4544 = vmatpush.bf16.msra.mxu0 0
    %4545 = vmatpush.bf16.msra.mxu0 0
    %4546 = vmatpush.bf16.msra.mxu0 %v4537
    %4547 = vmatmul.bf16.gmra.mxu0 %v4534
    %v4548 = vpop.f32.mrf.mxu0
    %v4549 = vadd.f32 0.0, %v4548
    %v4550 = vpop.f32.mrf.mxu0
    %4551 = vdwg.mxu0
    %4552 = vrot.lane.b32.xlu0 %v3531, 104
    %v4553 = vpop.permute.xlu0 %4552
    %v4555 = vsel %vm524, %v4444, 0
    %v4558 = vsel %vm528, %v4553, 0
    %4560 = vmatpush.bf16.msra.mxu0 0
    %4561 = vmatpush.bf16.msra.mxu0 0
    %4562 = vmatpush.bf16.msra.mxu0 0
    %4563 = vmatpush.bf16.msra.mxu0 0
    %4564 = vmatpush.bf16.msra.mxu0 0
    %4565 = vmatpush.bf16.msra.mxu0 0
    %4566 = vmatpush.bf16.msra.mxu0 0
    %4567 = vmatpush.bf16.msra.mxu0 %v4558
    %4568 = vmatmul.bf16.gmra.mxu0 %v4555
    %v4569 = vpop.f32.mrf.mxu0
    %v4570 = vadd.f32 0.0, %v4569
    %v4571 = vpop.f32.mrf.mxu0
    %4572 = vdwg.mxu0
    %4573 = vrot.lane.b32.xlu0 %v3555, 104
    %v4574 = vpop.permute.xlu0 %4573
    %v4576 = vsel %vm524, %v4445, 0
    %v4579 = vsel %vm528, %v4574, 0
    %4581 = vmatpush.bf16.msra.mxu0 0
    %4582 = vmatpush.bf16.msra.mxu0 0
    %4583 = vmatpush.bf16.msra.mxu0 0
    %4584 = vmatpush.bf16.msra.mxu0 0
    %4585 = vmatpush.bf16.msra.mxu0 0
    %4586 = vmatpush.bf16.msra.mxu0 0
    %4587 = vmatpush.bf16.msra.mxu0 0
    %4588 = vmatpush.bf16.msra.mxu0 %v4579
    %4589 = vmatmul.bf16.gmra.mxu0 %v4576
    %v4590 = vpop.f32.mrf.mxu0
    %v4591 = vadd.f32 0.0, %v4590
    %v4592 = vpop.f32.mrf.mxu0
    %4593 = vdwg.mxu0
    %4594 = vrot.lane.b32.xlu0 %v3579, 104
    %v4595 = vpop.permute.xlu0 %4594
    %v4597 = vsel %vm524, %v4446, 0
    %v4600 = vsel %vm528, %v4595, 0
    %4602 = vmatpush.bf16.msra.mxu0 0
    %4603 = vmatpush.bf16.msra.mxu0 0
    %4604 = vmatpush.bf16.msra.mxu0 0
    %4605 = vmatpush.bf16.msra.mxu0 0
    %4606 = vmatpush.bf16.msra.mxu0 0
    %4607 = vmatpush.bf16.msra.mxu0 0
    %4608 = vmatpush.bf16.msra.mxu0 0
    %4609 = vmatpush.bf16.msra.mxu0 %v4600
    %4610 = vmatmul.bf16.gmra.mxu0 %v4597
    %v4611 = vpop.f32.mrf.mxu0
    %v4612 = vadd.f32 0.0, %v4611
    %v4613 = vpop.f32.mrf.mxu0
    %4614 = vdwg.mxu0
    %4623 = vst [vmem:[#allocation1] ss:$4 sm:$0xff] %v4465
    %s4624 = scalar_lea.vmem [#allocation1], 1
    %4625 = vst [vmem:[%s4624] ss:$4 sm:$0xff] %v4486
    %s4626 = scalar_lea.vmem [#allocation1], 2
    %4627 = vst [vmem:[%s4626] ss:$4 sm:$0xff] %v4507
    %s4628 = scalar_lea.vmem [#allocation1], 3
    %4629 = vst [vmem:[%s4628] ss:$4 sm:$0xff] %v4528
    %s4630 = scalar_lea.vmem [#allocation1], 32
    %4631 = vst [vmem:[%s4630] ss:$4 sm:$0xff] %v4549
    %s4632 = scalar_lea.vmem [#allocation1], 33
    %4633 = vst [vmem:[%s4632] ss:$4 sm:$0xff] %v4570
    %s4634 = scalar_lea.vmem [#allocation1], 34
    %4635 = vst [vmem:[%s4634] ss:$4 sm:$0xff] %v4591
    %s4636 = scalar_lea.vmem [#allocation1], 35
    %4637 = vst [vmem:[%s4636] ss:$4 sm:$0xff] %v4612
    %v4638 = vld.sshfl [vmem:[#allocation1] sm:$0xff pattern:$0x73625140]
    %v4639 = vld.sshfl [vmem:[#allocation1 + $0x20] sm:$0xff pattern:$0x73625140]
    %v4642 = vpack.c.bf16 %v4639, %v4638
    %v4644 = vsel %vm274, %v4642, 0
    %v4647 = vsel %vm1257, %v2584, 0
    %4649 = vmatpush.bf16.msra.mxu0 0
    %4650 = vmatpush.bf16.msra.mxu0 0
    %4651 = vmatpush.bf16.msra.mxu0 0
    %4652 = vmatpush.bf16.msra.mxu0 0
    %4653 = vmatpush.bf16.msra.mxu0 0
    %4654 = vmatpush.bf16.msra.mxu0 0
    %4655 = vmatpush.bf16.msra.mxu0 0
    %4656 = vmatpush.bf16.msra.mxu0 %v4647
    %4657 = vmatmul.bf16.gmra.mxu0 %v4644
    %v4658 = vpop.f32.mrf.mxu0
    %v4659 = vadd.f32 0.0, %v4658
    %v4660 = vpop.f32.mrf.mxu0
    %v4661 = vadd.f32 0.0, %v4660
    %4662 = vdwg.mxu0
    %v4663 = vadd.f32 %v4165, %v4659
    %v4664 = vadd.f32 %v4166, %v4661
    %v4665 = vperm.slane %v2478, 3
    %v4666 = vadd.f32 %v4663, %v4665
    %v4667 = vadd.f32 %v4664, %v4665
    %v4668 = vadd.f32 %v2475, %v4666
    %v4669 = vadd.f32 %v2476, %v4667
    %v4670 = vsel %vm122, %v4668, 0.0
    %4671 = vadd.xlane.f32.xlu0 %v4670
    %v4672 = vpop.xlane.xlu0 %4671
    %v4673 = vsel %vm122, %v4669, 0.0
    %4674 = vadd.xlane.f32.xlu0 %v4673
    %v4675 = vpop.xlane.xlu0 %4674
    %v4676 = vmul.f32 %v4672, %v2308
    %v4677 = vmul.f32 %v4675, %v2308
    %v4678 = vsub.f32 %v4668, %v4676
    %v4679 = vsub.f32 %v4669, %v4677
    %v4680 = vmul.f32 %v4678, %v4678
    %v4681 = vmul.f32 %v4679, %v4679
    %v4682 = vsel %vm122, %v4680, 0.0
    %4683 = vadd.xlane.f32.xlu0 %v4682
    %v4684 = vpop.xlane.xlu0 %4683
    %v4685 = vsel %vm122, %v4681, 0.0
    %4686 = vadd.xlane.f32.xlu0 %v4685
    %v4687 = vpop.xlane.xlu0 %4686
    %v4688 = vmul.f32 %v4684, %v2308
    %v4689 = vmul.f32 %v4687, %v2308
    %v4690 = vadd.f32 %v4688, 1e-05
    %v4691 = vadd.f32 %v4689, 1e-05
    %v4692 = vrsqrt.pop %v4690
    %v4693 = vmul.f32 %v4692, %v4690
    %v4694 = vmul.f32 %v4693, %v4692
    %v4695 = vmul.f32 0.5, %v4694
    %v4696 = vsub.f32 1.5, %v4695
    %v4697 = vmul.f32 %v4692, %v4696
    %vm4698 = vweird.f32 %v4690
    %vm4699 = vweird.f32 %v4692
    %vm4700 = vmor %vm4698, %vm4699
    %v4701 = vsel %vm4700, %v4692, %v4697
    %v4702 = vrsqrt.pop %v4691
    %v4703 = vmul.f32 %v4702, %v4691
    %v4704 = vmul.f32 %v4703, %v4702
    %v4705 = vmul.f32 0.5, %v4704
    %v4706 = vsub.f32 1.5, %v4705
    %v4707 = vmul.f32 %v4702, %v4706
    %vm4708 = vweird.f32 %v4691
    %vm4709 = vweird.f32 %v4702
    %vm4710 = vmor %vm4708, %vm4709
    %v4711 = vsel %vm4710, %v4702, %v4707
    %v4712 = vmul.f32 %v4678, %v4701
    %v4713 = vmul.f32 %v4679, %v4711
    %v4714 = vperm.slane %v2478, 4
    %v4715 = vmul.f32 %v4712, %v4714
    %v4716 = vmul.f32 %v4713, %v4714
    %v4717 = vperm.slane %v2478, 5
    %v4718 = vadd.f32 %v4715, %v4717
    %v4719 = vadd.f32 %v4716, %v4717
    %v4720 = vpack.c.bf16 %v4719, %v4718
    %s4721 = scalar_lea.vmem [#allocation7], 16
    %v4722 = vld [vmem:[%s4721] sm:$0xf]
    %v4723 = vld [vmem:[%s4721 + $0x4] sm:$0xf]
    %v4724 = vld [vmem:[%s4721 + $0x8] sm:$0xf]
    %v4725 = vld [vmem:[%s4721 + $0xc] sm:$0xf]
    %v4726 = vperm.slane %v2478, 6
    %v4731 = vunpack.c.l.b16 %v4722
    %v4732 = vunpack.c.l.b16 %v4723
    %v4733 = vunpack.c.l.b16 %v4724
    %v4734 = vunpack.c.l.b16 %v4725
    %v4735 = vpack.c.b16 %v4732, %v4731
    %v4736 = vpack.c.b16 %v4734, %v4733
    %v4740 = vsel %vm122, %v4720, 0
    %4742 = vmatpush.bf16.msra.mxu0 0
    %4743 = vmatpush.bf16.msra.mxu0 0
    %4744 = vmatpush.bf16.msra.mxu0 0
    %4745 = vmatpush.bf16.msra.mxu0 0
    %4746 = vmatpush.bf16.msra.mxu0 0
    %4747 = vmatpush.bf16.msra.mxu0 0
    %4748 = vmatpush.bf16.msra.mxu0 %v4736
    %4749 = vmatpush.bf16.msra.mxu0 %v4735
    %4750 = vmatmul.bf16.gmra.mxu0 %v4740
    %v4751 = vpop.f32.mrf.mxu0
    %v4752 = vadd.f32 %v4726, %v4751
    %v4753 = vpop.f32.mrf.mxu0
    %v4754 = vadd.f32 %v4726, %v4753
    %4755 = vdwg.mxu0
    %v4756 = vmax.f32 %v4752, 0.0
    %v4757 = vmax.f32 %v4754, 0.0
    %v4758 = vpack.c.bf16 %v4757, %v4756
    %s4759 = scalar_lea.vmem [#allocation8], 16
    %v4760 = vld [vmem:[%s4759] sm:$0xf]
    %v4761 = vld [vmem:[%s4759 + $0x4] sm:$0xf]
    %v4762 = vld [vmem:[%s4759 + $0x8] sm:$0xf]
    %v4763 = vld [vmem:[%s4759 + $0xc] sm:$0xf]
    %v4764 = vperm.slane %v2478, 7
    %v4769 = vunpack.c.l.b16 %v4760
    %v4770 = vunpack.c.l.b16 %v4761
    %v4771 = vunpack.c.l.b16 %v4762
    %v4772 = vunpack.c.l.b16 %v4763
    %v4773 = vpack.c.b16 %v4770, %v4769
    %v4774 = vpack.c.b16 %v4772, %v4771
    %v4778 = vsel %vm122, %v4758, 0
    %4780 = vmatpush.bf16.msra.mxu0 0
    %4781 = vmatpush.bf16.msra.mxu0 0
    %4782 = vmatpush.bf16.msra.mxu0 0
    %4783 = vmatpush.bf16.msra.mxu0 0
    %4784 = vmatpush.bf16.msra.mxu0 0
    %4785 = vmatpush.bf16.msra.mxu0 0
    %4786 = vmatpush.bf16.msra.mxu0 %v4774
    %4787 = vmatpush.bf16.msra.mxu0 %v4773
    %4788 = vmatmul.bf16.gmra.mxu0 %v4778
    %v4789 = vpop.f32.mrf.mxu0
    %v4790 = vadd.f32 %v4764, %v4789
    %v4791 = vpop.f32.mrf.mxu0
    %v4792 = vadd.f32 %v4764, %v4791
    %4793 = vdwg.mxu0
    %v4794 = vadd.f32 %v4718, %v4790
    %v4795 = vadd.f32 %v4719, %v4792
    %v4796 = vsel %vm122, %v4794, 0.0
    %4797 = vadd.xlane.f32.xlu0 %v4796
    %v4798 = vpop.xlane.xlu0 %4797
    %v4799 = vsel %vm122, %v4795, 0.0
    %4800 = vadd.xlane.f32.xlu0 %v4799
    %v4801 = vpop.xlane.xlu0 %4800
    %v4802 = vmul.f32 %v4798, %v2308
    %v4803 = vmul.f32 %v4801, %v2308
    %v4804 = vsub.f32 %v4794, %v4802
    %v4805 = vsub.f32 %v4795, %v4803
    %v4806 = vmul.f32 %v4804, %v4804
    %v4807 = vmul.f32 %v4805, %v4805
    %v4808 = vsel %vm122, %v4806, 0.0
    %4809 = vadd.xlane.f32.xlu0 %v4808
    %v4810 = vpop.xlane.xlu0 %4809
    %v4811 = vsel %vm122, %v4807, 0.0
    %4812 = vadd.xlane.f32.xlu0 %v4811
    %v4813 = vpop.xlane.xlu0 %4812
    %v4814 = vmul.f32 %v4810, %v2308
    %v4815 = vmul.f32 %v4813, %v2308
    %v4816 = vadd.f32 %v4814, 1e-05
    %v4817 = vadd.f32 %v4815, 1e-05
    %v4818 = vrsqrt.pop %v4816
    %v4819 = vmul.f32 %v4818, %v4816
    %v4820 = vmul.f32 %v4819, %v4818
    %v4821 = vmul.f32 0.5, %v4820
    %v4822 = vsub.f32 1.5, %v4821
    %v4823 = vmul.f32 %v4818, %v4822
    %vm4824 = vweird.f32 %v4816
    %vm4825 = vweird.f32 %v4818
    %vm4826 = vmor %vm4824, %vm4825
    %v4827 = vsel %vm4826, %v4818, %v4823
    %v4828 = vrsqrt.pop %v4817
    %v4829 = vmul.f32 %v4828, %v4817
    %v4830 = vmul.f32 %v4829, %v4828
    %v4831 = vmul.f32 0.5, %v4830
    %v4832 = vsub.f32 1.5, %v4831
    %v4833 = vmul.f32 %v4828, %v4832
    %vm4834 = vweird.f32 %v4817
    %vm4835 = vweird.f32 %v4828
    %vm4836 = vmor %vm4834, %vm4835
    %v4837 = vsel %vm4836, %v4828, %v4833
    %v4838 = vmul.f32 %v4804, %v4827
    %v4839 = vmul.f32 %v4805, %v4837
    %v4840 = vperm.slane %v2479, 0
    %v4841 = vmul.f32 %v4838, %v4840
    %v4842 = vmul.f32 %v4839, %v4840
    %v4843 = vperm.slane %v2479, 1
    %v4844 = vadd.f32 %v4841, %v4843
    %v4845 = vadd.f32 %v4842, %v4843
    %v4848 = vrot.slane %v4844, 2
    %v4849 = vrot.slane %v4844, 4
    %v4850 = vrot.slane %v4844, 6
    %v4851 = vrot.slane %v4845, 2
    %v4852 = vrot.slane %v4845, 4
    %v4853 = vrot.slane %v4845, 6
    %vm4860 = vcmask 254976
    %v4861 = vsel %vm4860, %v4844, 0.0
    %v4862 = vsel %vm4860, %v4848, 0.0
    %v4863 = vadd.f32 %v4861, %v4862
    %v4864 = vsel %vm4860, %v4849, 0.0
    %v4865 = vadd.f32 %v4863, %v4864
    %v4866 = vsel %vm4860, %v4850, 0.0
    %v4867 = vadd.f32 %v4865, %v4866
    %v4868 = vsel %vm4860, %v4845, 0.0
    %v4869 = vadd.f32 %v4867, %v4868
    %v4870 = vsel %vm4860, %v4851, 0.0
    %v4871 = vadd.f32 %v4869, %v4870
    %v4872 = vsel %vm4860, %v4852, 0.0
    %v4873 = vadd.f32 %v4871, %v4872
    %v4874 = vsel %vm4860, %v4853, 0.0
    %v4875 = vadd.f32 %v4873, %v4874
    %v4876 = vrcp.pop 8.0
    %v4877 = vmul.f32 8.0, %v4876
    %v4878 = vsub.f32 1.0, %v4877
    %v4879 = vmul.f32 %v4876, %v4878
    %v4880 = vadd.f32 %v4876, %v4879
    %vm4881 = vweird.f32 %v4876
    %v4882 = vsel %vm4881, %v4876, %v4880
    %v4883 = vmul.f32 %v4875, %v4882
    %v4884 = vld [vmem:[%s8] sm:$0xff]
    %v4885 = vld [vmem:[%s8 + $0x8] sm:$0xff]
    %v4886 = vld [vmem:[%s8 + $0x10] sm:$0xff]
    %v4887 = vld [vmem:[%s8 + $0x18] sm:$0xff]
    %v4888 = vld [vmem:[%s9] sm:$0x1]
    %v4890 = vperm.slane %v4888, 0
    %v4893 = vsel %vm122, %v4883, 0
    %4895 = vmatpush.msra.mxu0 0.0
    %4896 = vmatpush.msra.mxu0 0.0
    %4897 = vmatpush.msra.mxu0 0.0
    %4898 = vmatpush.msra.mxu0 0.0
    %4899 = vmatpush.msra.mxu0 0.0
    %4900 = vmatpush.msra.mxu0 0.0
    %4901 = vmatpush.msra.mxu0 0.0
    %4902 = vmatpush.msra.mxu0 0.0
    %4903 = vmatpush.msra.mxu0 0.0
    %4904 = vmatpush.msra.mxu0 0.0
    %4905 = vmatpush.msra.mxu0 0.0
    %4906 = vmatpush.msra.mxu0 0.0
    %4907 = vmatpush.msra.mxu0 %v4887
    %4908 = vmatpush.msra.mxu0 %v4886
    %4909 = vmatpush.msra.mxu0 %v4885
    %4910 = vmatpush.msra.mxu0 %v4884
    %4911 = vmatmul.f32.gmra.mxu0 %v4893
    %v4912 = vpop.f32.mrf.mxu0
    %v4913 = vadd.f32 %v4890, %v4912
    %4914 = vdwg.mxu0
    %vm4915 = vcmask 25600
    %4916 = vst.msk [vmem:[#allocation10] sm:$0x3] %vm4915, %v4913
    // Predicated region
    $region58: #{tpu_custom_call.1} parent=1 // pred_check
      _
    $region59: #{tpu_custom_call.1} parent=1 // pred_check_branch
      %4918 = sbr.rel (0) target = $region61
    $region60: #{tpu_custom_call.1} parent=1 // pred_region
      %4920 = vsyncadd [#allocation4], 0
      %s4922 = sshll.u32 [#allocation10], 4
      %s4923 = int_to_ptr.vmem [resolvable:$true] %s4922
      %s4924 = sshll.u32 %s10, 4
      %s4925 = int_to_ptr.hbm [resolvable:$true] %s4924
      %4927 = dma.vmem_to_hbm [thread:$0]  %s4923, 32, %s4925, [#allocation4]
    $region61: #{tpu_custom_call.1} parent=1 // pred_fallthru
      _
    // Predicated region
    $region62: #{tpu_custom_call.1} parent=1 // pred_check
      _
    $region63: #{tpu_custom_call.1} parent=1 // pred_check_branch
      %4929 = sbr.rel (0) target = $region65
    $region64: #{tpu_custom_call.1} parent=1 // pred_region
      %4931 = dma.done [#allocation4], 32
    $region65: #{tpu_custom_call.1} parent=1 // pred_fallthru
      _
    %4932 = vsyncpa [#allocation3], 1
    %4933 = vsyncpa [#allocation6], 1
    %4934 = vsyncpa [#allocation9], 1
    %4935 = vsyncpa [#allocation4], 1

</llo_original>
